<compile_context>
chip_gen: v5e
topology: v5e:2x2
jax: 0.10.0
libtpu: 0.0.40
codegen_flags: <defaults>
</compile_context>

<pallas_src>
import math

import jax
import jax.numpy as jnp
from jax.experimental import pallas as pl
from jax.experimental.pallas import tpu as pltpu

D_MODEL = 32
NHEAD = 4
HEAD_DIM = D_MODEL // NHEAD
DIM_FF = 64
NUM_LAYERS = 2
LN_EPS = 1e-5


# ---------------------------------------------------------------- kernel ----

def _build_decoder_kernel(B, T, S, num_layers):
    D, H, Hd = D_MODEL, NHEAD, HEAD_DIM

    def kernel(tgt_ref, mem_ref, pos_ref, qpos_ref,
               wqk_s_ref, bqk_s_ref, wv_s_ref, bv_s_ref, wo_s_ref, bo_s_ref,
               wq_c_ref, bq_c_ref, wk_c_ref, bk_c_ref, wv_c_ref, bv_c_ref,
               wo_c_ref, bo_c_ref,
               w1_ref, b1_ref, w2_ref, b2_ref,
               lng_ref, lnb_ref,
               out_ref):
        ln_g = lng_ref[...]                       # (4, D) rows: norm1, norm2, norm3, final
        ln_b = lnb_ref[...]

        def layer_norm(z, idx):                   # z: (N, D); biased var + eps (PyTorch)
            mean = jnp.mean(z, axis=-1, keepdims=True)
            c = z - mean
            var = jnp.mean(c * c, axis=-1, keepdims=True)
            return (c * jax.lax.rsqrt(var + LN_EPS)
                    * ln_g[idx:idx + 1, :] + ln_b[idx:idx + 1, :])

        def mh_attention(q, k, v, wo, bo, Tq, Sk):
            """q:(B*Tq,D) pre-scaled, k,v:(B*Sk,D) -> (B*Tq,D)."""
            batch_outs = []
            for b in range(B):                              # unrolled (B=2)
                qb = q[b * Tq:(b + 1) * Tq]
                kb = k[b * Sk:(b + 1) * Sk]
                vb = v[b * Sk:(b + 1) * Sk]
                head_outs = []
                for h in range(H):                          # unrolled (head_dim=8)
                    sl = slice(h * Hd, (h + 1) * Hd)
                    s = jnp.dot(qb[:, sl], kb[:, sl].T,
                                preferred_element_type=jnp.float32)   # (Tq, Sk)
                    s = s - jnp.max(s, axis=-1, keepdims=True)
                    p = jnp.exp(s)
                    p = p / jnp.sum(p, axis=-1, keepdims=True)
                    head_outs.append(jnp.dot(p, vb[:, sl],
                                             preferred_element_type=jnp.float32))
                batch_outs.append(jnp.concatenate(head_outs, axis=-1))  # (Tq, D)
            attn = jnp.concatenate(batch_outs, axis=0)                  # (B*Tq, D)
            return jnp.dot(attn, wo, preferred_element_type=jnp.float32) + bo

        # ---- load activations once; flatten batch for token-wise matmuls ----
        x = tgt_ref[...].reshape(B * T, D)                    # running decoder output
        qpos = qpos_ref[...].reshape(B * T, D)
        mem = mem_ref[...].reshape(B * S, D)
        memk = (mem_ref[...] + pos_ref[...]).reshape(B * S, D)  # hoisted memory+pos

        # cross-attn K/V depend only on memory/pos and shared weights -> hoist
        # them out of the layer loop.
        k_c = jnp.dot(memk, wk_c_ref[...],
                      preferred_element_type=jnp.float32) + bk_c_ref[...]
        v_c = jnp.dot(mem, wv_c_ref[...],
                      preferred_element_type=jnp.float32) + bv_c_ref[...]

        wo_s, bo_s = wo_s_ref[...], bo_s_ref[...]
        wo_c, bo_c = wo_c_ref[...], bo_c_ref[...]

        for l in range(num_layers):                           # unrolled (shared params)
            # ---- self-attention (q = k = x + query_pos, value = x) ----
            qk_in = x + qpos
            qk = jnp.dot(qk_in, wqk_s_ref[...],
                         preferred_element_type=jnp.float32) + bqk_s_ref[...]  # (B*T, 2D)
            v_s = jnp.dot(x, wv_s_ref[...],
                          preferred_element_type=jnp.float32) + bv_s_ref[...]
            sa = mh_attention(qk[:, :D], qk[:, D:], v_s, wo_s, bo_s, T, T)
            x = layer_norm(x + sa, 0)

            # ---- cross-attention (q = x + query_pos, k/v from memory) ----
            q_c = jnp.dot(x + qpos, wq_c_ref[...],
                          preferred_element_type=jnp.float32) + bq_c_ref[...]
            ca = mh_attention(q_c, k_c, v_c, wo_c, bo_c, T, S)
            x = layer_norm(x + ca, 1)

            # ---- FFN ----
            h1 = jnp.maximum(jnp.dot(x, w1_ref[...],
                                     preferred_element_type=jnp.float32) + b1_ref[...], 0.0)
            ff = jnp.dot(h1, w2_ref[...],
                         preferred_element_type=jnp.float32) + b2_ref[...]
            x = layer_norm(x + ff, 2)

            # ---- per-layer intermediate: final decoder norm applied directly ----
            out_ref[l] = layer_norm(x, 3).reshape(B, T, D)

    return kernel


# --------------------------------------------------------------- wrapper ----

def transformer_decoder(tgt, memory, pos, query_pos, params, num_layers=NUM_LAYERS):
    """Inputs in (seq, batch, d_model) like the PyTorch module.
    Returns stacked per-layer outputs (num_layers, T, B, D) — the
    return_intermediate=True path of the reference module."""
    T, B, D = tgt.shape
    S = memory.shape[0]
    assert D == D_MODEL

    # (seq, batch, D) -> (batch, seq, D) so each batch's tokens are contiguous
    # rows; these are tiny XLA transposes fused around the single pallas_call.
    tgt_b = jnp.transpose(tgt, (1, 0, 2))
    mem_b = jnp.transpose(memory, (1, 0, 2))
    pos_b = jnp.transpose(pos, (1, 0, 2))
    qpos_b = jnp.transpose(query_pos, (1, 0, 2))

    operands = (
        tgt_b, mem_b, pos_b, qpos_b,
        params["wqk_s"], params["bqk_s"], params["wv_s"], params["bv_s"],
        params["wo_s"], params["bo_s"],
        params["wq_c"], params["bq_c"], params["wk_c"], params["bk_c"],
        params["wv_c"], params["bv_c"], params["wo_c"], params["bo_c"],
        params["w1"], params["b1"], params["w2"], params["b2"],
        params["ln_g"], params["ln_b"],
    )
    vmem_spec = pl.BlockSpec(memory_space=pltpu.MemorySpace.VMEM)
    out = pl.pallas_call(
        _build_decoder_kernel(B, T, S, num_layers),
        out_shape=jax.ShapeDtypeStruct((num_layers, B, T, D), jnp.float32),
        in_specs=[vmem_spec] * len(operands),
        out_specs=vmem_spec,
    )(*operands)
    # (L, B, T, D) -> (L, T, B, D) to match torch.stack(intermediate).
    return jnp.transpose(out, (0, 2, 1, 3))


# ---------------------------------------------------------------- params ----

def init_params(key):
    def nrm(k, shape, scale=0.05):
        return (scale * jax.random.normal(k, shape)).astype(jnp.float32)

    ks = iter(jax.random.split(key, 16))
    scale = 1.0 / math.sqrt(HEAD_DIM)

    wq_s = nrm(next(ks), (D_MODEL, D_MODEL))
    wk_s = nrm(next(ks), (D_MODEL, D_MODEL))

    # NOTE: the softmax scale is folded into the Q weights (and would be folded
    # into the Q bias too when loading a real checkpoint — biases are zero here).
    params = {
        # self-attn: Q & K share the (tgt + query_pos) input -> packed (D, 2D).
        "wqk_s": jnp.concatenate([wq_s * scale, wk_s], axis=1),
        "bqk_s": jnp.zeros((1, 2 * D_MODEL), jnp.float32),
        "wv_s": nrm(next(ks), (D_MODEL, D_MODEL)),
        "bv_s": jnp.zeros((1, D_MODEL), jnp.float32),
        "wo_s": nrm(next(ks), (D_MODEL, D_MODEL)),
        "bo_s": jnp.zeros((1, D_MODEL), jnp.float32),
        # cross-attn (q/k/v have different inputs -> kept separate).
        "wq_c": nrm(next(ks), (D_MODEL, D_MODEL)) * scale,
        "bq_c": jnp.zeros((1, D_MODEL), jnp.float32),
        "wk_c": nrm(next(ks), (D_MODEL, D_MODEL)),
        "bk_c": jnp.zeros((1, D_MODEL), jnp.float32),
        "wv_c": nrm(next(ks), (D_MODEL, D_MODEL)),
        "bv_c": jnp.zeros((1, D_MODEL), jnp.float32),
        "wo_c": nrm(next(ks), (D_MODEL, D_MODEL)),
        "bo_c": jnp.zeros((1, D_MODEL), jnp.float32),
        # FFN
        "w1": nrm(next(ks), (D_MODEL, DIM_FF)),
        "b1": jnp.zeros((1, DIM_FF), jnp.float32),
        "w2": nrm(next(ks), (DIM_FF, D_MODEL)),
        "b2": jnp.zeros((1, D_MODEL), jnp.float32),
        # LayerNorm gains/biases stacked: rows = [norm1, norm2, norm3, final norm]
        "ln_g": jnp.ones((4, D_MODEL), jnp.float32),
        "ln_b": jnp.zeros((4, D_MODEL), jnp.float32),
    }
    return params


# ------------------------------------------------------------------ main ----

if __name__ == "__main__":
    T, S, B = 8, 16, 2  # num_queries, memory length, batch
    key = jax.random.PRNGKey(0)
    k1, k2, k3, k4, kp = jax.random.split(key, 5)

    tgt = jax.random.normal(k1, (T, B, D_MODEL), dtype=jnp.float32)
    memory = jax.random.normal(k2, (S, B, D_MODEL), dtype=jnp.float32)
    pos = jax.random.normal(k3, (S, B, D_MODEL), dtype=jnp.float32)
    query_pos = jax.random.normal(k4, (T, B, D_MODEL), dtype=jnp.float32)

    params = init_params(kp)

    decode = jax.jit(
        lambda t, m, pe, qp, prm: transformer_decoder(t, m, pe, qp, prm, NUM_LAYERS))
    out = jax.block_until_ready(decode(tgt, memory, pos, query_pos, params))

    assert out.shape == (NUM_LAYERS, T, B, D_MODEL)
    assert bool(jnp.all(jnp.isfinite(out)))
    print("KERNEL_OK")
</pallas_src>

<mosaic_0001>
module attributes {stable_mosaic.version = 11 : i64} {
  func.func @kernel(%arg0: memref<2x8x32xf32, #tpu.memory_space<vmem>>, %arg1: memref<2x16x32xf32, #tpu.memory_space<vmem>>, %arg2: memref<2x16x32xf32, #tpu.memory_space<vmem>>, %arg3: memref<2x8x32xf32, #tpu.memory_space<vmem>>, %arg4: memref<32x64xf32, #tpu.memory_space<vmem>>, %arg5: memref<1x64xf32, #tpu.memory_space<vmem>>, %arg6: memref<32x32xf32, #tpu.memory_space<vmem>>, %arg7: memref<1x32xf32, #tpu.memory_space<vmem>>, %arg8: memref<32x32xf32, #tpu.memory_space<vmem>>, %arg9: memref<1x32xf32, #tpu.memory_space<vmem>>, %arg10: memref<32x32xf32, #tpu.memory_space<vmem>>, %arg11: memref<1x32xf32, #tpu.memory_space<vmem>>, %arg12: memref<32x32xf32, #tpu.memory_space<vmem>>, %arg13: memref<1x32xf32, #tpu.memory_space<vmem>>, %arg14: memref<32x32xf32, #tpu.memory_space<vmem>>, %arg15: memref<1x32xf32, #tpu.memory_space<vmem>>, %arg16: memref<32x32xf32, #tpu.memory_space<vmem>>, %arg17: memref<1x32xf32, #tpu.memory_space<vmem>>, %arg18: memref<32x64xf32, #tpu.memory_space<vmem>>, %arg19: memref<1x64xf32, #tpu.memory_space<vmem>>, %arg20: memref<64x32xf32, #tpu.memory_space<vmem>>, %arg21: memref<1x32xf32, #tpu.memory_space<vmem>>, %arg22: memref<4x32xf32, #tpu.memory_space<vmem>>, %arg23: memref<4x32xf32, #tpu.memory_space<vmem>>, %arg24: memref<2x2x8x32xf32, #tpu.memory_space<vmem>>) attributes {dimension_semantics = [], scalar_prefetch = 0 : i64, scratch_operands = 0 : i64, tpu.core_type = #tpu.core_type<tc>} {
    %c0 = arith.constant 0 : index
    %c0_0 = arith.constant 0 : index
    %0 = vector.load %arg22[%c0, %c0_0] : memref<4x32xf32, #tpu.memory_space<vmem>>, vector<4x32xf32>
    %c0_1 = arith.constant 0 : index
    %c0_2 = arith.constant 0 : index
    %1 = vector.load %arg23[%c0_1, %c0_2] : memref<4x32xf32, #tpu.memory_space<vmem>>, vector<4x32xf32>
    %c0_3 = arith.constant 0 : index
    %c0_4 = arith.constant 0 : index
    %c0_5 = arith.constant 0 : index
    %2 = vector.load %arg0[%c0_3, %c0_4, %c0_5] : memref<2x8x32xf32, #tpu.memory_space<vmem>>, vector<2x8x32xf32>
    %3 = vector.shape_cast %2 : vector<2x8x32xf32> to vector<16x32xf32>
    %c0_6 = arith.constant 0 : index
    %c0_7 = arith.constant 0 : index
    %c0_8 = arith.constant 0 : index
    %4 = vector.load %arg3[%c0_6, %c0_7, %c0_8] : memref<2x8x32xf32, #tpu.memory_space<vmem>>, vector<2x8x32xf32>
    %5 = vector.shape_cast %4 : vector<2x8x32xf32> to vector<16x32xf32>
    %c0_9 = arith.constant 0 : index
    %c0_10 = arith.constant 0 : index
    %c0_11 = arith.constant 0 : index
    %6 = vector.load %arg1[%c0_9, %c0_10, %c0_11] : memref<2x16x32xf32, #tpu.memory_space<vmem>>, vector<2x16x32xf32>
    %7 = vector.shape_cast %6 : vector<2x16x32xf32> to vector<32x32xf32>
    %c0_12 = arith.constant 0 : index
    %c0_13 = arith.constant 0 : index
    %c0_14 = arith.constant 0 : index
    %8 = vector.load %arg1[%c0_12, %c0_13, %c0_14] : memref<2x16x32xf32, #tpu.memory_space<vmem>>, vector<2x16x32xf32>
    %c0_15 = arith.constant 0 : index
    %c0_16 = arith.constant 0 : index
    %c0_17 = arith.constant 0 : index
    %9 = vector.load %arg2[%c0_15, %c0_16, %c0_17] : memref<2x16x32xf32, #tpu.memory_space<vmem>>, vector<2x16x32xf32>
    %10 = arith.addf %8, %9 : vector<2x16x32xf32>
    %11 = vector.shape_cast %10 : vector<2x16x32xf32> to vector<32x32xf32>
    %c0_18 = arith.constant 0 : index
    %c0_19 = arith.constant 0 : index
    %12 = vector.load %arg12[%c0_18, %c0_19] : memref<32x32xf32, #tpu.memory_space<vmem>>, vector<32x32xf32>
    %cst = arith.constant dense<0.000000e+00> : vector<32x32xf32>
    %13 = tpu.matmul %11, %12, %cst {dimension_numbers = #tpu.dot_dimension_numbers<[1], [0], [0], [1], [0, 0, 1, 1], [], []>} : vector<32x32xf32>, vector<32x32xf32>, vector<32x32xf32> -> vector<32x32xf32>
    %c0_20 = arith.constant 0 : index
    %c0_21 = arith.constant 0 : index
    %14 = vector.load %arg13[%c0_20, %c0_21] : memref<1x32xf32, #tpu.memory_space<vmem>>, vector<1x32xf32>
    %15 = vector.broadcast %14 : vector<1x32xf32> to vector<32x32xf32>
    %16 = arith.addf %13, %15 : vector<32x32xf32>
    %c0_22 = arith.constant 0 : index
    %c0_23 = arith.constant 0 : index
    %17 = vector.load %arg14[%c0_22, %c0_23] : memref<32x32xf32, #tpu.memory_space<vmem>>, vector<32x32xf32>
    %cst_24 = arith.constant dense<0.000000e+00> : vector<32x32xf32>
    %18 = tpu.matmul %7, %17, %cst_24 {dimension_numbers = #tpu.dot_dimension_numbers<[1], [0], [0], [1], [0, 0, 1, 1], [], []>} : vector<32x32xf32>, vector<32x32xf32>, vector<32x32xf32> -> vector<32x32xf32>
    %c0_25 = arith.constant 0 : index
    %c0_26 = arith.constant 0 : index
    %19 = vector.load %arg15[%c0_25, %c0_26] : memref<1x32xf32, #tpu.memory_space<vmem>>, vector<1x32xf32>
    %20 = vector.broadcast %19 : vector<1x32xf32> to vector<32x32xf32>
    %21 = arith.addf %18, %20 : vector<32x32xf32>
    %c0_27 = arith.constant 0 : index
    %c0_28 = arith.constant 0 : index
    %22 = vector.load %arg8[%c0_27, %c0_28] : memref<32x32xf32, #tpu.memory_space<vmem>>, vector<32x32xf32>
    %c0_29 = arith.constant 0 : index
    %c0_30 = arith.constant 0 : index
    %23 = vector.load %arg9[%c0_29, %c0_30] : memref<1x32xf32, #tpu.memory_space<vmem>>, vector<1x32xf32>
    %c0_31 = arith.constant 0 : index
    %c0_32 = arith.constant 0 : index
    %24 = vector.load %arg16[%c0_31, %c0_32] : memref<32x32xf32, #tpu.memory_space<vmem>>, vector<32x32xf32>
    %c0_33 = arith.constant 0 : index
    %c0_34 = arith.constant 0 : index
    %25 = vector.load %arg17[%c0_33, %c0_34] : memref<1x32xf32, #tpu.memory_space<vmem>>, vector<1x32xf32>
    %26 = arith.addf %3, %5 : vector<16x32xf32>
    %c0_35 = arith.constant 0 : index
    %c0_36 = arith.constant 0 : index
    %27 = vector.load %arg4[%c0_35, %c0_36] : memref<32x64xf32, #tpu.memory_space<vmem>>, vector<32x64xf32>
    %cst_37 = arith.constant dense<0.000000e+00> : vector<16x64xf32>
    %28 = tpu.matmul %26, %27, %cst_37 {dimension_numbers = #tpu.dot_dimension_numbers<[1], [0], [0], [1], [0, 0, 1, 1], [], []>} : vector<16x32xf32>, vector<32x64xf32>, vector<16x64xf32> -> vector<16x64xf32>
    %c0_38 = arith.constant 0 : index
    %c0_39 = arith.constant 0 : index
    %29 = vector.load %arg5[%c0_38, %c0_39] : memref<1x64xf32, #tpu.memory_space<vmem>>, vector<1x64xf32>
    %30 = vector.broadcast %29 : vector<1x64xf32> to vector<16x64xf32>
    %31 = arith.addf %28, %30 : vector<16x64xf32>
    %c0_40 = arith.constant 0 : index
    %c0_41 = arith.constant 0 : index
    %32 = vector.load %arg6[%c0_40, %c0_41] : memref<32x32xf32, #tpu.memory_space<vmem>>, vector<32x32xf32>
    %cst_42 = arith.constant dense<0.000000e+00> : vector<16x32xf32>
    %33 = tpu.matmul %3, %32, %cst_42 {dimension_numbers = #tpu.dot_dimension_numbers<[1], [0], [0], [1], [0, 0, 1, 1], [], []>} : vector<16x32xf32>, vector<32x32xf32>, vector<16x32xf32> -> vector<16x32xf32>
    %c0_43 = arith.constant 0 : index
    %c0_44 = arith.constant 0 : index
    %34 = vector.load %arg7[%c0_43, %c0_44] : memref<1x32xf32, #tpu.memory_space<vmem>>, vector<1x32xf32>
    %35 = vector.broadcast %34 : vector<1x32xf32> to vector<16x32xf32>
    %36 = arith.addf %33, %35 : vector<16x32xf32>
    %37 = vector.extract_strided_slice %31 {offsets = [0, 0], sizes = [16, 32], strides = [1, 1]} : vector<16x64xf32> to vector<16x32xf32>
    %38 = vector.extract_strided_slice %31 {offsets = [0, 32], sizes = [16, 32], strides = [1, 1]} : vector<16x64xf32> to vector<16x32xf32>
    %39 = vector.extract_strided_slice %37 {offsets = [0, 0], sizes = [8, 32], strides = [1, 1]} : vector<16x32xf32> to vector<8x32xf32>
    %40 = vector.extract_strided_slice %38 {offsets = [0, 0], sizes = [8, 32], strides = [1, 1]} : vector<16x32xf32> to vector<8x32xf32>
    %41 = vector.extract_strided_slice %36 {offsets = [0, 0], sizes = [8, 32], strides = [1, 1]} : vector<16x32xf32> to vector<8x32xf32>
    %42 = vector.extract_strided_slice %39 {offsets = [0, 0], sizes = [8, 8], strides = [1, 1]} : vector<8x32xf32> to vector<8x8xf32>
    %43 = vector.extract_strided_slice %40 {offsets = [0, 0], sizes = [8, 8], strides = [1, 1]} : vector<8x32xf32> to vector<8x8xf32>
    %44 = tpu.transpose %43, [1, 0] : vector<8x8xf32> -> vector<8x8xf32>
    %cst_45 = arith.constant dense<0.000000e+00> : vector<8x8xf32>
    %45 = tpu.matmul %42, %44, %cst_45 {dimension_numbers = #tpu.dot_dimension_numbers<[1], [0], [0], [1], [0, 0, 1, 1], [], []>} : vector<8x8xf32>, vector<8x8xf32>, vector<8x8xf32> -> vector<8x8xf32>
    %cst_46 = arith.constant dense<0xFF800000> : vector<8xf32>
    %46 = vector.multi_reduction <maximumf>, %45, %cst_46 [1] : vector<8x8xf32> to vector<8xf32>
    %47 = vector.shape_cast %46 : vector<8xf32> to vector<8x1xf32>
    %48 = vector.broadcast %47 : vector<8x1xf32> to vector<8x8xf32>
    %49 = arith.subf %45, %48 : vector<8x8xf32>
    %50 = math.exp %49 : vector<8x8xf32>
    %cst_47 = arith.constant dense<0.000000e+00> : vector<8xf32>
    %51 = vector.multi_reduction <add>, %50, %cst_47 [1] : vector<8x8xf32> to vector<8xf32>
    %52 = vector.shape_cast %51 : vector<8xf32> to vector<8x1xf32>
    %53 = vector.broadcast %52 : vector<8x1xf32> to vector<8x8xf32>
    %54 = arith.divf %50, %53 : vector<8x8xf32>
    %55 = vector.extract_strided_slice %41 {offsets = [0, 0], sizes = [8, 8], strides = [1, 1]} : vector<8x32xf32> to vector<8x8xf32>
    %cst_48 = arith.constant dense<0.000000e+00> : vector<8x8xf32>
    %56 = tpu.matmul %54, %55, %cst_48 {dimension_numbers = #tpu.dot_dimension_numbers<[1], [0], [0], [1], [0, 0, 1, 1], [], []>} : vector<8x8xf32>, vector<8x8xf32>, vector<8x8xf32> -> vector<8x8xf32>
    %57 = vector.extract_strided_slice %39 {offsets = [0, 8], sizes = [8, 8], strides = [1, 1]} : vector<8x32xf32> to vector<8x8xf32>
    %58 = vector.extract_strided_slice %40 {offsets = [0, 8], sizes = [8, 8], strides = [1, 1]} : vector<8x32xf32> to vector<8x8xf32>
    %59 = tpu.transpose %58, [1, 0] : vector<8x8xf32> -> vector<8x8xf32>
    %cst_49 = arith.constant dense<0.000000e+00> : vector<8x8xf32>
    %60 = tpu.matmul %57, %59, %cst_49 {dimension_numbers = #tpu.dot_dimension_numbers<[1], [0], [0], [1], [0, 0, 1, 1], [], []>} : vector<8x8xf32>, vector<8x8xf32>, vector<8x8xf32> -> vector<8x8xf32>
    %cst_50 = arith.constant dense<0xFF800000> : vector<8xf32>
    %61 = vector.multi_reduction <maximumf>, %60, %cst_50 [1] : vector<8x8xf32> to vector<8xf32>
    %62 = vector.shape_cast %61 : vector<8xf32> to vector<8x1xf32>
    %63 = vector.broadcast %62 : vector<8x1xf32> to vector<8x8xf32>
    %64 = arith.subf %60, %63 : vector<8x8xf32>
    %65 = math.exp %64 : vector<8x8xf32>
    %cst_51 = arith.constant dense<0.000000e+00> : vector<8xf32>
    %66 = vector.multi_reduction <add>, %65, %cst_51 [1] : vector<8x8xf32> to vector<8xf32>
    %67 = vector.shape_cast %66 : vector<8xf32> to vector<8x1xf32>
    %68 = vector.broadcast %67 : vector<8x1xf32> to vector<8x8xf32>
    %69 = arith.divf %65, %68 : vector<8x8xf32>
    %70 = vector.extract_strided_slice %41 {offsets = [0, 8], sizes = [8, 8], strides = [1, 1]} : vector<8x32xf32> to vector<8x8xf32>
    %cst_52 = arith.constant dense<0.000000e+00> : vector<8x8xf32>
    %71 = tpu.matmul %69, %70, %cst_52 {dimension_numbers = #tpu.dot_dimension_numbers<[1], [0], [0], [1], [0, 0, 1, 1], [], []>} : vector<8x8xf32>, vector<8x8xf32>, vector<8x8xf32> -> vector<8x8xf32>
    %72 = vector.extract_strided_slice %39 {offsets = [0, 16], sizes = [8, 8], strides = [1, 1]} : vector<8x32xf32> to vector<8x8xf32>
    %73 = vector.extract_strided_slice %40 {offsets = [0, 16], sizes = [8, 8], strides = [1, 1]} : vector<8x32xf32> to vector<8x8xf32>
    %74 = tpu.transpose %73, [1, 0] : vector<8x8xf32> -> vector<8x8xf32>
    %cst_53 = arith.constant dense<0.000000e+00> : vector<8x8xf32>
    %75 = tpu.matmul %72, %74, %cst_53 {dimension_numbers = #tpu.dot_dimension_numbers<[1], [0], [0], [1], [0, 0, 1, 1], [], []>} : vector<8x8xf32>, vector<8x8xf32>, vector<8x8xf32> -> vector<8x8xf32>
    %cst_54 = arith.constant dense<0xFF800000> : vector<8xf32>
    %76 = vector.multi_reduction <maximumf>, %75, %cst_54 [1] : vector<8x8xf32> to vector<8xf32>
    %77 = vector.shape_cast %76 : vector<8xf32> to vector<8x1xf32>
    %78 = vector.broadcast %77 : vector<8x1xf32> to vector<8x8xf32>
    %79 = arith.subf %75, %78 : vector<8x8xf32>
    %80 = math.exp %79 : vector<8x8xf32>
    %cst_55 = arith.constant dense<0.000000e+00> : vector<8xf32>
    %81 = vector.multi_reduction <add>, %80, %cst_55 [1] : vector<8x8xf32> to vector<8xf32>
    %82 = vector.shape_cast %81 : vector<8xf32> to vector<8x1xf32>
    %83 = vector.broadcast %82 : vector<8x1xf32> to vector<8x8xf32>
    %84 = arith.divf %80, %83 : vector<8x8xf32>
    %85 = vector.extract_strided_slice %41 {offsets = [0, 16], sizes = [8, 8], strides = [1, 1]} : vector<8x32xf32> to vector<8x8xf32>
    %cst_56 = arith.constant dense<0.000000e+00> : vector<8x8xf32>
    %86 = tpu.matmul %84, %85, %cst_56 {dimension_numbers = #tpu.dot_dimension_numbers<[1], [0], [0], [1], [0, 0, 1, 1], [], []>} : vector<8x8xf32>, vector<8x8xf32>, vector<8x8xf32> -> vector<8x8xf32>
    %87 = vector.extract_strided_slice %39 {offsets = [0, 24], sizes = [8, 8], strides = [1, 1]} : vector<8x32xf32> to vector<8x8xf32>
    %88 = vector.extract_strided_slice %40 {offsets = [0, 24], sizes = [8, 8], strides = [1, 1]} : vector<8x32xf32> to vector<8x8xf32>
    %89 = tpu.transpose %88, [1, 0] : vector<8x8xf32> -> vector<8x8xf32>
    %cst_57 = arith.constant dense<0.000000e+00> : vector<8x8xf32>
    %90 = tpu.matmul %87, %89, %cst_57 {dimension_numbers = #tpu.dot_dimension_numbers<[1], [0], [0], [1], [0, 0, 1, 1], [], []>} : vector<8x8xf32>, vector<8x8xf32>, vector<8x8xf32> -> vector<8x8xf32>
    %cst_58 = arith.constant dense<0xFF800000> : vector<8xf32>
    %91 = vector.multi_reduction <maximumf>, %90, %cst_58 [1] : vector<8x8xf32> to vector<8xf32>
    %92 = vector.shape_cast %91 : vector<8xf32> to vector<8x1xf32>
    %93 = vector.broadcast %92 : vector<8x1xf32> to vector<8x8xf32>
    %94 = arith.subf %90, %93 : vector<8x8xf32>
    %95 = math.exp %94 : vector<8x8xf32>
    %cst_59 = arith.constant dense<0.000000e+00> : vector<8xf32>
    %96 = vector.multi_reduction <add>, %95, %cst_59 [1] : vector<8x8xf32> to vector<8xf32>
    %97 = vector.shape_cast %96 : vector<8xf32> to vector<8x1xf32>
    %98 = vector.broadcast %97 : vector<8x1xf32> to vector<8x8xf32>
    %99 = arith.divf %95, %98 : vector<8x8xf32>
    %100 = vector.extract_strided_slice %41 {offsets = [0, 24], sizes = [8, 8], strides = [1, 1]} : vector<8x32xf32> to vector<8x8xf32>
    %cst_60 = arith.constant dense<0.000000e+00> : vector<8x8xf32>
    %101 = tpu.matmul %99, %100, %cst_60 {dimension_numbers = #tpu.dot_dimension_numbers<[1], [0], [0], [1], [0, 0, 1, 1], [], []>} : vector<8x8xf32>, vector<8x8xf32>, vector<8x8xf32> -> vector<8x8xf32>
    %102 = tpu.concatenate %56, %71, %86, %101 in 1 : vector<8x8xf32>, vector<8x8xf32>, vector<8x8xf32>, vector<8x8xf32> -> vector<8x32xf32>
    %103 = vector.extract_strided_slice %37 {offsets = [8, 0], sizes = [8, 32], strides = [1, 1]} : vector<16x32xf32> to vector<8x32xf32>
    %104 = vector.extract_strided_slice %38 {offsets = [8, 0], sizes = [8, 32], strides = [1, 1]} : vector<16x32xf32> to vector<8x32xf32>
    %105 = vector.extract_strided_slice %36 {offsets = [8, 0], sizes = [8, 32], strides = [1, 1]} : vector<16x32xf32> to vector<8x32xf32>
    %106 = vector.extract_strided_slice %103 {offsets = [0, 0], sizes = [8, 8], strides = [1, 1]} : vector<8x32xf32> to vector<8x8xf32>
    %107 = vector.extract_strided_slice %104 {offsets = [0, 0], sizes = [8, 8], strides = [1, 1]} : vector<8x32xf32> to vector<8x8xf32>
    %108 = tpu.transpose %107, [1, 0] : vector<8x8xf32> -> vector<8x8xf32>
    %cst_61 = arith.constant dense<0.000000e+00> : vector<8x8xf32>
    %109 = tpu.matmul %106, %108, %cst_61 {dimension_numbers = #tpu.dot_dimension_numbers<[1], [0], [0], [1], [0, 0, 1, 1], [], []>} : vector<8x8xf32>, vector<8x8xf32>, vector<8x8xf32> -> vector<8x8xf32>
    %cst_62 = arith.constant dense<0xFF800000> : vector<8xf32>
    %110 = vector.multi_reduction <maximumf>, %109, %cst_62 [1] : vector<8x8xf32> to vector<8xf32>
    %111 = vector.shape_cast %110 : vector<8xf32> to vector<8x1xf32>
    %112 = vector.broadcast %111 : vector<8x1xf32> to vector<8x8xf32>
    %113 = arith.subf %109, %112 : vector<8x8xf32>
    %114 = math.exp %113 : vector<8x8xf32>
    %cst_63 = arith.constant dense<0.000000e+00> : vector<8xf32>
    %115 = vector.multi_reduction <add>, %114, %cst_63 [1] : vector<8x8xf32> to vector<8xf32>
    %116 = vector.shape_cast %115 : vector<8xf32> to vector<8x1xf32>
    %117 = vector.broadcast %116 : vector<8x1xf32> to vector<8x8xf32>
    %118 = arith.divf %114, %117 : vector<8x8xf32>
    %119 = vector.extract_strided_slice %105 {offsets = [0, 0], sizes = [8, 8], strides = [1, 1]} : vector<8x32xf32> to vector<8x8xf32>
    %cst_64 = arith.constant dense<0.000000e+00> : vector<8x8xf32>
    %120 = tpu.matmul %118, %119, %cst_64 {dimension_numbers = #tpu.dot_dimension_numbers<[1], [0], [0], [1], [0, 0, 1, 1], [], []>} : vector<8x8xf32>, vector<8x8xf32>, vector<8x8xf32> -> vector<8x8xf32>
    %121 = vector.extract_strided_slice %103 {offsets = [0, 8], sizes = [8, 8], strides = [1, 1]} : vector<8x32xf32> to vector<8x8xf32>
    %122 = vector.extract_strided_slice %104 {offsets = [0, 8], sizes = [8, 8], strides = [1, 1]} : vector<8x32xf32> to vector<8x8xf32>
    %123 = tpu.transpose %122, [1, 0] : vector<8x8xf32> -> vector<8x8xf32>
    %cst_65 = arith.constant dense<0.000000e+00> : vector<8x8xf32>
    %124 = tpu.matmul %121, %123, %cst_65 {dimension_numbers = #tpu.dot_dimension_numbers<[1], [0], [0], [1], [0, 0, 1, 1], [], []>} : vector<8x8xf32>, vector<8x8xf32>, vector<8x8xf32> -> vector<8x8xf32>
    %cst_66 = arith.constant dense<0xFF800000> : vector<8xf32>
    %125 = vector.multi_reduction <maximumf>, %124, %cst_66 [1] : vector<8x8xf32> to vector<8xf32>
    %126 = vector.shape_cast %125 : vector<8xf32> to vector<8x1xf32>
    %127 = vector.broadcast %126 : vector<8x1xf32> to vector<8x8xf32>
    %128 = arith.subf %124, %127 : vector<8x8xf32>
    %129 = math.exp %128 : vector<8x8xf32>
    %cst_67 = arith.constant dense<0.000000e+00> : vector<8xf32>
    %130 = vector.multi_reduction <add>, %129, %cst_67 [1] : vector<8x8xf32> to vector<8xf32>
    %131 = vector.shape_cast %130 : vector<8xf32> to vector<8x1xf32>
    %132 = vector.broadcast %131 : vector<8x1xf32> to vector<8x8xf32>
    %133 = arith.divf %129, %132 : vector<8x8xf32>
    %134 = vector.extract_strided_slice %105 {offsets = [0, 8], sizes = [8, 8], strides = [1, 1]} : vector<8x32xf32> to vector<8x8xf32>
    %cst_68 = arith.constant dense<0.000000e+00> : vector<8x8xf32>
    %135 = tpu.matmul %133, %134, %cst_68 {dimension_numbers = #tpu.dot_dimension_numbers<[1], [0], [0], [1], [0, 0, 1, 1], [], []>} : vector<8x8xf32>, vector<8x8xf32>, vector<8x8xf32> -> vector<8x8xf32>
    %136 = vector.extract_strided_slice %103 {offsets = [0, 16], sizes = [8, 8], strides = [1, 1]} : vector<8x32xf32> to vector<8x8xf32>
    %137 = vector.extract_strided_slice %104 {offsets = [0, 16], sizes = [8, 8], strides = [1, 1]} : vector<8x32xf32> to vector<8x8xf32>
    %138 = tpu.transpose %137, [1, 0] : vector<8x8xf32> -> vector<8x8xf32>
    %cst_69 = arith.constant dense<0.000000e+00> : vector<8x8xf32>
    %139 = tpu.matmul %136, %138, %cst_69 {dimension_numbers = #tpu.dot_dimension_numbers<[1], [0], [0], [1], [0, 0, 1, 1], [], []>} : vector<8x8xf32>, vector<8x8xf32>, vector<8x8xf32> -> vector<8x8xf32>
    %cst_70 = arith.constant dense<0xFF800000> : vector<8xf32>
    %140 = vector.multi_reduction <maximumf>, %139, %cst_70 [1] : vector<8x8xf32> to vector<8xf32>
    %141 = vector.shape_cast %140 : vector<8xf32> to vector<8x1xf32>
    %142 = vector.broadcast %141 : vector<8x1xf32> to vector<8x8xf32>
    %143 = arith.subf %139, %142 : vector<8x8xf32>
    %144 = math.exp %143 : vector<8x8xf32>
    %cst_71 = arith.constant dense<0.000000e+00> : vector<8xf32>
    %145 = vector.multi_reduction <add>, %144, %cst_71 [1] : vector<8x8xf32> to vector<8xf32>
    %146 = vector.shape_cast %145 : vector<8xf32> to vector<8x1xf32>
    %147 = vector.broadcast %146 : vector<8x1xf32> to vector<8x8xf32>
    %148 = arith.divf %144, %147 : vector<8x8xf32>
    %149 = vector.extract_strided_slice %105 {offsets = [0, 16], sizes = [8, 8], strides = [1, 1]} : vector<8x32xf32> to vector<8x8xf32>
    %cst_72 = arith.constant dense<0.000000e+00> : vector<8x8xf32>
    %150 = tpu.matmul %148, %149, %cst_72 {dimension_numbers = #tpu.dot_dimension_numbers<[1], [0], [0], [1], [0, 0, 1, 1], [], []>} : vector<8x8xf32>, vector<8x8xf32>, vector<8x8xf32> -> vector<8x8xf32>
    %151 = vector.extract_strided_slice %103 {offsets = [0, 24], sizes = [8, 8], strides = [1, 1]} : vector<8x32xf32> to vector<8x8xf32>
    %152 = vector.extract_strided_slice %104 {offsets = [0, 24], sizes = [8, 8], strides = [1, 1]} : vector<8x32xf32> to vector<8x8xf32>
    %153 = tpu.transpose %152, [1, 0] : vector<8x8xf32> -> vector<8x8xf32>
    %cst_73 = arith.constant dense<0.000000e+00> : vector<8x8xf32>
    %154 = tpu.matmul %151, %153, %cst_73 {dimension_numbers = #tpu.dot_dimension_numbers<[1], [0], [0], [1], [0, 0, 1, 1], [], []>} : vector<8x8xf32>, vector<8x8xf32>, vector<8x8xf32> -> vector<8x8xf32>
    %cst_74 = arith.constant dense<0xFF800000> : vector<8xf32>
    %155 = vector.multi_reduction <maximumf>, %154, %cst_74 [1] : vector<8x8xf32> to vector<8xf32>
    %156 = vector.shape_cast %155 : vector<8xf32> to vector<8x1xf32>
    %157 = vector.broadcast %156 : vector<8x1xf32> to vector<8x8xf32>
    %158 = arith.subf %154, %157 : vector<8x8xf32>
    %159 = math.exp %158 : vector<8x8xf32>
    %cst_75 = arith.constant dense<0.000000e+00> : vector<8xf32>
    %160 = vector.multi_reduction <add>, %159, %cst_75 [1] : vector<8x8xf32> to vector<8xf32>
    %161 = vector.shape_cast %160 : vector<8xf32> to vector<8x1xf32>
    %162 = vector.broadcast %161 : vector<8x1xf32> to vector<8x8xf32>
    %163 = arith.divf %159, %162 : vector<8x8xf32>
    %164 = vector.extract_strided_slice %105 {offsets = [0, 24], sizes = [8, 8], strides = [1, 1]} : vector<8x32xf32> to vector<8x8xf32>
    %cst_76 = arith.constant dense<0.000000e+00> : vector<8x8xf32>
    %165 = tpu.matmul %163, %164, %cst_76 {dimension_numbers = #tpu.dot_dimension_numbers<[1], [0], [0], [1], [0, 0, 1, 1], [], []>} : vector<8x8xf32>, vector<8x8xf32>, vector<8x8xf32> -> vector<8x8xf32>
    %166 = tpu.concatenate %120, %135, %150, %165 in 1 : vector<8x8xf32>, vector<8x8xf32>, vector<8x8xf32>, vector<8x8xf32> -> vector<8x32xf32>
    %167 = tpu.concatenate %102, %166 in 0 : vector<8x32xf32>, vector<8x32xf32> -> vector<16x32xf32>
    %cst_77 = arith.constant dense<0.000000e+00> : vector<16x32xf32>
    %168 = tpu.matmul %167, %22, %cst_77 {dimension_numbers = #tpu.dot_dimension_numbers<[1], [0], [0], [1], [0, 0, 1, 1], [], []>} : vector<16x32xf32>, vector<32x32xf32>, vector<16x32xf32> -> vector<16x32xf32>
    %169 = vector.broadcast %23 : vector<1x32xf32> to vector<16x32xf32>
    %170 = arith.addf %168, %169 : vector<16x32xf32>
    %171 = arith.addf %3, %170 : vector<16x32xf32>
    %cst_78 = arith.constant dense<0.000000e+00> : vector<16xf32>
    %172 = vector.multi_reduction <add>, %171, %cst_78 [1] : vector<16x32xf32> to vector<16xf32>
    %173 = vector.shape_cast %172 : vector<16xf32> to vector<16x1xf32>
    %cst_79 = arith.constant 3.200000e+01 : f32
    %174 = vector.broadcast %cst_79 : f32 to vector<16x1xf32>
    %175 = arith.divf %173, %174 : vector<16x1xf32>
    %176 = vector.broadcast %175 : vector<16x1xf32> to vector<16x32xf32>
    %177 = arith.subf %171, %176 : vector<16x32xf32>
    %178 = arith.mulf %177, %177 : vector<16x32xf32>
    %cst_80 = arith.constant dense<0.000000e+00> : vector<16xf32>
    %179 = vector.multi_reduction <add>, %178, %cst_80 [1] : vector<16x32xf32> to vector<16xf32>
    %180 = vector.shape_cast %179 : vector<16xf32> to vector<16x1xf32>
    %cst_81 = arith.constant 3.200000e+01 : f32
    %181 = vector.broadcast %cst_81 : f32 to vector<16x1xf32>
    %182 = arith.divf %180, %181 : vector<16x1xf32>
    %cst_82 = arith.constant 9.99999974E-6 : f32
    %183 = vector.broadcast %cst_82 : f32 to vector<16x1xf32>
    %184 = arith.addf %182, %183 : vector<16x1xf32>
    %185 = math.rsqrt %184 : vector<16x1xf32>
    %186 = vector.broadcast %185 : vector<16x1xf32> to vector<16x32xf32>
    %187 = arith.mulf %177, %186 : vector<16x32xf32>
    %188 = vector.extract_strided_slice %0 {offsets = [0, 0], sizes = [1, 32], strides = [1, 1]} : vector<4x32xf32> to vector<1x32xf32>
    %189 = vector.broadcast %188 : vector<1x32xf32> to vector<16x32xf32>
    %190 = arith.mulf %187, %189 : vector<16x32xf32>
    %191 = vector.extract_strided_slice %1 {offsets = [0, 0], sizes = [1, 32], strides = [1, 1]} : vector<4x32xf32> to vector<1x32xf32>
    %192 = vector.broadcast %191 : vector<1x32xf32> to vector<16x32xf32>
    %193 = arith.addf %190, %192 : vector<16x32xf32>
    %194 = arith.addf %193, %5 : vector<16x32xf32>
    %c0_83 = arith.constant 0 : index
    %c0_84 = arith.constant 0 : index
    %195 = vector.load %arg10[%c0_83, %c0_84] : memref<32x32xf32, #tpu.memory_space<vmem>>, vector<32x32xf32>
    %cst_85 = arith.constant dense<0.000000e+00> : vector<16x32xf32>
    %196 = tpu.matmul %194, %195, %cst_85 {dimension_numbers = #tpu.dot_dimension_numbers<[1], [0], [0], [1], [0, 0, 1, 1], [], []>} : vector<16x32xf32>, vector<32x32xf32>, vector<16x32xf32> -> vector<16x32xf32>
    %c0_86 = arith.constant 0 : index
    %c0_87 = arith.constant 0 : index
    %197 = vector.load %arg11[%c0_86, %c0_87] : memref<1x32xf32, #tpu.memory_space<vmem>>, vector<1x32xf32>
    %198 = vector.broadcast %197 : vector<1x32xf32> to vector<16x32xf32>
    %199 = arith.addf %196, %198 : vector<16x32xf32>
    %200 = vector.extract_strided_slice %199 {offsets = [0, 0], sizes = [8, 32], strides = [1, 1]} : vector<16x32xf32> to vector<8x32xf32>
    %201 = vector.extract_strided_slice %16 {offsets = [0, 0], sizes = [16, 32], strides = [1, 1]} : vector<32x32xf32> to vector<16x32xf32>
    %202 = vector.extract_strided_slice %21 {offsets = [0, 0], sizes = [16, 32], strides = [1, 1]} : vector<32x32xf32> to vector<16x32xf32>
    %203 = vector.extract_strided_slice %200 {offsets = [0, 0], sizes = [8, 8], strides = [1, 1]} : vector<8x32xf32> to vector<8x8xf32>
    %204 = vector.extract_strided_slice %201 {offsets = [0, 0], sizes = [16, 8], strides = [1, 1]} : vector<16x32xf32> to vector<16x8xf32>
    %205 = tpu.transpose %204, [1, 0] : vector<16x8xf32> -> vector<8x16xf32>
    %cst_88 = arith.constant dense<0.000000e+00> : vector<8x16xf32>
    %206 = tpu.matmul %203, %205, %cst_88 {dimension_numbers = #tpu.dot_dimension_numbers<[1], [0], [0], [1], [0, 0, 1, 1], [], []>} : vector<8x8xf32>, vector<8x16xf32>, vector<8x16xf32> -> vector<8x16xf32>
    %cst_89 = arith.constant dense<0xFF800000> : vector<8xf32>
    %207 = vector.multi_reduction <maximumf>, %206, %cst_89 [1] : vector<8x16xf32> to vector<8xf32>
    %208 = vector.shape_cast %207 : vector<8xf32> to vector<8x1xf32>
    %209 = vector.broadcast %208 : vector<8x1xf32> to vector<8x16xf32>
    %210 = arith.subf %206, %209 : vector<8x16xf32>
    %211 = math.exp %210 : vector<8x16xf32>
    %cst_90 = arith.constant dense<0.000000e+00> : vector<8xf32>
    %212 = vector.multi_reduction <add>, %211, %cst_90 [1] : vector<8x16xf32> to vector<8xf32>
    %213 = vector.shape_cast %212 : vector<8xf32> to vector<8x1xf32>
    %214 = vector.broadcast %213 : vector<8x1xf32> to vector<8x16xf32>
    %215 = arith.divf %211, %214 : vector<8x16xf32>
    %216 = vector.extract_strided_slice %202 {offsets = [0, 0], sizes = [16, 8], strides = [1, 1]} : vector<16x32xf32> to vector<16x8xf32>
    %cst_91 = arith.constant dense<0.000000e+00> : vector<8x8xf32>
    %217 = tpu.matmul %215, %216, %cst_91 {dimension_numbers = #tpu.dot_dimension_numbers<[1], [0], [0], [1], [0, 0, 1, 1], [], []>} : vector<8x16xf32>, vector<16x8xf32>, vector<8x8xf32> -> vector<8x8xf32>
    %218 = vector.extract_strided_slice %200 {offsets = [0, 8], sizes = [8, 8], strides = [1, 1]} : vector<8x32xf32> to vector<8x8xf32>
    %219 = vector.extract_strided_slice %201 {offsets = [0, 8], sizes = [16, 8], strides = [1, 1]} : vector<16x32xf32> to vector<16x8xf32>
    %220 = tpu.transpose %219, [1, 0] : vector<16x8xf32> -> vector<8x16xf32>
    %cst_92 = arith.constant dense<0.000000e+00> : vector<8x16xf32>
    %221 = tpu.matmul %218, %220, %cst_92 {dimension_numbers = #tpu.dot_dimension_numbers<[1], [0], [0], [1], [0, 0, 1, 1], [], []>} : vector<8x8xf32>, vector<8x16xf32>, vector<8x16xf32> -> vector<8x16xf32>
    %cst_93 = arith.constant dense<0xFF800000> : vector<8xf32>
    %222 = vector.multi_reduction <maximumf>, %221, %cst_93 [1] : vector<8x16xf32> to vector<8xf32>
    %223 = vector.shape_cast %222 : vector<8xf32> to vector<8x1xf32>
    %224 = vector.broadcast %223 : vector<8x1xf32> to vector<8x16xf32>
    %225 = arith.subf %221, %224 : vector<8x16xf32>
    %226 = math.exp %225 : vector<8x16xf32>
    %cst_94 = arith.constant dense<0.000000e+00> : vector<8xf32>
    %227 = vector.multi_reduction <add>, %226, %cst_94 [1] : vector<8x16xf32> to vector<8xf32>
    %228 = vector.shape_cast %227 : vector<8xf32> to vector<8x1xf32>
    %229 = vector.broadcast %228 : vector<8x1xf32> to vector<8x16xf32>
    %230 = arith.divf %226, %229 : vector<8x16xf32>
    %231 = vector.extract_strided_slice %202 {offsets = [0, 8], sizes = [16, 8], strides = [1, 1]} : vector<16x32xf32> to vector<16x8xf32>
    %cst_95 = arith.constant dense<0.000000e+00> : vector<8x8xf32>
    %232 = tpu.matmul %230, %231, %cst_95 {dimension_numbers = #tpu.dot_dimension_numbers<[1], [0], [0], [1], [0, 0, 1, 1], [], []>} : vector<8x16xf32>, vector<16x8xf32>, vector<8x8xf32> -> vector<8x8xf32>
    %233 = vector.extract_strided_slice %200 {offsets = [0, 16], sizes = [8, 8], strides = [1, 1]} : vector<8x32xf32> to vector<8x8xf32>
    %234 = vector.extract_strided_slice %201 {offsets = [0, 16], sizes = [16, 8], strides = [1, 1]} : vector<16x32xf32> to vector<16x8xf32>
    %235 = tpu.transpose %234, [1, 0] : vector<16x8xf32> -> vector<8x16xf32>
    %cst_96 = arith.constant dense<0.000000e+00> : vector<8x16xf32>
    %236 = tpu.matmul %233, %235, %cst_96 {dimension_numbers = #tpu.dot_dimension_numbers<[1], [0], [0], [1], [0, 0, 1, 1], [], []>} : vector<8x8xf32>, vector<8x16xf32>, vector<8x16xf32> -> vector<8x16xf32>
    %cst_97 = arith.constant dense<0xFF800000> : vector<8xf32>
    %237 = vector.multi_reduction <maximumf>, %236, %cst_97 [1] : vector<8x16xf32> to vector<8xf32>
    %238 = vector.shape_cast %237 : vector<8xf32> to vector<8x1xf32>
    %239 = vector.broadcast %238 : vector<8x1xf32> to vector<8x16xf32>
    %240 = arith.subf %236, %239 : vector<8x16xf32>
    %241 = math.exp %240 : vector<8x16xf32>
    %cst_98 = arith.constant dense<0.000000e+00> : vector<8xf32>
    %242 = vector.multi_reduction <add>, %241, %cst_98 [1] : vector<8x16xf32> to vector<8xf32>
    %243 = vector.shape_cast %242 : vector<8xf32> to vector<8x1xf32>
    %244 = vector.broadcast %243 : vector<8x1xf32> to vector<8x16xf32>
    %245 = arith.divf %241, %244 : vector<8x16xf32>
    %246 = vector.extract_strided_slice %202 {offsets = [0, 16], sizes = [16, 8], strides = [1, 1]} : vector<16x32xf32> to vector<16x8xf32>
    %cst_99 = arith.constant dense<0.000000e+00> : vector<8x8xf32>
    %247 = tpu.matmul %245, %246, %cst_99 {dimension_numbers = #tpu.dot_dimension_numbers<[1], [0], [0], [1], [0, 0, 1, 1], [], []>} : vector<8x16xf32>, vector<16x8xf32>, vector<8x8xf32> -> vector<8x8xf32>
    %248 = vector.extract_strided_slice %200 {offsets = [0, 24], sizes = [8, 8], strides = [1, 1]} : vector<8x32xf32> to vector<8x8xf32>
    %249 = vector.extract_strided_slice %201 {offsets = [0, 24], sizes = [16, 8], strides = [1, 1]} : vector<16x32xf32> to vector<16x8xf32>
    %250 = tpu.transpose %249, [1, 0] : vector<16x8xf32> -> vector<8x16xf32>
    %cst_100 = arith.constant dense<0.000000e+00> : vector<8x16xf32>
    %251 = tpu.matmul %248, %250, %cst_100 {dimension_numbers = #tpu.dot_dimension_numbers<[1], [0], [0], [1], [0, 0, 1, 1], [], []>} : vector<8x8xf32>, vector<8x16xf32>, vector<8x16xf32> -> vector<8x16xf32>
    %cst_101 = arith.constant dense<0xFF800000> : vector<8xf32>
    %252 = vector.multi_reduction <maximumf>, %251, %cst_101 [1] : vector<8x16xf32> to vector<8xf32>
    %253 = vector.shape_cast %252 : vector<8xf32> to vector<8x1xf32>
    %254 = vector.broadcast %253 : vector<8x1xf32> to vector<8x16xf32>
    %255 = arith.subf %251, %254 : vector<8x16xf32>
    %256 = math.exp %255 : vector<8x16xf32>
    %cst_102 = arith.constant dense<0.000000e+00> : vector<8xf32>
    %257 = vector.multi_reduction <add>, %256, %cst_102 [1] : vector<8x16xf32> to vector<8xf32>
    %258 = vector.shape_cast %257 : vector<8xf32> to vector<8x1xf32>
    %259 = vector.broadcast %258 : vector<8x1xf32> to vector<8x16xf32>
    %260 = arith.divf %256, %259 : vector<8x16xf32>
    %261 = vector.extract_strided_slice %202 {offsets = [0, 24], sizes = [16, 8], strides = [1, 1]} : vector<16x32xf32> to vector<16x8xf32>
    %cst_103 = arith.constant dense<0.000000e+00> : vector<8x8xf32>
    %262 = tpu.matmul %260, %261, %cst_103 {dimension_numbers = #tpu.dot_dimension_numbers<[1], [0], [0], [1], [0, 0, 1, 1], [], []>} : vector<8x16xf32>, vector<16x8xf32>, vector<8x8xf32> -> vector<8x8xf32>
    %263 = tpu.concatenate %217, %232, %247, %262 in 1 : vector<8x8xf32>, vector<8x8xf32>, vector<8x8xf32>, vector<8x8xf32> -> vector<8x32xf32>
    %264 = vector.extract_strided_slice %199 {offsets = [8, 0], sizes = [8, 32], strides = [1, 1]} : vector<16x32xf32> to vector<8x32xf32>
    %265 = vector.extract_strided_slice %16 {offsets = [16, 0], sizes = [16, 32], strides = [1, 1]} : vector<32x32xf32> to vector<16x32xf32>
    %266 = vector.extract_strided_slice %21 {offsets = [16, 0], sizes = [16, 32], strides = [1, 1]} : vector<32x32xf32> to vector<16x32xf32>
    %267 = vector.extract_strided_slice %264 {offsets = [0, 0], sizes = [8, 8], strides = [1, 1]} : vector<8x32xf32> to vector<8x8xf32>
    %268 = vector.extract_strided_slice %265 {offsets = [0, 0], sizes = [16, 8], strides = [1, 1]} : vector<16x32xf32> to vector<16x8xf32>
    %269 = tpu.transpose %268, [1, 0] : vector<16x8xf32> -> vector<8x16xf32>
    %cst_104 = arith.constant dense<0.000000e+00> : vector<8x16xf32>
    %270 = tpu.matmul %267, %269, %cst_104 {dimension_numbers = #tpu.dot_dimension_numbers<[1], [0], [0], [1], [0, 0, 1, 1], [], []>} : vector<8x8xf32>, vector<8x16xf32>, vector<8x16xf32> -> vector<8x16xf32>
    %cst_105 = arith.constant dense<0xFF800000> : vector<8xf32>
    %271 = vector.multi_reduction <maximumf>, %270, %cst_105 [1] : vector<8x16xf32> to vector<8xf32>
    %272 = vector.shape_cast %271 : vector<8xf32> to vector<8x1xf32>
    %273 = vector.broadcast %272 : vector<8x1xf32> to vector<8x16xf32>
    %274 = arith.subf %270, %273 : vector<8x16xf32>
    %275 = math.exp %274 : vector<8x16xf32>
    %cst_106 = arith.constant dense<0.000000e+00> : vector<8xf32>
    %276 = vector.multi_reduction <add>, %275, %cst_106 [1] : vector<8x16xf32> to vector<8xf32>
    %277 = vector.shape_cast %276 : vector<8xf32> to vector<8x1xf32>
    %278 = vector.broadcast %277 : vector<8x1xf32> to vector<8x16xf32>
    %279 = arith.divf %275, %278 : vector<8x16xf32>
    %280 = vector.extract_strided_slice %266 {offsets = [0, 0], sizes = [16, 8], strides = [1, 1]} : vector<16x32xf32> to vector<16x8xf32>
    %cst_107 = arith.constant dense<0.000000e+00> : vector<8x8xf32>
    %281 = tpu.matmul %279, %280, %cst_107 {dimension_numbers = #tpu.dot_dimension_numbers<[1], [0], [0], [1], [0, 0, 1, 1], [], []>} : vector<8x16xf32>, vector<16x8xf32>, vector<8x8xf32> -> vector<8x8xf32>
    %282 = vector.extract_strided_slice %264 {offsets = [0, 8], sizes = [8, 8], strides = [1, 1]} : vector<8x32xf32> to vector<8x8xf32>
    %283 = vector.extract_strided_slice %265 {offsets = [0, 8], sizes = [16, 8], strides = [1, 1]} : vector<16x32xf32> to vector<16x8xf32>
    %284 = tpu.transpose %283, [1, 0] : vector<16x8xf32> -> vector<8x16xf32>
    %cst_108 = arith.constant dense<0.000000e+00> : vector<8x16xf32>
    %285 = tpu.matmul %282, %284, %cst_108 {dimension_numbers = #tpu.dot_dimension_numbers<[1], [0], [0], [1], [0, 0, 1, 1], [], []>} : vector<8x8xf32>, vector<8x16xf32>, vector<8x16xf32> -> vector<8x16xf32>
    %cst_109 = arith.constant dense<0xFF800000> : vector<8xf32>
    %286 = vector.multi_reduction <maximumf>, %285, %cst_109 [1] : vector<8x16xf32> to vector<8xf32>
    %287 = vector.shape_cast %286 : vector<8xf32> to vector<8x1xf32>
    %288 = vector.broadcast %287 : vector<8x1xf32> to vector<8x16xf32>
    %289 = arith.subf %285, %288 : vector<8x16xf32>
    %290 = math.exp %289 : vector<8x16xf32>
    %cst_110 = arith.constant dense<0.000000e+00> : vector<8xf32>
    %291 = vector.multi_reduction <add>, %290, %cst_110 [1] : vector<8x16xf32> to vector<8xf32>
    %292 = vector.shape_cast %291 : vector<8xf32> to vector<8x1xf32>
    %293 = vector.broadcast %292 : vector<8x1xf32> to vector<8x16xf32>
    %294 = arith.divf %290, %293 : vector<8x16xf32>
    %295 = vector.extract_strided_slice %266 {offsets = [0, 8], sizes = [16, 8], strides = [1, 1]} : vector<16x32xf32> to vector<16x8xf32>
    %cst_111 = arith.constant dense<0.000000e+00> : vector<8x8xf32>
    %296 = tpu.matmul %294, %295, %cst_111 {dimension_numbers = #tpu.dot_dimension_numbers<[1], [0], [0], [1], [0, 0, 1, 1], [], []>} : vector<8x16xf32>, vector<16x8xf32>, vector<8x8xf32> -> vector<8x8xf32>
    %297 = vector.extract_strided_slice %264 {offsets = [0, 16], sizes = [8, 8], strides = [1, 1]} : vector<8x32xf32> to vector<8x8xf32>
    %298 = vector.extract_strided_slice %265 {offsets = [0, 16], sizes = [16, 8], strides = [1, 1]} : vector<16x32xf32> to vector<16x8xf32>
    %299 = tpu.transpose %298, [1, 0] : vector<16x8xf32> -> vector<8x16xf32>
    %cst_112 = arith.constant dense<0.000000e+00> : vector<8x16xf32>
    %300 = tpu.matmul %297, %299, %cst_112 {dimension_numbers = #tpu.dot_dimension_numbers<[1], [0], [0], [1], [0, 0, 1, 1], [], []>} : vector<8x8xf32>, vector<8x16xf32>, vector<8x16xf32> -> vector<8x16xf32>
    %cst_113 = arith.constant dense<0xFF800000> : vector<8xf32>
    %301 = vector.multi_reduction <maximumf>, %300, %cst_113 [1] : vector<8x16xf32> to vector<8xf32>
    %302 = vector.shape_cast %301 : vector<8xf32> to vector<8x1xf32>
    %303 = vector.broadcast %302 : vector<8x1xf32> to vector<8x16xf32>
    %304 = arith.subf %300, %303 : vector<8x16xf32>
    %305 = math.exp %304 : vector<8x16xf32>
    %cst_114 = arith.constant dense<0.000000e+00> : vector<8xf32>
    %306 = vector.multi_reduction <add>, %305, %cst_114 [1] : vector<8x16xf32> to vector<8xf32>
    %307 = vector.shape_cast %306 : vector<8xf32> to vector<8x1xf32>
    %308 = vector.broadcast %307 : vector<8x1xf32> to vector<8x16xf32>
    %309 = arith.divf %305, %308 : vector<8x16xf32>
    %310 = vector.extract_strided_slice %266 {offsets = [0, 16], sizes = [16, 8], strides = [1, 1]} : vector<16x32xf32> to vector<16x8xf32>
    %cst_115 = arith.constant dense<0.000000e+00> : vector<8x8xf32>
    %311 = tpu.matmul %309, %310, %cst_115 {dimension_numbers = #tpu.dot_dimension_numbers<[1], [0], [0], [1], [0, 0, 1, 1], [], []>} : vector<8x16xf32>, vector<16x8xf32>, vector<8x8xf32> -> vector<8x8xf32>
    %312 = vector.extract_strided_slice %264 {offsets = [0, 24], sizes = [8, 8], strides = [1, 1]} : vector<8x32xf32> to vector<8x8xf32>
    %313 = vector.extract_strided_slice %265 {offsets = [0, 24], sizes = [16, 8], strides = [1, 1]} : vector<16x32xf32> to vector<16x8xf32>
    %314 = tpu.transpose %313, [1, 0] : vector<16x8xf32> -> vector<8x16xf32>
    %cst_116 = arith.constant dense<0.000000e+00> : vector<8x16xf32>
    %315 = tpu.matmul %312, %314, %cst_116 {dimension_numbers = #tpu.dot_dimension_numbers<[1], [0], [0], [1], [0, 0, 1, 1], [], []>} : vector<8x8xf32>, vector<8x16xf32>, vector<8x16xf32> -> vector<8x16xf32>
    %cst_117 = arith.constant dense<0xFF800000> : vector<8xf32>
    %316 = vector.multi_reduction <maximumf>, %315, %cst_117 [1] : vector<8x16xf32> to vector<8xf32>
    %317 = vector.shape_cast %316 : vector<8xf32> to vector<8x1xf32>
    %318 = vector.broadcast %317 : vector<8x1xf32> to vector<8x16xf32>
    %319 = arith.subf %315, %318 : vector<8x16xf32>
    %320 = math.exp %319 : vector<8x16xf32>
    %cst_118 = arith.constant dense<0.000000e+00> : vector<8xf32>
    %321 = vector.multi_reduction <add>, %320, %cst_118 [1] : vector<8x16xf32> to vector<8xf32>
    %322 = vector.shape_cast %321 : vector<8xf32> to vector<8x1xf32>
    %323 = vector.broadcast %322 : vector<8x1xf32> to vector<8x16xf32>
    %324 = arith.divf %320, %323 : vector<8x16xf32>
    %325 = vector.extract_strided_slice %266 {offsets = [0, 24], sizes = [16, 8], strides = [1, 1]} : vector<16x32xf32> to vector<16x8xf32>
    %cst_119 = arith.constant dense<0.000000e+00> : vector<8x8xf32>
    %326 = tpu.matmul %324, %325, %cst_119 {dimension_numbers = #tpu.dot_dimension_numbers<[1], [0], [0], [1], [0, 0, 1, 1], [], []>} : vector<8x16xf32>, vector<16x8xf32>, vector<8x8xf32> -> vector<8x8xf32>
    %327 = tpu.concatenate %281, %296, %311, %326 in 1 : vector<8x8xf32>, vector<8x8xf32>, vector<8x8xf32>, vector<8x8xf32> -> vector<8x32xf32>
    %328 = tpu.concatenate %263, %327 in 0 : vector<8x32xf32>, vector<8x32xf32> -> vector<16x32xf32>
    %cst_120 = arith.constant dense<0.000000e+00> : vector<16x32xf32>
    %329 = tpu.matmul %328, %24, %cst_120 {dimension_numbers = #tpu.dot_dimension_numbers<[1], [0], [0], [1], [0, 0, 1, 1], [], []>} : vector<16x32xf32>, vector<32x32xf32>, vector<16x32xf32> -> vector<16x32xf32>
    %330 = vector.broadcast %25 : vector<1x32xf32> to vector<16x32xf32>
    %331 = arith.addf %329, %330 : vector<16x32xf32>
    %332 = arith.addf %193, %331 : vector<16x32xf32>
    %cst_121 = arith.constant dense<0.000000e+00> : vector<16xf32>
    %333 = vector.multi_reduction <add>, %332, %cst_121 [1] : vector<16x32xf32> to vector<16xf32>
    %334 = vector.shape_cast %333 : vector<16xf32> to vector<16x1xf32>
    %cst_122 = arith.constant 3.200000e+01 : f32
    %335 = vector.broadcast %cst_122 : f32 to vector<16x1xf32>
    %336 = arith.divf %334, %335 : vector<16x1xf32>
    %337 = vector.broadcast %336 : vector<16x1xf32> to vector<16x32xf32>
    %338 = arith.subf %332, %337 : vector<16x32xf32>
    %339 = arith.mulf %338, %338 : vector<16x32xf32>
    %cst_123 = arith.constant dense<0.000000e+00> : vector<16xf32>
    %340 = vector.multi_reduction <add>, %339, %cst_123 [1] : vector<16x32xf32> to vector<16xf32>
    %341 = vector.shape_cast %340 : vector<16xf32> to vector<16x1xf32>
    %cst_124 = arith.constant 3.200000e+01 : f32
    %342 = vector.broadcast %cst_124 : f32 to vector<16x1xf32>
    %343 = arith.divf %341, %342 : vector<16x1xf32>
    %cst_125 = arith.constant 9.99999974E-6 : f32
    %344 = vector.broadcast %cst_125 : f32 to vector<16x1xf32>
    %345 = arith.addf %343, %344 : vector<16x1xf32>
    %346 = math.rsqrt %345 : vector<16x1xf32>
    %347 = vector.broadcast %346 : vector<16x1xf32> to vector<16x32xf32>
    %348 = arith.mulf %338, %347 : vector<16x32xf32>
    %349 = vector.extract_strided_slice %0 {offsets = [1, 0], sizes = [1, 32], strides = [1, 1]} : vector<4x32xf32> to vector<1x32xf32>
    %350 = vector.broadcast %349 : vector<1x32xf32> to vector<16x32xf32>
    %351 = arith.mulf %348, %350 : vector<16x32xf32>
    %352 = vector.extract_strided_slice %1 {offsets = [1, 0], sizes = [1, 32], strides = [1, 1]} : vector<4x32xf32> to vector<1x32xf32>
    %353 = vector.broadcast %352 : vector<1x32xf32> to vector<16x32xf32>
    %354 = arith.addf %351, %353 : vector<16x32xf32>
    %c0_126 = arith.constant 0 : index
    %c0_127 = arith.constant 0 : index
    %355 = vector.load %arg18[%c0_126, %c0_127] : memref<32x64xf32, #tpu.memory_space<vmem>>, vector<32x64xf32>
    %cst_128 = arith.constant dense<0.000000e+00> : vector<16x64xf32>
    %356 = tpu.matmul %354, %355, %cst_128 {dimension_numbers = #tpu.dot_dimension_numbers<[1], [0], [0], [1], [0, 0, 1, 1], [], []>} : vector<16x32xf32>, vector<32x64xf32>, vector<16x64xf32> -> vector<16x64xf32>
    %c0_129 = arith.constant 0 : index
    %c0_130 = arith.constant 0 : index
    %357 = vector.load %arg19[%c0_129, %c0_130] : memref<1x64xf32, #tpu.memory_space<vmem>>, vector<1x64xf32>
    %358 = vector.broadcast %357 : vector<1x64xf32> to vector<16x64xf32>
    %359 = arith.addf %356, %358 : vector<16x64xf32>
    %cst_131 = arith.constant 0.000000e+00 : f32
    %360 = vector.broadcast %cst_131 : f32 to vector<16x64xf32>
    %361 = arith.maximumf %359, %360 : vector<16x64xf32>
    %c0_132 = arith.constant 0 : index
    %c0_133 = arith.constant 0 : index
    %362 = vector.load %arg20[%c0_132, %c0_133] : memref<64x32xf32, #tpu.memory_space<vmem>>, vector<64x32xf32>
    %cst_134 = arith.constant dense<0.000000e+00> : vector<16x32xf32>
    %363 = tpu.matmul %361, %362, %cst_134 {dimension_numbers = #tpu.dot_dimension_numbers<[1], [0], [0], [1], [0, 0, 1, 1], [], []>} : vector<16x64xf32>, vector<64x32xf32>, vector<16x32xf32> -> vector<16x32xf32>
    %c0_135 = arith.constant 0 : index
    %c0_136 = arith.constant 0 : index
    %364 = vector.load %arg21[%c0_135, %c0_136] : memref<1x32xf32, #tpu.memory_space<vmem>>, vector<1x32xf32>
    %365 = vector.broadcast %364 : vector<1x32xf32> to vector<16x32xf32>
    %366 = arith.addf %363, %365 : vector<16x32xf32>
    %367 = arith.addf %354, %366 : vector<16x32xf32>
    %cst_137 = arith.constant dense<0.000000e+00> : vector<16xf32>
    %368 = vector.multi_reduction <add>, %367, %cst_137 [1] : vector<16x32xf32> to vector<16xf32>
    %369 = vector.shape_cast %368 : vector<16xf32> to vector<16x1xf32>
    %cst_138 = arith.constant 3.200000e+01 : f32
    %370 = vector.broadcast %cst_138 : f32 to vector<16x1xf32>
    %371 = arith.divf %369, %370 : vector<16x1xf32>
    %372 = vector.broadcast %371 : vector<16x1xf32> to vector<16x32xf32>
    %373 = arith.subf %367, %372 : vector<16x32xf32>
    %374 = arith.mulf %373, %373 : vector<16x32xf32>
    %cst_139 = arith.constant dense<0.000000e+00> : vector<16xf32>
    %375 = vector.multi_reduction <add>, %374, %cst_139 [1] : vector<16x32xf32> to vector<16xf32>
    %376 = vector.shape_cast %375 : vector<16xf32> to vector<16x1xf32>
    %cst_140 = arith.constant 3.200000e+01 : f32
    %377 = vector.broadcast %cst_140 : f32 to vector<16x1xf32>
    %378 = arith.divf %376, %377 : vector<16x1xf32>
    %cst_141 = arith.constant 9.99999974E-6 : f32
    %379 = vector.broadcast %cst_141 : f32 to vector<16x1xf32>
    %380 = arith.addf %378, %379 : vector<16x1xf32>
    %381 = math.rsqrt %380 : vector<16x1xf32>
    %382 = vector.broadcast %381 : vector<16x1xf32> to vector<16x32xf32>
    %383 = arith.mulf %373, %382 : vector<16x32xf32>
    %384 = vector.extract_strided_slice %0 {offsets = [2, 0], sizes = [1, 32], strides = [1, 1]} : vector<4x32xf32> to vector<1x32xf32>
    %385 = vector.broadcast %384 : vector<1x32xf32> to vector<16x32xf32>
    %386 = arith.mulf %383, %385 : vector<16x32xf32>
    %387 = vector.extract_strided_slice %1 {offsets = [2, 0], sizes = [1, 32], strides = [1, 1]} : vector<4x32xf32> to vector<1x32xf32>
    %388 = vector.broadcast %387 : vector<1x32xf32> to vector<16x32xf32>
    %389 = arith.addf %386, %388 : vector<16x32xf32>
    %cst_142 = arith.constant dense<0.000000e+00> : vector<16xf32>
    %390 = vector.multi_reduction <add>, %389, %cst_142 [1] : vector<16x32xf32> to vector<16xf32>
    %391 = vector.shape_cast %390 : vector<16xf32> to vector<16x1xf32>
    %cst_143 = arith.constant 3.200000e+01 : f32
    %392 = vector.broadcast %cst_143 : f32 to vector<16x1xf32>
    %393 = arith.divf %391, %392 : vector<16x1xf32>
    %394 = vector.broadcast %393 : vector<16x1xf32> to vector<16x32xf32>
    %395 = arith.subf %389, %394 : vector<16x32xf32>
    %396 = arith.mulf %395, %395 : vector<16x32xf32>
    %cst_144 = arith.constant dense<0.000000e+00> : vector<16xf32>
    %397 = vector.multi_reduction <add>, %396, %cst_144 [1] : vector<16x32xf32> to vector<16xf32>
    %398 = vector.shape_cast %397 : vector<16xf32> to vector<16x1xf32>
    %cst_145 = arith.constant 3.200000e+01 : f32
    %399 = vector.broadcast %cst_145 : f32 to vector<16x1xf32>
    %400 = arith.divf %398, %399 : vector<16x1xf32>
    %cst_146 = arith.constant 9.99999974E-6 : f32
    %401 = vector.broadcast %cst_146 : f32 to vector<16x1xf32>
    %402 = arith.addf %400, %401 : vector<16x1xf32>
    %403 = math.rsqrt %402 : vector<16x1xf32>
    %404 = vector.broadcast %403 : vector<16x1xf32> to vector<16x32xf32>
    %405 = arith.mulf %395, %404 : vector<16x32xf32>
    %406 = vector.extract_strided_slice %0 {offsets = [3, 0], sizes = [1, 32], strides = [1, 1]} : vector<4x32xf32> to vector<1x32xf32>
    %407 = vector.broadcast %406 : vector<1x32xf32> to vector<16x32xf32>
    %408 = arith.mulf %405, %407 : vector<16x32xf32>
    %409 = vector.extract_strided_slice %1 {offsets = [3, 0], sizes = [1, 32], strides = [1, 1]} : vector<4x32xf32> to vector<1x32xf32>
    %410 = vector.broadcast %409 : vector<1x32xf32> to vector<16x32xf32>
    %411 = arith.addf %408, %410 : vector<16x32xf32>
    %412 = vector.shape_cast %411 : vector<16x32xf32> to vector<2x8x32xf32>
    %c0_147 = arith.constant 0 : index
    %c0_148 = arith.constant 0 : index
    %c0_149 = arith.constant 0 : index
    %c0_150 = arith.constant 0 : index
    %413 = vector.load %arg24[%c0_147, %c0_148, %c0_149, %c0_150] : memref<2x2x8x32xf32, #tpu.memory_space<vmem>>, vector<1x2x8x32xf32>
    %414 = vector.shape_cast %413 : vector<1x2x8x32xf32> to vector<2x8x32xf32>
    %415 = vector.shape_cast %412 : vector<2x8x32xf32> to vector<1x2x8x32xf32>
    tpu.vector_store %arg24[%c0_147, %c0_148, %c0_149, %c0_150], %415 {strides = array<i32>} : memref<2x2x8x32xf32, #tpu.memory_space<vmem>>, vector<1x2x8x32xf32>,
    %416 = arith.addf %389, %5 : vector<16x32xf32>
    %c0_151 = arith.constant 0 : index
    %c0_152 = arith.constant 0 : index
    %417 = vector.load %arg4[%c0_151, %c0_152] : memref<32x64xf32, #tpu.memory_space<vmem>>, vector<32x64xf32>
    %cst_153 = arith.constant dense<0.000000e+00> : vector<16x64xf32>
    %418 = tpu.matmul %416, %417, %cst_153 {dimension_numbers = #tpu.dot_dimension_numbers<[1], [0], [0], [1], [0, 0, 1, 1], [], []>} : vector<16x32xf32>, vector<32x64xf32>, vector<16x64xf32> -> vector<16x64xf32>
    %c0_154 = arith.constant 0 : index
    %c0_155 = arith.constant 0 : index
    %419 = vector.load %arg5[%c0_154, %c0_155] : memref<1x64xf32, #tpu.memory_space<vmem>>, vector<1x64xf32>
    %420 = vector.broadcast %419 : vector<1x64xf32> to vector<16x64xf32>
    %421 = arith.addf %418, %420 : vector<16x64xf32>
    %c0_156 = arith.constant 0 : index
    %c0_157 = arith.constant 0 : index
    %422 = vector.load %arg6[%c0_156, %c0_157] : memref<32x32xf32, #tpu.memory_space<vmem>>, vector<32x32xf32>
    %cst_158 = arith.constant dense<0.000000e+00> : vector<16x32xf32>
    %423 = tpu.matmul %389, %422, %cst_158 {dimension_numbers = #tpu.dot_dimension_numbers<[1], [0], [0], [1], [0, 0, 1, 1], [], []>} : vector<16x32xf32>, vector<32x32xf32>, vector<16x32xf32> -> vector<16x32xf32>
    %c0_159 = arith.constant 0 : index
    %c0_160 = arith.constant 0 : index
    %424 = vector.load %arg7[%c0_159, %c0_160] : memref<1x32xf32, #tpu.memory_space<vmem>>, vector<1x32xf32>
    %425 = vector.broadcast %424 : vector<1x32xf32> to vector<16x32xf32>
    %426 = arith.addf %423, %425 : vector<16x32xf32>
    %427 = vector.extract_strided_slice %421 {offsets = [0, 0], sizes = [16, 32], strides = [1, 1]} : vector<16x64xf32> to vector<16x32xf32>
    %428 = vector.extract_strided_slice %421 {offsets = [0, 32], sizes = [16, 32], strides = [1, 1]} : vector<16x64xf32> to vector<16x32xf32>
    %429 = vector.extract_strided_slice %427 {offsets = [0, 0], sizes = [8, 32], strides = [1, 1]} : vector<16x32xf32> to vector<8x32xf32>
    %430 = vector.extract_strided_slice %428 {offsets = [0, 0], sizes = [8, 32], strides = [1, 1]} : vector<16x32xf32> to vector<8x32xf32>
    %431 = vector.extract_strided_slice %426 {offsets = [0, 0], sizes = [8, 32], strides = [1, 1]} : vector<16x32xf32> to vector<8x32xf32>
    %432 = vector.extract_strided_slice %429 {offsets = [0, 0], sizes = [8, 8], strides = [1, 1]} : vector<8x32xf32> to vector<8x8xf32>
    %433 = vector.extract_strided_slice %430 {offsets = [0, 0], sizes = [8, 8], strides = [1, 1]} : vector<8x32xf32> to vector<8x8xf32>
    %434 = tpu.transpose %433, [1, 0] : vector<8x8xf32> -> vector<8x8xf32>
    %cst_161 = arith.constant dense<0.000000e+00> : vector<8x8xf32>
    %435 = tpu.matmul %432, %434, %cst_161 {dimension_numbers = #tpu.dot_dimension_numbers<[1], [0], [0], [1], [0, 0, 1, 1], [], []>} : vector<8x8xf32>, vector<8x8xf32>, vector<8x8xf32> -> vector<8x8xf32>
    %cst_162 = arith.constant dense<0xFF800000> : vector<8xf32>
    %436 = vector.multi_reduction <maximumf>, %435, %cst_162 [1] : vector<8x8xf32> to vector<8xf32>
    %437 = vector.shape_cast %436 : vector<8xf32> to vector<8x1xf32>
    %438 = vector.broadcast %437 : vector<8x1xf32> to vector<8x8xf32>
    %439 = arith.subf %435, %438 : vector<8x8xf32>
    %440 = math.exp %439 : vector<8x8xf32>
    %cst_163 = arith.constant dense<0.000000e+00> : vector<8xf32>
    %441 = vector.multi_reduction <add>, %440, %cst_163 [1] : vector<8x8xf32> to vector<8xf32>
    %442 = vector.shape_cast %441 : vector<8xf32> to vector<8x1xf32>
    %443 = vector.broadcast %442 : vector<8x1xf32> to vector<8x8xf32>
    %444 = arith.divf %440, %443 : vector<8x8xf32>
    %445 = vector.extract_strided_slice %431 {offsets = [0, 0], sizes = [8, 8], strides = [1, 1]} : vector<8x32xf32> to vector<8x8xf32>
    %cst_164 = arith.constant dense<0.000000e+00> : vector<8x8xf32>
    %446 = tpu.matmul %444, %445, %cst_164 {dimension_numbers = #tpu.dot_dimension_numbers<[1], [0], [0], [1], [0, 0, 1, 1], [], []>} : vector<8x8xf32>, vector<8x8xf32>, vector<8x8xf32> -> vector<8x8xf32>
    %447 = vector.extract_strided_slice %429 {offsets = [0, 8], sizes = [8, 8], strides = [1, 1]} : vector<8x32xf32> to vector<8x8xf32>
    %448 = vector.extract_strided_slice %430 {offsets = [0, 8], sizes = [8, 8], strides = [1, 1]} : vector<8x32xf32> to vector<8x8xf32>
    %449 = tpu.transpose %448, [1, 0] : vector<8x8xf32> -> vector<8x8xf32>
    %cst_165 = arith.constant dense<0.000000e+00> : vector<8x8xf32>
    %450 = tpu.matmul %447, %449, %cst_165 {dimension_numbers = #tpu.dot_dimension_numbers<[1], [0], [0], [1], [0, 0, 1, 1], [], []>} : vector<8x8xf32>, vector<8x8xf32>, vector<8x8xf32> -> vector<8x8xf32>
    %cst_166 = arith.constant dense<0xFF800000> : vector<8xf32>
    %451 = vector.multi_reduction <maximumf>, %450, %cst_166 [1] : vector<8x8xf32> to vector<8xf32>
    %452 = vector.shape_cast %451 : vector<8xf32> to vector<8x1xf32>
    %453 = vector.broadcast %452 : vector<8x1xf32> to vector<8x8xf32>
    %454 = arith.subf %450, %453 : vector<8x8xf32>
    %455 = math.exp %454 : vector<8x8xf32>
    %cst_167 = arith.constant dense<0.000000e+00> : vector<8xf32>
    %456 = vector.multi_reduction <add>, %455, %cst_167 [1] : vector<8x8xf32> to vector<8xf32>
    %457 = vector.shape_cast %456 : vector<8xf32> to vector<8x1xf32>
    %458 = vector.broadcast %457 : vector<8x1xf32> to vector<8x8xf32>
    %459 = arith.divf %455, %458 : vector<8x8xf32>
    %460 = vector.extract_strided_slice %431 {offsets = [0, 8], sizes = [8, 8], strides = [1, 1]} : vector<8x32xf32> to vector<8x8xf32>
    %cst_168 = arith.constant dense<0.000000e+00> : vector<8x8xf32>
    %461 = tpu.matmul %459, %460, %cst_168 {dimension_numbers = #tpu.dot_dimension_numbers<[1], [0], [0], [1], [0, 0, 1, 1], [], []>} : vector<8x8xf32>, vector<8x8xf32>, vector<8x8xf32> -> vector<8x8xf32>
    %462 = vector.extract_strided_slice %429 {offsets = [0, 16], sizes = [8, 8], strides = [1, 1]} : vector<8x32xf32> to vector<8x8xf32>
    %463 = vector.extract_strided_slice %430 {offsets = [0, 16], sizes = [8, 8], strides = [1, 1]} : vector<8x32xf32> to vector<8x8xf32>
    %464 = tpu.transpose %463, [1, 0] : vector<8x8xf32> -> vector<8x8xf32>
    %cst_169 = arith.constant dense<0.000000e+00> : vector<8x8xf32>
    %465 = tpu.matmul %462, %464, %cst_169 {dimension_numbers = #tpu.dot_dimension_numbers<[1], [0], [0], [1], [0, 0, 1, 1], [], []>} : vector<8x8xf32>, vector<8x8xf32>, vector<8x8xf32> -> vector<8x8xf32>
    %cst_170 = arith.constant dense<0xFF800000> : vector<8xf32>
    %466 = vector.multi_reduction <maximumf>, %465, %cst_170 [1] : vector<8x8xf32> to vector<8xf32>
    %467 = vector.shape_cast %466 : vector<8xf32> to vector<8x1xf32>
    %468 = vector.broadcast %467 : vector<8x1xf32> to vector<8x8xf32>
    %469 = arith.subf %465, %468 : vector<8x8xf32>
    %470 = math.exp %469 : vector<8x8xf32>
    %cst_171 = arith.constant dense<0.000000e+00> : vector<8xf32>
    %471 = vector.multi_reduction <add>, %470, %cst_171 [1] : vector<8x8xf32> to vector<8xf32>
    %472 = vector.shape_cast %471 : vector<8xf32> to vector<8x1xf32>
    %473 = vector.broadcast %472 : vector<8x1xf32> to vector<8x8xf32>
    %474 = arith.divf %470, %473 : vector<8x8xf32>
    %475 = vector.extract_strided_slice %431 {offsets = [0, 16], sizes = [8, 8], strides = [1, 1]} : vector<8x32xf32> to vector<8x8xf32>
    %cst_172 = arith.constant dense<0.000000e+00> : vector<8x8xf32>
    %476 = tpu.matmul %474, %475, %cst_172 {dimension_numbers = #tpu.dot_dimension_numbers<[1], [0], [0], [1], [0, 0, 1, 1], [], []>} : vector<8x8xf32>, vector<8x8xf32>, vector<8x8xf32> -> vector<8x8xf32>
    %477 = vector.extract_strided_slice %429 {offsets = [0, 24], sizes = [8, 8], strides = [1, 1]} : vector<8x32xf32> to vector<8x8xf32>
    %478 = vector.extract_strided_slice %430 {offsets = [0, 24], sizes = [8, 8], strides = [1, 1]} : vector<8x32xf32> to vector<8x8xf32>
    %479 = tpu.transpose %478, [1, 0] : vector<8x8xf32> -> vector<8x8xf32>
    %cst_173 = arith.constant dense<0.000000e+00> : vector<8x8xf32>
    %480 = tpu.matmul %477, %479, %cst_173 {dimension_numbers = #tpu.dot_dimension_numbers<[1], [0], [0], [1], [0, 0, 1, 1], [], []>} : vector<8x8xf32>, vector<8x8xf32>, vector<8x8xf32> -> vector<8x8xf32>
    %cst_174 = arith.constant dense<0xFF800000> : vector<8xf32>
    %481 = vector.multi_reduction <maximumf>, %480, %cst_174 [1] : vector<8x8xf32> to vector<8xf32>
    %482 = vector.shape_cast %481 : vector<8xf32> to vector<8x1xf32>
    %483 = vector.broadcast %482 : vector<8x1xf32> to vector<8x8xf32>
    %484 = arith.subf %480, %483 : vector<8x8xf32>
    %485 = math.exp %484 : vector<8x8xf32>
    %cst_175 = arith.constant dense<0.000000e+00> : vector<8xf32>
    %486 = vector.multi_reduction <add>, %485, %cst_175 [1] : vector<8x8xf32> to vector<8xf32>
    %487 = vector.shape_cast %486 : vector<8xf32> to vector<8x1xf32>
    %488 = vector.broadcast %487 : vector<8x1xf32> to vector<8x8xf32>
    %489 = arith.divf %485, %488 : vector<8x8xf32>
    %490 = vector.extract_strided_slice %431 {offsets = [0, 24], sizes = [8, 8], strides = [1, 1]} : vector<8x32xf32> to vector<8x8xf32>
    %cst_176 = arith.constant dense<0.000000e+00> : vector<8x8xf32>
    %491 = tpu.matmul %489, %490, %cst_176 {dimension_numbers = #tpu.dot_dimension_numbers<[1], [0], [0], [1], [0, 0, 1, 1], [], []>} : vector<8x8xf32>, vector<8x8xf32>, vector<8x8xf32> -> vector<8x8xf32>
    %492 = tpu.concatenate %446, %461, %476, %491 in 1 : vector<8x8xf32>, vector<8x8xf32>, vector<8x8xf32>, vector<8x8xf32> -> vector<8x32xf32>
    %493 = vector.extract_strided_slice %427 {offsets = [8, 0], sizes = [8, 32], strides = [1, 1]} : vector<16x32xf32> to vector<8x32xf32>
    %494 = vector.extract_strided_slice %428 {offsets = [8, 0], sizes = [8, 32], strides = [1, 1]} : vector<16x32xf32> to vector<8x32xf32>
    %495 = vector.extract_strided_slice %426 {offsets = [8, 0], sizes = [8, 32], strides = [1, 1]} : vector<16x32xf32> to vector<8x32xf32>
    %496 = vector.extract_strided_slice %493 {offsets = [0, 0], sizes = [8, 8], strides = [1, 1]} : vector<8x32xf32> to vector<8x8xf32>
    %497 = vector.extract_strided_slice %494 {offsets = [0, 0], sizes = [8, 8], strides = [1, 1]} : vector<8x32xf32> to vector<8x8xf32>
    %498 = tpu.transpose %497, [1, 0] : vector<8x8xf32> -> vector<8x8xf32>
    %cst_177 = arith.constant dense<0.000000e+00> : vector<8x8xf32>
    %499 = tpu.matmul %496, %498, %cst_177 {dimension_numbers = #tpu.dot_dimension_numbers<[1], [0], [0], [1], [0, 0, 1, 1], [], []>} : vector<8x8xf32>, vector<8x8xf32>, vector<8x8xf32> -> vector<8x8xf32>
    %cst_178 = arith.constant dense<0xFF800000> : vector<8xf32>
    %500 = vector.multi_reduction <maximumf>, %499, %cst_178 [1] : vector<8x8xf32> to vector<8xf32>
    %501 = vector.shape_cast %500 : vector<8xf32> to vector<8x1xf32>
    %502 = vector.broadcast %501 : vector<8x1xf32> to vector<8x8xf32>
    %503 = arith.subf %499, %502 : vector<8x8xf32>
    %504 = math.exp %503 : vector<8x8xf32>
    %cst_179 = arith.constant dense<0.000000e+00> : vector<8xf32>
    %505 = vector.multi_reduction <add>, %504, %cst_179 [1] : vector<8x8xf32> to vector<8xf32>
    %506 = vector.shape_cast %505 : vector<8xf32> to vector<8x1xf32>
    %507 = vector.broadcast %506 : vector<8x1xf32> to vector<8x8xf32>
    %508 = arith.divf %504, %507 : vector<8x8xf32>
    %509 = vector.extract_strided_slice %495 {offsets = [0, 0], sizes = [8, 8], strides = [1, 1]} : vector<8x32xf32> to vector<8x8xf32>
    %cst_180 = arith.constant dense<0.000000e+00> : vector<8x8xf32>
    %510 = tpu.matmul %508, %509, %cst_180 {dimension_numbers = #tpu.dot_dimension_numbers<[1], [0], [0], [1], [0, 0, 1, 1], [], []>} : vector<8x8xf32>, vector<8x8xf32>, vector<8x8xf32> -> vector<8x8xf32>
    %511 = vector.extract_strided_slice %493 {offsets = [0, 8], sizes = [8, 8], strides = [1, 1]} : vector<8x32xf32> to vector<8x8xf32>
    %512 = vector.extract_strided_slice %494 {offsets = [0, 8], sizes = [8, 8], strides = [1, 1]} : vector<8x32xf32> to vector<8x8xf32>
    %513 = tpu.transpose %512, [1, 0] : vector<8x8xf32> -> vector<8x8xf32>
    %cst_181 = arith.constant dense<0.000000e+00> : vector<8x8xf32>
    %514 = tpu.matmul %511, %513, %cst_181 {dimension_numbers = #tpu.dot_dimension_numbers<[1], [0], [0], [1], [0, 0, 1, 1], [], []>} : vector<8x8xf32>, vector<8x8xf32>, vector<8x8xf32> -> vector<8x8xf32>
    %cst_182 = arith.constant dense<0xFF800000> : vector<8xf32>
    %515 = vector.multi_reduction <maximumf>, %514, %cst_182 [1] : vector<8x8xf32> to vector<8xf32>
    %516 = vector.shape_cast %515 : vector<8xf32> to vector<8x1xf32>
    %517 = vector.broadcast %516 : vector<8x1xf32> to vector<8x8xf32>
    %518 = arith.subf %514, %517 : vector<8x8xf32>
    %519 = math.exp %518 : vector<8x8xf32>
    %cst_183 = arith.constant dense<0.000000e+00> : vector<8xf32>
    %520 = vector.multi_reduction <add>, %519, %cst_183 [1] : vector<8x8xf32> to vector<8xf32>
    %521 = vector.shape_cast %520 : vector<8xf32> to vector<8x1xf32>
    %522 = vector.broadcast %521 : vector<8x1xf32> to vector<8x8xf32>
    %523 = arith.divf %519, %522 : vector<8x8xf32>
    %524 = vector.extract_strided_slice %495 {offsets = [0, 8], sizes = [8, 8], strides = [1, 1]} : vector<8x32xf32> to vector<8x8xf32>
    %cst_184 = arith.constant dense<0.000000e+00> : vector<8x8xf32>
    %525 = tpu.matmul %523, %524, %cst_184 {dimension_numbers = #tpu.dot_dimension_numbers<[1], [0], [0], [1], [0, 0, 1, 1], [], []>} : vector<8x8xf32>, vector<8x8xf32>, vector<8x8xf32> -> vector<8x8xf32>
    %526 = vector.extract_strided_slice %493 {offsets = [0, 16], sizes = [8, 8], strides = [1, 1]} : vector<8x32xf32> to vector<8x8xf32>
    %527 = vector.extract_strided_slice %494 {offsets = [0, 16], sizes = [8, 8], strides = [1, 1]} : vector<8x32xf32> to vector<8x8xf32>
    %528 = tpu.transpose %527, [1, 0] : vector<8x8xf32> -> vector<8x8xf32>
    %cst_185 = arith.constant dense<0.000000e+00> : vector<8x8xf32>
    %529 = tpu.matmul %526, %528, %cst_185 {dimension_numbers = #tpu.dot_dimension_numbers<[1], [0], [0], [1], [0, 0, 1, 1], [], []>} : vector<8x8xf32>, vector<8x8xf32>, vector<8x8xf32> -> vector<8x8xf32>
    %cst_186 = arith.constant dense<0xFF800000> : vector<8xf32>
    %530 = vector.multi_reduction <maximumf>, %529, %cst_186 [1] : vector<8x8xf32> to vector<8xf32>
    %531 = vector.shape_cast %530 : vector<8xf32> to vector<8x1xf32>
    %532 = vector.broadcast %531 : vector<8x1xf32> to vector<8x8xf32>
    %533 = arith.subf %529, %532 : vector<8x8xf32>
    %534 = math.exp %533 : vector<8x8xf32>
    %cst_187 = arith.constant dense<0.000000e+00> : vector<8xf32>
    %535 = vector.multi_reduction <add>, %534, %cst_187 [1] : vector<8x8xf32> to vector<8xf32>
    %536 = vector.shape_cast %535 : vector<8xf32> to vector<8x1xf32>
    %537 = vector.broadcast %536 : vector<8x1xf32> to vector<8x8xf32>
    %538 = arith.divf %534, %537 : vector<8x8xf32>
    %539 = vector.extract_strided_slice %495 {offsets = [0, 16], sizes = [8, 8], strides = [1, 1]} : vector<8x32xf32> to vector<8x8xf32>
    %cst_188 = arith.constant dense<0.000000e+00> : vector<8x8xf32>
    %540 = tpu.matmul %538, %539, %cst_188 {dimension_numbers = #tpu.dot_dimension_numbers<[1], [0], [0], [1], [0, 0, 1, 1], [], []>} : vector<8x8xf32>, vector<8x8xf32>, vector<8x8xf32> -> vector<8x8xf32>
    %541 = vector.extract_strided_slice %493 {offsets = [0, 24], sizes = [8, 8], strides = [1, 1]} : vector<8x32xf32> to vector<8x8xf32>
    %542 = vector.extract_strided_slice %494 {offsets = [0, 24], sizes = [8, 8], strides = [1, 1]} : vector<8x32xf32> to vector<8x8xf32>
    %543 = tpu.transpose %542, [1, 0] : vector<8x8xf32> -> vector<8x8xf32>
    %cst_189 = arith.constant dense<0.000000e+00> : vector<8x8xf32>
    %544 = tpu.matmul %541, %543, %cst_189 {dimension_numbers = #tpu.dot_dimension_numbers<[1], [0], [0], [1], [0, 0, 1, 1], [], []>} : vector<8x8xf32>, vector<8x8xf32>, vector<8x8xf32> -> vector<8x8xf32>
    %cst_190 = arith.constant dense<0xFF800000> : vector<8xf32>
    %545 = vector.multi_reduction <maximumf>, %544, %cst_190 [1] : vector<8x8xf32> to vector<8xf32>
    %546 = vector.shape_cast %545 : vector<8xf32> to vector<8x1xf32>
    %547 = vector.broadcast %546 : vector<8x1xf32> to vector<8x8xf32>
    %548 = arith.subf %544, %547 : vector<8x8xf32>
    %549 = math.exp %548 : vector<8x8xf32>
    %cst_191 = arith.constant dense<0.000000e+00> : vector<8xf32>
    %550 = vector.multi_reduction <add>, %549, %cst_191 [1] : vector<8x8xf32> to vector<8xf32>
    %551 = vector.shape_cast %550 : vector<8xf32> to vector<8x1xf32>
    %552 = vector.broadcast %551 : vector<8x1xf32> to vector<8x8xf32>
    %553 = arith.divf %549, %552 : vector<8x8xf32>
    %554 = vector.extract_strided_slice %495 {offsets = [0, 24], sizes = [8, 8], strides = [1, 1]} : vector<8x32xf32> to vector<8x8xf32>
    %cst_192 = arith.constant dense<0.000000e+00> : vector<8x8xf32>
    %555 = tpu.matmul %553, %554, %cst_192 {dimension_numbers = #tpu.dot_dimension_numbers<[1], [0], [0], [1], [0, 0, 1, 1], [], []>} : vector<8x8xf32>, vector<8x8xf32>, vector<8x8xf32> -> vector<8x8xf32>
    %556 = tpu.concatenate %510, %525, %540, %555 in 1 : vector<8x8xf32>, vector<8x8xf32>, vector<8x8xf32>, vector<8x8xf32> -> vector<8x32xf32>
    %557 = tpu.concatenate %492, %556 in 0 : vector<8x32xf32>, vector<8x32xf32> -> vector<16x32xf32>
    %cst_193 = arith.constant dense<0.000000e+00> : vector<16x32xf32>
    %558 = tpu.matmul %557, %22, %cst_193 {dimension_numbers = #tpu.dot_dimension_numbers<[1], [0], [0], [1], [0, 0, 1, 1], [], []>} : vector<16x32xf32>, vector<32x32xf32>, vector<16x32xf32> -> vector<16x32xf32>
    %559 = vector.broadcast %23 : vector<1x32xf32> to vector<16x32xf32>
    %560 = arith.addf %558, %559 : vector<16x32xf32>
    %561 = arith.addf %389, %560 : vector<16x32xf32>
    %cst_194 = arith.constant dense<0.000000e+00> : vector<16xf32>
    %562 = vector.multi_reduction <add>, %561, %cst_194 [1] : vector<16x32xf32> to vector<16xf32>
    %563 = vector.shape_cast %562 : vector<16xf32> to vector<16x1xf32>
    %cst_195 = arith.constant 3.200000e+01 : f32
    %564 = vector.broadcast %cst_195 : f32 to vector<16x1xf32>
    %565 = arith.divf %563, %564 : vector<16x1xf32>
    %566 = vector.broadcast %565 : vector<16x1xf32> to vector<16x32xf32>
    %567 = arith.subf %561, %566 : vector<16x32xf32>
    %568 = arith.mulf %567, %567 : vector<16x32xf32>
    %cst_196 = arith.constant dense<0.000000e+00> : vector<16xf32>
    %569 = vector.multi_reduction <add>, %568, %cst_196 [1] : vector<16x32xf32> to vector<16xf32>
    %570 = vector.shape_cast %569 : vector<16xf32> to vector<16x1xf32>
    %cst_197 = arith.constant 3.200000e+01 : f32
    %571 = vector.broadcast %cst_197 : f32 to vector<16x1xf32>
    %572 = arith.divf %570, %571 : vector<16x1xf32>
    %cst_198 = arith.constant 9.99999974E-6 : f32
    %573 = vector.broadcast %cst_198 : f32 to vector<16x1xf32>
    %574 = arith.addf %572, %573 : vector<16x1xf32>
    %575 = math.rsqrt %574 : vector<16x1xf32>
    %576 = vector.broadcast %575 : vector<16x1xf32> to vector<16x32xf32>
    %577 = arith.mulf %567, %576 : vector<16x32xf32>
    %578 = vector.extract_strided_slice %0 {offsets = [0, 0], sizes = [1, 32], strides = [1, 1]} : vector<4x32xf32> to vector<1x32xf32>
    %579 = vector.broadcast %578 : vector<1x32xf32> to vector<16x32xf32>
    %580 = arith.mulf %577, %579 : vector<16x32xf32>
    %581 = vector.extract_strided_slice %1 {offsets = [0, 0], sizes = [1, 32], strides = [1, 1]} : vector<4x32xf32> to vector<1x32xf32>
    %582 = vector.broadcast %581 : vector<1x32xf32> to vector<16x32xf32>
    %583 = arith.addf %580, %582 : vector<16x32xf32>
    %584 = arith.addf %583, %5 : vector<16x32xf32>
    %c0_199 = arith.constant 0 : index
    %c0_200 = arith.constant 0 : index
    %585 = vector.load %arg10[%c0_199, %c0_200] : memref<32x32xf32, #tpu.memory_space<vmem>>, vector<32x32xf32>
    %cst_201 = arith.constant dense<0.000000e+00> : vector<16x32xf32>
    %586 = tpu.matmul %584, %585, %cst_201 {dimension_numbers = #tpu.dot_dimension_numbers<[1], [0], [0], [1], [0, 0, 1, 1], [], []>} : vector<16x32xf32>, vector<32x32xf32>, vector<16x32xf32> -> vector<16x32xf32>
    %c0_202 = arith.constant 0 : index
    %c0_203 = arith.constant 0 : index
    %587 = vector.load %arg11[%c0_202, %c0_203] : memref<1x32xf32, #tpu.memory_space<vmem>>, vector<1x32xf32>
    %588 = vector.broadcast %587 : vector<1x32xf32> to vector<16x32xf32>
    %589 = arith.addf %586, %588 : vector<16x32xf32>
    %590 = vector.extract_strided_slice %589 {offsets = [0, 0], sizes = [8, 32], strides = [1, 1]} : vector<16x32xf32> to vector<8x32xf32>
    %591 = vector.extract_strided_slice %16 {offsets = [0, 0], sizes = [16, 32], strides = [1, 1]} : vector<32x32xf32> to vector<16x32xf32>
    %592 = vector.extract_strided_slice %21 {offsets = [0, 0], sizes = [16, 32], strides = [1, 1]} : vector<32x32xf32> to vector<16x32xf32>
    %593 = vector.extract_strided_slice %590 {offsets = [0, 0], sizes = [8, 8], strides = [1, 1]} : vector<8x32xf32> to vector<8x8xf32>
    %594 = vector.extract_strided_slice %591 {offsets = [0, 0], sizes = [16, 8], strides = [1, 1]} : vector<16x32xf32> to vector<16x8xf32>
    %595 = tpu.transpose %594, [1, 0] : vector<16x8xf32> -> vector<8x16xf32>
    %cst_204 = arith.constant dense<0.000000e+00> : vector<8x16xf32>
    %596 = tpu.matmul %593, %595, %cst_204 {dimension_numbers = #tpu.dot_dimension_numbers<[1], [0], [0], [1], [0, 0, 1, 1], [], []>} : vector<8x8xf32>, vector<8x16xf32>, vector<8x16xf32> -> vector<8x16xf32>
    %cst_205 = arith.constant dense<0xFF800000> : vector<8xf32>
    %597 = vector.multi_reduction <maximumf>, %596, %cst_205 [1] : vector<8x16xf32> to vector<8xf32>
    %598 = vector.shape_cast %597 : vector<8xf32> to vector<8x1xf32>
    %599 = vector.broadcast %598 : vector<8x1xf32> to vector<8x16xf32>
    %600 = arith.subf %596, %599 : vector<8x16xf32>
    %601 = math.exp %600 : vector<8x16xf32>
    %cst_206 = arith.constant dense<0.000000e+00> : vector<8xf32>
    %602 = vector.multi_reduction <add>, %601, %cst_206 [1] : vector<8x16xf32> to vector<8xf32>
    %603 = vector.shape_cast %602 : vector<8xf32> to vector<8x1xf32>
    %604 = vector.broadcast %603 : vector<8x1xf32> to vector<8x16xf32>
    %605 = arith.divf %601, %604 : vector<8x16xf32>
    %606 = vector.extract_strided_slice %592 {offsets = [0, 0], sizes = [16, 8], strides = [1, 1]} : vector<16x32xf32> to vector<16x8xf32>
    %cst_207 = arith.constant dense<0.000000e+00> : vector<8x8xf32>
    %607 = tpu.matmul %605, %606, %cst_207 {dimension_numbers = #tpu.dot_dimension_numbers<[1], [0], [0], [1], [0, 0, 1, 1], [], []>} : vector<8x16xf32>, vector<16x8xf32>, vector<8x8xf32> -> vector<8x8xf32>
    %608 = vector.extract_strided_slice %590 {offsets = [0, 8], sizes = [8, 8], strides = [1, 1]} : vector<8x32xf32> to vector<8x8xf32>
    %609 = vector.extract_strided_slice %591 {offsets = [0, 8], sizes = [16, 8], strides = [1, 1]} : vector<16x32xf32> to vector<16x8xf32>
    %610 = tpu.transpose %609, [1, 0] : vector<16x8xf32> -> vector<8x16xf32>
    %cst_208 = arith.constant dense<0.000000e+00> : vector<8x16xf32>
    %611 = tpu.matmul %608, %610, %cst_208 {dimension_numbers = #tpu.dot_dimension_numbers<[1], [0], [0], [1], [0, 0, 1, 1], [], []>} : vector<8x8xf32>, vector<8x16xf32>, vector<8x16xf32> -> vector<8x16xf32>
    %cst_209 = arith.constant dense<0xFF800000> : vector<8xf32>
    %612 = vector.multi_reduction <maximumf>, %611, %cst_209 [1] : vector<8x16xf32> to vector<8xf32>
    %613 = vector.shape_cast %612 : vector<8xf32> to vector<8x1xf32>
    %614 = vector.broadcast %613 : vector<8x1xf32> to vector<8x16xf32>
    %615 = arith.subf %611, %614 : vector<8x16xf32>
    %616 = math.exp %615 : vector<8x16xf32>
    %cst_210 = arith.constant dense<0.000000e+00> : vector<8xf32>
    %617 = vector.multi_reduction <add>, %616, %cst_210 [1] : vector<8x16xf32> to vector<8xf32>
    %618 = vector.shape_cast %617 : vector<8xf32> to vector<8x1xf32>
    %619 = vector.broadcast %618 : vector<8x1xf32> to vector<8x16xf32>
    %620 = arith.divf %616, %619 : vector<8x16xf32>
    %621 = vector.extract_strided_slice %592 {offsets = [0, 8], sizes = [16, 8], strides = [1, 1]} : vector<16x32xf32> to vector<16x8xf32>
    %cst_211 = arith.constant dense<0.000000e+00> : vector<8x8xf32>
    %622 = tpu.matmul %620, %621, %cst_211 {dimension_numbers = #tpu.dot_dimension_numbers<[1], [0], [0], [1], [0, 0, 1, 1], [], []>} : vector<8x16xf32>, vector<16x8xf32>, vector<8x8xf32> -> vector<8x8xf32>
    %623 = vector.extract_strided_slice %590 {offsets = [0, 16], sizes = [8, 8], strides = [1, 1]} : vector<8x32xf32> to vector<8x8xf32>
    %624 = vector.extract_strided_slice %591 {offsets = [0, 16], sizes = [16, 8], strides = [1, 1]} : vector<16x32xf32> to vector<16x8xf32>
    %625 = tpu.transpose %624, [1, 0] : vector<16x8xf32> -> vector<8x16xf32>
    %cst_212 = arith.constant dense<0.000000e+00> : vector<8x16xf32>
    %626 = tpu.matmul %623, %625, %cst_212 {dimension_numbers = #tpu.dot_dimension_numbers<[1], [0], [0], [1], [0, 0, 1, 1], [], []>} : vector<8x8xf32>, vector<8x16xf32>, vector<8x16xf32> -> vector<8x16xf32>
    %cst_213 = arith.constant dense<0xFF800000> : vector<8xf32>
    %627 = vector.multi_reduction <maximumf>, %626, %cst_213 [1] : vector<8x16xf32> to vector<8xf32>
    %628 = vector.shape_cast %627 : vector<8xf32> to vector<8x1xf32>
    %629 = vector.broadcast %628 : vector<8x1xf32> to vector<8x16xf32>
    %630 = arith.subf %626, %629 : vector<8x16xf32>
    %631 = math.exp %630 : vector<8x16xf32>
    %cst_214 = arith.constant dense<0.000000e+00> : vector<8xf32>
    %632 = vector.multi_reduction <add>, %631, %cst_214 [1] : vector<8x16xf32> to vector<8xf32>
    %633 = vector.shape_cast %632 : vector<8xf32> to vector<8x1xf32>
    %634 = vector.broadcast %633 : vector<8x1xf32> to vector<8x16xf32>
    %635 = arith.divf %631, %634 : vector<8x16xf32>
    %636 = vector.extract_strided_slice %592 {offsets = [0, 16], sizes = [16, 8], strides = [1, 1]} : vector<16x32xf32> to vector<16x8xf32>
    %cst_215 = arith.constant dense<0.000000e+00> : vector<8x8xf32>
    %637 = tpu.matmul %635, %636, %cst_215 {dimension_numbers = #tpu.dot_dimension_numbers<[1], [0], [0], [1], [0, 0, 1, 1], [], []>} : vector<8x16xf32>, vector<16x8xf32>, vector<8x8xf32> -> vector<8x8xf32>
    %638 = vector.extract_strided_slice %590 {offsets = [0, 24], sizes = [8, 8], strides = [1, 1]} : vector<8x32xf32> to vector<8x8xf32>
    %639 = vector.extract_strided_slice %591 {offsets = [0, 24], sizes = [16, 8], strides = [1, 1]} : vector<16x32xf32> to vector<16x8xf32>
    %640 = tpu.transpose %639, [1, 0] : vector<16x8xf32> -> vector<8x16xf32>
    %cst_216 = arith.constant dense<0.000000e+00> : vector<8x16xf32>
    %641 = tpu.matmul %638, %640, %cst_216 {dimension_numbers = #tpu.dot_dimension_numbers<[1], [0], [0], [1], [0, 0, 1, 1], [], []>} : vector<8x8xf32>, vector<8x16xf32>, vector<8x16xf32> -> vector<8x16xf32>
    %cst_217 = arith.constant dense<0xFF800000> : vector<8xf32>
    %642 = vector.multi_reduction <maximumf>, %641, %cst_217 [1] : vector<8x16xf32> to vector<8xf32>
    %643 = vector.shape_cast %642 : vector<8xf32> to vector<8x1xf32>
    %644 = vector.broadcast %643 : vector<8x1xf32> to vector<8x16xf32>
    %645 = arith.subf %641, %644 : vector<8x16xf32>
    %646 = math.exp %645 : vector<8x16xf32>
    %cst_218 = arith.constant dense<0.000000e+00> : vector<8xf32>
    %647 = vector.multi_reduction <add>, %646, %cst_218 [1] : vector<8x16xf32> to vector<8xf32>
    %648 = vector.shape_cast %647 : vector<8xf32> to vector<8x1xf32>
    %649 = vector.broadcast %648 : vector<8x1xf32> to vector<8x16xf32>
    %650 = arith.divf %646, %649 : vector<8x16xf32>
    %651 = vector.extract_strided_slice %592 {offsets = [0, 24], sizes = [16, 8], strides = [1, 1]} : vector<16x32xf32> to vector<16x8xf32>
    %cst_219 = arith.constant dense<0.000000e+00> : vector<8x8xf32>
    %652 = tpu.matmul %650, %651, %cst_219 {dimension_numbers = #tpu.dot_dimension_numbers<[1], [0], [0], [1], [0, 0, 1, 1], [], []>} : vector<8x16xf32>, vector<16x8xf32>, vector<8x8xf32> -> vector<8x8xf32>
    %653 = tpu.concatenate %607, %622, %637, %652 in 1 : vector<8x8xf32>, vector<8x8xf32>, vector<8x8xf32>, vector<8x8xf32> -> vector<8x32xf32>
    %654 = vector.extract_strided_slice %589 {offsets = [8, 0], sizes = [8, 32], strides = [1, 1]} : vector<16x32xf32> to vector<8x32xf32>
    %655 = vector.extract_strided_slice %16 {offsets = [16, 0], sizes = [16, 32], strides = [1, 1]} : vector<32x32xf32> to vector<16x32xf32>
    %656 = vector.extract_strided_slice %21 {offsets = [16, 0], sizes = [16, 32], strides = [1, 1]} : vector<32x32xf32> to vector<16x32xf32>
    %657 = vector.extract_strided_slice %654 {offsets = [0, 0], sizes = [8, 8], strides = [1, 1]} : vector<8x32xf32> to vector<8x8xf32>
    %658 = vector.extract_strided_slice %655 {offsets = [0, 0], sizes = [16, 8], strides = [1, 1]} : vector<16x32xf32> to vector<16x8xf32>
    %659 = tpu.transpose %658, [1, 0] : vector<16x8xf32> -> vector<8x16xf32>
    %cst_220 = arith.constant dense<0.000000e+00> : vector<8x16xf32>
    %660 = tpu.matmul %657, %659, %cst_220 {dimension_numbers = #tpu.dot_dimension_numbers<[1], [0], [0], [1], [0, 0, 1, 1], [], []>} : vector<8x8xf32>, vector<8x16xf32>, vector<8x16xf32> -> vector<8x16xf32>
    %cst_221 = arith.constant dense<0xFF800000> : vector<8xf32>
    %661 = vector.multi_reduction <maximumf>, %660, %cst_221 [1] : vector<8x16xf32> to vector<8xf32>
    %662 = vector.shape_cast %661 : vector<8xf32> to vector<8x1xf32>
    %663 = vector.broadcast %662 : vector<8x1xf32> to vector<8x16xf32>
    %664 = arith.subf %660, %663 : vector<8x16xf32>
    %665 = math.exp %664 : vector<8x16xf32>
    %cst_222 = arith.constant dense<0.000000e+00> : vector<8xf32>
    %666 = vector.multi_reduction <add>, %665, %cst_222 [1] : vector<8x16xf32> to vector<8xf32>
    %667 = vector.shape_cast %666 : vector<8xf32> to vector<8x1xf32>
    %668 = vector.broadcast %667 : vector<8x1xf32> to vector<8x16xf32>
    %669 = arith.divf %665, %668 : vector<8x16xf32>
    %670 = vector.extract_strided_slice %656 {offsets = [0, 0], sizes = [16, 8], strides = [1, 1]} : vector<16x32xf32> to vector<16x8xf32>
    %cst_223 = arith.constant dense<0.000000e+00> : vector<8x8xf32>
    %671 = tpu.matmul %669, %670, %cst_223 {dimension_numbers = #tpu.dot_dimension_numbers<[1], [0], [0], [1], [0, 0, 1, 1], [], []>} : vector<8x16xf32>, vector<16x8xf32>, vector<8x8xf32> -> vector<8x8xf32>
    %672 = vector.extract_strided_slice %654 {offsets = [0, 8], sizes = [8, 8], strides = [1, 1]} : vector<8x32xf32> to vector<8x8xf32>
    %673 = vector.extract_strided_slice %655 {offsets = [0, 8], sizes = [16, 8], strides = [1, 1]} : vector<16x32xf32> to vector<16x8xf32>
    %674 = tpu.transpose %673, [1, 0] : vector<16x8xf32> -> vector<8x16xf32>
    %cst_224 = arith.constant dense<0.000000e+00> : vector<8x16xf32>
    %675 = tpu.matmul %672, %674, %cst_224 {dimension_numbers = #tpu.dot_dimension_numbers<[1], [0], [0], [1], [0, 0, 1, 1], [], []>} : vector<8x8xf32>, vector<8x16xf32>, vector<8x16xf32> -> vector<8x16xf32>
    %cst_225 = arith.constant dense<0xFF800000> : vector<8xf32>
    %676 = vector.multi_reduction <maximumf>, %675, %cst_225 [1] : vector<8x16xf32> to vector<8xf32>
    %677 = vector.shape_cast %676 : vector<8xf32> to vector<8x1xf32>
    %678 = vector.broadcast %677 : vector<8x1xf32> to vector<8x16xf32>
    %679 = arith.subf %675, %678 : vector<8x16xf32>
    %680 = math.exp %679 : vector<8x16xf32>
    %cst_226 = arith.constant dense<0.000000e+00> : vector<8xf32>
    %681 = vector.multi_reduction <add>, %680, %cst_226 [1] : vector<8x16xf32> to vector<8xf32>
    %682 = vector.shape_cast %681 : vector<8xf32> to vector<8x1xf32>
    %683 = vector.broadcast %682 : vector<8x1xf32> to vector<8x16xf32>
    %684 = arith.divf %680, %683 : vector<8x16xf32>
    %685 = vector.extract_strided_slice %656 {offsets = [0, 8], sizes = [16, 8], strides = [1, 1]} : vector<16x32xf32> to vector<16x8xf32>
    %cst_227 = arith.constant dense<0.000000e+00> : vector<8x8xf32>
    %686 = tpu.matmul %684, %685, %cst_227 {dimension_numbers = #tpu.dot_dimension_numbers<[1], [0], [0], [1], [0, 0, 1, 1], [], []>} : vector<8x16xf32>, vector<16x8xf32>, vector<8x8xf32> -> vector<8x8xf32>
    %687 = vector.extract_strided_slice %654 {offsets = [0, 16], sizes = [8, 8], strides = [1, 1]} : vector<8x32xf32> to vector<8x8xf32>
    %688 = vector.extract_strided_slice %655 {offsets = [0, 16], sizes = [16, 8], strides = [1, 1]} : vector<16x32xf32> to vector<16x8xf32>
    %689 = tpu.transpose %688, [1, 0] : vector<16x8xf32> -> vector<8x16xf32>
    %cst_228 = arith.constant dense<0.000000e+00> : vector<8x16xf32>
    %690 = tpu.matmul %687, %689, %cst_228 {dimension_numbers = #tpu.dot_dimension_numbers<[1], [0], [0], [1], [0, 0, 1, 1], [], []>} : vector<8x8xf32>, vector<8x16xf32>, vector<8x16xf32> -> vector<8x16xf32>
    %cst_229 = arith.constant dense<0xFF800000> : vector<8xf32>
    %691 = vector.multi_reduction <maximumf>, %690, %cst_229 [1] : vector<8x16xf32> to vector<8xf32>
    %692 = vector.shape_cast %691 : vector<8xf32> to vector<8x1xf32>
    %693 = vector.broadcast %692 : vector<8x1xf32> to vector<8x16xf32>
    %694 = arith.subf %690, %693 : vector<8x16xf32>
    %695 = math.exp %694 : vector<8x16xf32>
    %cst_230 = arith.constant dense<0.000000e+00> : vector<8xf32>
    %696 = vector.multi_reduction <add>, %695, %cst_230 [1] : vector<8x16xf32> to vector<8xf32>
    %697 = vector.shape_cast %696 : vector<8xf32> to vector<8x1xf32>
    %698 = vector.broadcast %697 : vector<8x1xf32> to vector<8x16xf32>
    %699 = arith.divf %695, %698 : vector<8x16xf32>
    %700 = vector.extract_strided_slice %656 {offsets = [0, 16], sizes = [16, 8], strides = [1, 1]} : vector<16x32xf32> to vector<16x8xf32>
    %cst_231 = arith.constant dense<0.000000e+00> : vector<8x8xf32>
    %701 = tpu.matmul %699, %700, %cst_231 {dimension_numbers = #tpu.dot_dimension_numbers<[1], [0], [0], [1], [0, 0, 1, 1], [], []>} : vector<8x16xf32>, vector<16x8xf32>, vector<8x8xf32> -> vector<8x8xf32>
    %702 = vector.extract_strided_slice %654 {offsets = [0, 24], sizes = [8, 8], strides = [1, 1]} : vector<8x32xf32> to vector<8x8xf32>
    %703 = vector.extract_strided_slice %655 {offsets = [0, 24], sizes = [16, 8], strides = [1, 1]} : vector<16x32xf32> to vector<16x8xf32>
    %704 = tpu.transpose %703, [1, 0] : vector<16x8xf32> -> vector<8x16xf32>
    %cst_232 = arith.constant dense<0.000000e+00> : vector<8x16xf32>
    %705 = tpu.matmul %702, %704, %cst_232 {dimension_numbers = #tpu.dot_dimension_numbers<[1], [0], [0], [1], [0, 0, 1, 1], [], []>} : vector<8x8xf32>, vector<8x16xf32>, vector<8x16xf32> -> vector<8x16xf32>
    %cst_233 = arith.constant dense<0xFF800000> : vector<8xf32>
    %706 = vector.multi_reduction <maximumf>, %705, %cst_233 [1] : vector<8x16xf32> to vector<8xf32>
    %707 = vector.shape_cast %706 : vector<8xf32> to vector<8x1xf32>
    %708 = vector.broadcast %707 : vector<8x1xf32> to vector<8x16xf32>
    %709 = arith.subf %705, %708 : vector<8x16xf32>
    %710 = math.exp %709 : vector<8x16xf32>
    %cst_234 = arith.constant dense<0.000000e+00> : vector<8xf32>
    %711 = vector.multi_reduction <add>, %710, %cst_234 [1] : vector<8x16xf32> to vector<8xf32>
    %712 = vector.shape_cast %711 : vector<8xf32> to vector<8x1xf32>
    %713 = vector.broadcast %712 : vector<8x1xf32> to vector<8x16xf32>
    %714 = arith.divf %710, %713 : vector<8x16xf32>
    %715 = vector.extract_strided_slice %656 {offsets = [0, 24], sizes = [16, 8], strides = [1, 1]} : vector<16x32xf32> to vector<16x8xf32>
    %cst_235 = arith.constant dense<0.000000e+00> : vector<8x8xf32>
    %716 = tpu.matmul %714, %715, %cst_235 {dimension_numbers = #tpu.dot_dimension_numbers<[1], [0], [0], [1], [0, 0, 1, 1], [], []>} : vector<8x16xf32>, vector<16x8xf32>, vector<8x8xf32> -> vector<8x8xf32>
    %717 = tpu.concatenate %671, %686, %701, %716 in 1 : vector<8x8xf32>, vector<8x8xf32>, vector<8x8xf32>, vector<8x8xf32> -> vector<8x32xf32>
    %718 = tpu.concatenate %653, %717 in 0 : vector<8x32xf32>, vector<8x32xf32> -> vector<16x32xf32>
    %cst_236 = arith.constant dense<0.000000e+00> : vector<16x32xf32>
    %719 = tpu.matmul %718, %24, %cst_236 {dimension_numbers = #tpu.dot_dimension_numbers<[1], [0], [0], [1], [0, 0, 1, 1], [], []>} : vector<16x32xf32>, vector<32x32xf32>, vector<16x32xf32> -> vector<16x32xf32>
    %720 = vector.broadcast %25 : vector<1x32xf32> to vector<16x32xf32>
    %721 = arith.addf %719, %720 : vector<16x32xf32>
    %722 = arith.addf %583, %721 : vector<16x32xf32>
    %cst_237 = arith.constant dense<0.000000e+00> : vector<16xf32>
    %723 = vector.multi_reduction <add>, %722, %cst_237 [1] : vector<16x32xf32> to vector<16xf32>
    %724 = vector.shape_cast %723 : vector<16xf32> to vector<16x1xf32>
    %cst_238 = arith.constant 3.200000e+01 : f32
    %725 = vector.broadcast %cst_238 : f32 to vector<16x1xf32>
    %726 = arith.divf %724, %725 : vector<16x1xf32>
    %727 = vector.broadcast %726 : vector<16x1xf32> to vector<16x32xf32>
    %728 = arith.subf %722, %727 : vector<16x32xf32>
    %729 = arith.mulf %728, %728 : vector<16x32xf32>
    %cst_239 = arith.constant dense<0.000000e+00> : vector<16xf32>
    %730 = vector.multi_reduction <add>, %729, %cst_239 [1] : vector<16x32xf32> to vector<16xf32>
    %731 = vector.shape_cast %730 : vector<16xf32> to vector<16x1xf32>
    %cst_240 = arith.constant 3.200000e+01 : f32
    %732 = vector.broadcast %cst_240 : f32 to vector<16x1xf32>
    %733 = arith.divf %731, %732 : vector<16x1xf32>
    %cst_241 = arith.constant 9.99999974E-6 : f32
    %734 = vector.broadcast %cst_241 : f32 to vector<16x1xf32>
    %735 = arith.addf %733, %734 : vector<16x1xf32>
    %736 = math.rsqrt %735 : vector<16x1xf32>
    %737 = vector.broadcast %736 : vector<16x1xf32> to vector<16x32xf32>
    %738 = arith.mulf %728, %737 : vector<16x32xf32>
    %739 = vector.extract_strided_slice %0 {offsets = [1, 0], sizes = [1, 32], strides = [1, 1]} : vector<4x32xf32> to vector<1x32xf32>
    %740 = vector.broadcast %739 : vector<1x32xf32> to vector<16x32xf32>
    %741 = arith.mulf %738, %740 : vector<16x32xf32>
    %742 = vector.extract_strided_slice %1 {offsets = [1, 0], sizes = [1, 32], strides = [1, 1]} : vector<4x32xf32> to vector<1x32xf32>
    %743 = vector.broadcast %742 : vector<1x32xf32> to vector<16x32xf32>
    %744 = arith.addf %741, %743 : vector<16x32xf32>
    %c0_242 = arith.constant 0 : index
    %c0_243 = arith.constant 0 : index
    %745 = vector.load %arg18[%c0_242, %c0_243] : memref<32x64xf32, #tpu.memory_space<vmem>>, vector<32x64xf32>
    %cst_244 = arith.constant dense<0.000000e+00> : vector<16x64xf32>
    %746 = tpu.matmul %744, %745, %cst_244 {dimension_numbers = #tpu.dot_dimension_numbers<[1], [0], [0], [1], [0, 0, 1, 1], [], []>} : vector<16x32xf32>, vector<32x64xf32>, vector<16x64xf32> -> vector<16x64xf32>
    %c0_245 = arith.constant 0 : index
    %c0_246 = arith.constant 0 : index
    %747 = vector.load %arg19[%c0_245, %c0_246] : memref<1x64xf32, #tpu.memory_space<vmem>>, vector<1x64xf32>
    %748 = vector.broadcast %747 : vector<1x64xf32> to vector<16x64xf32>
    %749 = arith.addf %746, %748 : vector<16x64xf32>
    %cst_247 = arith.constant 0.000000e+00 : f32
    %750 = vector.broadcast %cst_247 : f32 to vector<16x64xf32>
    %751 = arith.maximumf %749, %750 : vector<16x64xf32>
    %c0_248 = arith.constant 0 : index
    %c0_249 = arith.constant 0 : index
    %752 = vector.load %arg20[%c0_248, %c0_249] : memref<64x32xf32, #tpu.memory_space<vmem>>, vector<64x32xf32>
    %cst_250 = arith.constant dense<0.000000e+00> : vector<16x32xf32>
    %753 = tpu.matmul %751, %752, %cst_250 {dimension_numbers = #tpu.dot_dimension_numbers<[1], [0], [0], [1], [0, 0, 1, 1], [], []>} : vector<16x64xf32>, vector<64x32xf32>, vector<16x32xf32> -> vector<16x32xf32>
    %c0_251 = arith.constant 0 : index
    %c0_252 = arith.constant 0 : index
    %754 = vector.load %arg21[%c0_251, %c0_252] : memref<1x32xf32, #tpu.memory_space<vmem>>, vector<1x32xf32>
    %755 = vector.broadcast %754 : vector<1x32xf32> to vector<16x32xf32>
    %756 = arith.addf %753, %755 : vector<16x32xf32>
    %757 = arith.addf %744, %756 : vector<16x32xf32>
    %cst_253 = arith.constant dense<0.000000e+00> : vector<16xf32>
    %758 = vector.multi_reduction <add>, %757, %cst_253 [1] : vector<16x32xf32> to vector<16xf32>
    %759 = vector.shape_cast %758 : vector<16xf32> to vector<16x1xf32>
    %cst_254 = arith.constant 3.200000e+01 : f32
    %760 = vector.broadcast %cst_254 : f32 to vector<16x1xf32>
    %761 = arith.divf %759, %760 : vector<16x1xf32>
    %762 = vector.broadcast %761 : vector<16x1xf32> to vector<16x32xf32>
    %763 = arith.subf %757, %762 : vector<16x32xf32>
    %764 = arith.mulf %763, %763 : vector<16x32xf32>
    %cst_255 = arith.constant dense<0.000000e+00> : vector<16xf32>
    %765 = vector.multi_reduction <add>, %764, %cst_255 [1] : vector<16x32xf32> to vector<16xf32>
    %766 = vector.shape_cast %765 : vector<16xf32> to vector<16x1xf32>
    %cst_256 = arith.constant 3.200000e+01 : f32
    %767 = vector.broadcast %cst_256 : f32 to vector<16x1xf32>
    %768 = arith.divf %766, %767 : vector<16x1xf32>
    %cst_257 = arith.constant 9.99999974E-6 : f32
    %769 = vector.broadcast %cst_257 : f32 to vector<16x1xf32>
    %770 = arith.addf %768, %769 : vector<16x1xf32>
    %771 = math.rsqrt %770 : vector<16x1xf32>
    %772 = vector.broadcast %771 : vector<16x1xf32> to vector<16x32xf32>
    %773 = arith.mulf %763, %772 : vector<16x32xf32>
    %774 = vector.extract_strided_slice %0 {offsets = [2, 0], sizes = [1, 32], strides = [1, 1]} : vector<4x32xf32> to vector<1x32xf32>
    %775 = vector.broadcast %774 : vector<1x32xf32> to vector<16x32xf32>
    %776 = arith.mulf %773, %775 : vector<16x32xf32>
    %777 = vector.extract_strided_slice %1 {offsets = [2, 0], sizes = [1, 32], strides = [1, 1]} : vector<4x32xf32> to vector<1x32xf32>
    %778 = vector.broadcast %777 : vector<1x32xf32> to vector<16x32xf32>
    %779 = arith.addf %776, %778 : vector<16x32xf32>
    %cst_258 = arith.constant dense<0.000000e+00> : vector<16xf32>
    %780 = vector.multi_reduction <add>, %779, %cst_258 [1] : vector<16x32xf32> to vector<16xf32>
    %781 = vector.shape_cast %780 : vector<16xf32> to vector<16x1xf32>
    %cst_259 = arith.constant 3.200000e+01 : f32
    %782 = vector.broadcast %cst_259 : f32 to vector<16x1xf32>
    %783 = arith.divf %781, %782 : vector<16x1xf32>
    %784 = vector.broadcast %783 : vector<16x1xf32> to vector<16x32xf32>
    %785 = arith.subf %779, %784 : vector<16x32xf32>
    %786 = arith.mulf %785, %785 : vector<16x32xf32>
    %cst_260 = arith.constant dense<0.000000e+00> : vector<16xf32>
    %787 = vector.multi_reduction <add>, %786, %cst_260 [1] : vector<16x32xf32> to vector<16xf32>
    %788 = vector.shape_cast %787 : vector<16xf32> to vector<16x1xf32>
    %cst_261 = arith.constant 3.200000e+01 : f32
    %789 = vector.broadcast %cst_261 : f32 to vector<16x1xf32>
    %790 = arith.divf %788, %789 : vector<16x1xf32>
    %cst_262 = arith.constant 9.99999974E-6 : f32
    %791 = vector.broadcast %cst_262 : f32 to vector<16x1xf32>
    %792 = arith.addf %790, %791 : vector<16x1xf32>
    %793 = math.rsqrt %792 : vector<16x1xf32>
    %794 = vector.broadcast %793 : vector<16x1xf32> to vector<16x32xf32>
    %795 = arith.mulf %785, %794 : vector<16x32xf32>
    %796 = vector.extract_strided_slice %0 {offsets = [3, 0], sizes = [1, 32], strides = [1, 1]} : vector<4x32xf32> to vector<1x32xf32>
    %797 = vector.broadcast %796 : vector<1x32xf32> to vector<16x32xf32>
    %798 = arith.mulf %795, %797 : vector<16x32xf32>
    %799 = vector.extract_strided_slice %1 {offsets = [3, 0], sizes = [1, 32], strides = [1, 1]} : vector<4x32xf32> to vector<1x32xf32>
    %800 = vector.broadcast %799 : vector<1x32xf32> to vector<16x32xf32>
    %801 = arith.addf %798, %800 : vector<16x32xf32>
    %802 = vector.shape_cast %801 : vector<16x32xf32> to vector<2x8x32xf32>
    %c1 = arith.constant 1 : index
    %c0_263 = arith.constant 0 : index
    %c0_264 = arith.constant 0 : index
    %c0_265 = arith.constant 0 : index
    %803 = vector.load %arg24[%c1, %c0_263, %c0_264, %c0_265] : memref<2x2x8x32xf32, #tpu.memory_space<vmem>>, vector<1x2x8x32xf32>
    %804 = vector.shape_cast %803 : vector<1x2x8x32xf32> to vector<2x8x32xf32>
    %805 = vector.shape_cast %802 : vector<2x8x32xf32> to vector<1x2x8x32xf32>
    tpu.vector_store %arg24[%c1, %c0_263, %c0_264, %c0_265], %805 {strides = array<i32>} : memref<2x2x8x32xf32, #tpu.memory_space<vmem>>, vector<1x2x8x32xf32>,
    return
  }
}

</mosaic_0001>

<llo_original>
// kernel: _lambda_.1
$region0: #{_lambda_.1}
  #allocation0 [shape = 'u32[]', space=smem, size = 0x4, offset = 0x4, fixed_abs, tag = 'smem constant byte address 0x4 - core index']
  #allocation1 [shape = 'u32[72,128]{1,0:T(1,128)}', space=vmem, size = 0x9000, scoped, tag = 'internal scratch']
  %s0 = inlined_call_operand.vmem [shape: f32[2,8,32], index: 0, kind: input, shape index: {}]
  %s1 = inlined_call_operand.vmem [shape: f32[2,16,32], index: 1, kind: input, shape index: {}]
  %s2 = inlined_call_operand.vmem [shape: f32[2,16,32], index: 2, kind: input, shape index: {}]
  %s3 = inlined_call_operand.vmem [shape: f32[2,8,32], index: 3, kind: input, shape index: {}]
  %s4 = inlined_call_operand.vmem [shape: f32[32,64], index: 4, kind: input, shape index: {}]
  %s5 = inlined_call_operand.vmem [shape: f32[1,64], index: 5, kind: input, shape index: {}]
  %s6 = inlined_call_operand.vmem [shape: f32[32,32], index: 6, kind: input, shape index: {}]
  %s7 = inlined_call_operand.vmem [shape: f32[1,32], index: 7, kind: input, shape index: {}]
  %s8 = inlined_call_operand.vmem [shape: f32[32,32], index: 8, kind: input, shape index: {}]
  %s9 = inlined_call_operand.vmem [shape: f32[1,32], index: 9, kind: input, shape index: {}]
  %s10 = inlined_call_operand.vmem [shape: f32[32,32], index: 10, kind: input, shape index: {}]
  %s11 = inlined_call_operand.hbm [shape: f32[1,32], index: 11, kind: input, shape index: {}]
  %s12 = inlined_call_operand.vmem [shape: f32[32,32], index: 12, kind: input, shape index: {}]
  %s13 = inlined_call_operand.hbm [shape: f32[1,32], index: 13, kind: input, shape index: {}]
  %s14 = inlined_call_operand.vmem [shape: f32[32,32], index: 14, kind: input, shape index: {}]
  %s15 = inlined_call_operand.hbm [shape: f32[1,32], index: 15, kind: input, shape index: {}]
  %s16 = inlined_call_operand.hbm [shape: f32[32,32], index: 16, kind: input, shape index: {}]
  %s17 = inlined_call_operand.hbm [shape: f32[1,32], index: 17, kind: input, shape index: {}]
  %s18 = inlined_call_operand.hbm [shape: f32[32,64], index: 18, kind: input, shape index: {}]
  %s19 = inlined_call_operand.hbm [shape: f32[1,64], index: 19, kind: input, shape index: {}]
  %s20 = inlined_call_operand.vmem [shape: f32[64,32], index: 20, kind: input, shape index: {}]
  %s21 = inlined_call_operand.hbm [shape: f32[1,32], index: 21, kind: input, shape index: {}]
  %s22 = inlined_call_operand.hbm [shape: f32[4,32], index: 22, kind: input, shape index: {}]
  %s23 = inlined_call_operand.hbm [shape: f32[4,32], index: 23, kind: input, shape index: {}]
  %s24 = inlined_call_operand.vmem [shape: f32[2,2,8,32], index: 24, kind: output, shape index: {}]
  %s25 = sld [smem:[#allocation0]]
  $region146: #{_lambda_.1} parent=0
    _
  %s27 = ssub.s32 1, %s25
  %s28 = scalar_select 0, %s27, %s25
  $region1: #{_lambda_.1} parent=0
    #allocation2 [shape = 'u8[512]{0}', space=vmem, size = 0x400, scoped, tag = 'input window, operand 11, single buffered']
    #allocation3 [shape = 's32[1]{0}', space=sflag, size = 0x4, scoped, tag = 'scoped memory for _lambda_.1']
    #allocation4 [shape = 'u8[512]{0}', space=vmem, size = 0x400, scoped, tag = 'input window, operand 13, single buffered']
    #allocation5 [shape = 's32[1]{0}', space=sflag, size = 0x4, scoped, tag = 'scoped memory for _lambda_.1']
    #allocation6 [shape = 'u8[512]{0}', space=vmem, size = 0x400, scoped, tag = 'input window, operand 15, single buffered']
    #allocation7 [shape = 'u8[16384]{0}', space=vmem, size = 0x4000, scoped, tag = 'input window, operand 16, single buffered']
    #allocation8 [shape = 's32[1]{0}', space=sflag, size = 0x4, scoped, tag = 'scoped memory for _lambda_.1']
    #allocation9 [shape = 'u8[512]{0}', space=vmem, size = 0x400, scoped, tag = 'input window, operand 17, single buffered']
    #allocation10 [shape = 'u8[16384]{0}', space=vmem, size = 0x4000, scoped, tag = 'input window, operand 18, single buffered']
    #allocation11 [shape = 's32[1]{0}', space=sflag, size = 0x4, scoped, tag = 'scoped memory for _lambda_.1']
    #allocation12 [shape = 'u8[512]{0}', space=vmem, size = 0x400, scoped, tag = 'input window, operand 19, single buffered']
    #allocation13 [shape = 'u8[512]{0}', space=vmem, size = 0x400, scoped, tag = 'input window, operand 21, single buffered']
    #allocation14 [shape = 's32[1]{0}', space=sflag, size = 0x4, scoped, tag = 'scoped memory for _lambda_.1']
    #allocation15 [shape = 'u8[2048]{0}', space=vmem, size = 0x800, scoped, tag = 'input window, operand 22, single buffered']
    #allocation16 [shape = 'u8[2048]{0}', space=vmem, size = 0x800, scoped, tag = 'input window, operand 23, single buffered']
    #allocation17 [shape = 's32[1]{0}', space=sflag, size = 0x4, scoped, tag = 'scoped memory for _lambda_.1']
    %29 = vsyncpa [#allocation3], 0
    %30 = vsyncpa [#allocation5], 0
    %31 = vsyncpa [#allocation8], 0
    %32 = vsyncpa [#allocation11], 0
    %33 = vsyncpa [#allocation14], 0
    %34 = vsyncpa [#allocation17], 0
    // Predicated region
    $region2: #{_lambda_.1} parent=1 // pred_check
      _
    $region3: #{_lambda_.1} parent=1 // pred_check_branch
      %36 = sbr.rel (0) target = $region5
    $region4: #{_lambda_.1} parent=1 // pred_region
      _
    $region5: #{_lambda_.1} parent=1 // pred_fallthru
      _
    // Predicated region
    $region6: #{_lambda_.1} parent=1 // pred_check
      _
    $region7: #{_lambda_.1} parent=1 // pred_check_branch
      %38 = sbr.rel (0) target = $region9
    $region8: #{_lambda_.1} parent=1 // pred_region
      _
    $region9: #{_lambda_.1} parent=1 // pred_fallthru
      _
    // Predicated region
    $region10: #{_lambda_.1} parent=1 // pred_check
      _
    $region11: #{_lambda_.1} parent=1 // pred_check_branch
      %40 = sbr.rel (0) target = $region13
    $region12: #{_lambda_.1} parent=1 // pred_region
      _
    $region13: #{_lambda_.1} parent=1 // pred_fallthru
      _
    // Predicated region
    $region14: #{_lambda_.1} parent=1 // pred_check
      _
    $region15: #{_lambda_.1} parent=1 // pred_check_branch
      %42 = sbr.rel (0) target = $region17
    $region16: #{_lambda_.1} parent=1 // pred_region
      _
    $region17: #{_lambda_.1} parent=1 // pred_fallthru
      _
    // Predicated region
    $region18: #{_lambda_.1} parent=1 // pred_check
      _
    $region19: #{_lambda_.1} parent=1 // pred_check_branch
      %44 = sbr.rel (0) target = $region21
    $region20: #{_lambda_.1} parent=1 // pred_region
      _
    $region21: #{_lambda_.1} parent=1 // pred_fallthru
      _
    // Predicated region
    $region22: #{_lambda_.1} parent=1 // pred_check
      _
    $region23: #{_lambda_.1} parent=1 // pred_check_branch
      %46 = sbr.rel (0) target = $region25
    $region24: #{_lambda_.1} parent=1 // pred_region
      _
    $region25: #{_lambda_.1} parent=1 // pred_fallthru
      _
    // Predicated region
    $region26: #{_lambda_.1} parent=1 // pred_check
      _
    $region27: #{_lambda_.1} parent=1 // pred_check_branch
      %48 = sbr.rel (0) target = $region29
    $region28: #{_lambda_.1} parent=1 // pred_region
      _
    $region29: #{_lambda_.1} parent=1 // pred_fallthru
      _
    // Predicated region
    $region30: #{_lambda_.1} parent=1 // pred_check
      _
    $region31: #{_lambda_.1} parent=1 // pred_check_branch
      %50 = sbr.rel (0) target = $region33
    $region32: #{_lambda_.1} parent=1 // pred_region
      _
    $region33: #{_lambda_.1} parent=1 // pred_fallthru
      _
    // Predicated region
    $region34: #{_lambda_.1} parent=1 // pred_check
      _
    $region35: #{_lambda_.1} parent=1 // pred_check_branch
      %52 = sbr.rel (0) target = $region37
    $region36: #{_lambda_.1} parent=1 // pred_region
      _
    $region37: #{_lambda_.1} parent=1 // pred_fallthru
      _
    // Predicated region
    $region38: #{_lambda_.1} parent=1 // pred_check
      _
    $region39: #{_lambda_.1} parent=1 // pred_check_branch
      %54 = sbr.rel (0) target = $region41
    $region40: #{_lambda_.1} parent=1 // pred_region
      _
    $region41: #{_lambda_.1} parent=1 // pred_fallthru
      _
    // Predicated region
    $region42: #{_lambda_.1} parent=1 // pred_check
      _
    $region43: #{_lambda_.1} parent=1 // pred_check_branch
      %56 = sbr.rel (0) target = $region45
    $region44: #{_lambda_.1} parent=1 // pred_region
      _
    $region45: #{_lambda_.1} parent=1 // pred_fallthru
      _
    // Predicated region
    $region46: #{_lambda_.1} parent=1 // pred_check
      _
    $region47: #{_lambda_.1} parent=1 // pred_check_branch
      %58 = sbr.rel (0) target = $region49
    $region48: #{_lambda_.1} parent=1 // pred_region
      %60 = vsyncadd [#allocation3], 0
      %s62 = sshll.u32 %s11, 4
      %s63 = int_to_ptr.hbm [resolvable:$true] %s62
      %s64 = sshll.u32 [#allocation2], 4
      %s65 = int_to_ptr.vmem [resolvable:$true] %s64
      %67 = dma.hbm_to_vmem [thread:$0]  %s63, 16, %s65, [#allocation3]
    $region49: #{_lambda_.1} parent=1 // pred_fallthru
      _
    // Predicated region
    $region50: #{_lambda_.1} parent=1 // pred_check
      _
    $region51: #{_lambda_.1} parent=1 // pred_check_branch
      %69 = sbr.rel (0) target = $region53
    $region52: #{_lambda_.1} parent=1 // pred_region
      _
    $region53: #{_lambda_.1} parent=1 // pred_fallthru
      _
    // Predicated region
    $region54: #{_lambda_.1} parent=1 // pred_check
      _
    $region55: #{_lambda_.1} parent=1 // pred_check_branch
      %71 = sbr.rel (0) target = $region57
    $region56: #{_lambda_.1} parent=1 // pred_region
      %73 = vsyncadd [#allocation5], 0
      %s75 = sshll.u32 %s13, 4
      %s76 = int_to_ptr.hbm [resolvable:$true] %s75
      %s77 = sshll.u32 [#allocation4], 4
      %s78 = int_to_ptr.vmem [resolvable:$true] %s77
      %80 = dma.hbm_to_vmem [thread:$0]  %s76, 16, %s78, [#allocation5]
    $region57: #{_lambda_.1} parent=1 // pred_fallthru
      _
    // Predicated region
    $region58: #{_lambda_.1} parent=1 // pred_check
      _
    $region59: #{_lambda_.1} parent=1 // pred_check_branch
      %82 = sbr.rel (0) target = $region61
    $region60: #{_lambda_.1} parent=1 // pred_region
      _
    $region61: #{_lambda_.1} parent=1 // pred_fallthru
      _
    // Predicated region
    $region62: #{_lambda_.1} parent=1 // pred_check
      _
    $region63: #{_lambda_.1} parent=1 // pred_check_branch
      %84 = sbr.rel (0) target = $region65
    $region64: #{_lambda_.1} parent=1 // pred_region
      %86 = vsyncadd [#allocation5], 0
      %s88 = sshll.u32 %s15, 4
      %s89 = int_to_ptr.hbm [resolvable:$true] %s88
      %s90 = sshll.u32 [#allocation6], 4
      %s91 = int_to_ptr.vmem [resolvable:$true] %s90
      %93 = dma.hbm_to_vmem [thread:$0]  %s89, 16, %s91, [#allocation5]
    $region65: #{_lambda_.1} parent=1 // pred_fallthru
      _
    // Predicated region
    $region66: #{_lambda_.1} parent=1 // pred_check
      _
    $region67: #{_lambda_.1} parent=1 // pred_check_branch
      %95 = sbr.rel (0) target = $region69
    $region68: #{_lambda_.1} parent=1 // pred_region
      %97 = vsyncadd [#allocation8], 0
      %s98 = sshll.u32 %s16, 4
      %s99 = int_to_ptr.hbm [resolvable:$true] %s98
      %s100 = sshll.u32 [#allocation7], 4
      %s101 = int_to_ptr.vmem [resolvable:$true] %s100
      %106 = dma.hbm_to_vmem [thread:$0]  %s99, 512, %s101, [#allocation8], 128, 128, 8
    $region69: #{_lambda_.1} parent=1 // pred_fallthru
      _
    // Predicated region
    $region70: #{_lambda_.1} parent=1 // pred_check
      _
    $region71: #{_lambda_.1} parent=1 // pred_check_branch
      %108 = sbr.rel (0) target = $region73
    $region72: #{_lambda_.1} parent=1 // pred_region
      %110 = vsyncadd [#allocation8], 0
      %s112 = sshll.u32 %s17, 4
      %s113 = int_to_ptr.hbm [resolvable:$true] %s112
      %s114 = sshll.u32 [#allocation9], 4
      %s115 = int_to_ptr.vmem [resolvable:$true] %s114
      %117 = dma.hbm_to_vmem [thread:$0]  %s113, 16, %s115, [#allocation8]
    $region73: #{_lambda_.1} parent=1 // pred_fallthru
      _
    // Predicated region
    $region74: #{_lambda_.1} parent=1 // pred_check
      _
    $region75: #{_lambda_.1} parent=1 // pred_check_branch
      %119 = sbr.rel (0) target = $region77
    $region76: #{_lambda_.1} parent=1 // pred_region
      %121 = vsyncadd [#allocation11], 0
      %s122 = sshll.u32 %s18, 4
      %s123 = int_to_ptr.hbm [resolvable:$true] %s122
      %s124 = sshll.u32 [#allocation10], 4
      %s125 = int_to_ptr.vmem [resolvable:$true] %s124
      %130 = dma.hbm_to_vmem [thread:$0]  %s123, 512, %s125, [#allocation11], 128, 128, 8
    $region77: #{_lambda_.1} parent=1 // pred_fallthru
      _
    // Predicated region
    $region78: #{_lambda_.1} parent=1 // pred_check
      _
    $region79: #{_lambda_.1} parent=1 // pred_check_branch
      %132 = sbr.rel (0) target = $region81
    $region80: #{_lambda_.1} parent=1 // pred_region
      %134 = vsyncadd [#allocation11], 0
      %s136 = sshll.u32 %s19, 4
      %s137 = int_to_ptr.hbm [resolvable:$true] %s136
      %s138 = sshll.u32 [#allocation12], 4
      %s139 = int_to_ptr.vmem [resolvable:$true] %s138
      %141 = dma.hbm_to_vmem [thread:$0]  %s137, 16, %s139, [#allocation11]
    $region81: #{_lambda_.1} parent=1 // pred_fallthru
      _
    // Predicated region
    $region82: #{_lambda_.1} parent=1 // pred_check
      _
    $region83: #{_lambda_.1} parent=1 // pred_check_branch
      %143 = sbr.rel (0) target = $region85
    $region84: #{_lambda_.1} parent=1 // pred_region
      _
    $region85: #{_lambda_.1} parent=1 // pred_fallthru
      _
    // Predicated region
    $region86: #{_lambda_.1} parent=1 // pred_check
      _
    $region87: #{_lambda_.1} parent=1 // pred_check_branch
      %145 = sbr.rel (0) target = $region89
    $region88: #{_lambda_.1} parent=1 // pred_region
      %147 = vsyncadd [#allocation14], 0
      %s149 = sshll.u32 %s21, 4
      %s150 = int_to_ptr.hbm [resolvable:$true] %s149
      %s151 = sshll.u32 [#allocation13], 4
      %s152 = int_to_ptr.vmem [resolvable:$true] %s151
      %154 = dma.hbm_to_vmem [thread:$0]  %s150, 16, %s152, [#allocation14]
    $region89: #{_lambda_.1} parent=1 // pred_fallthru
      _
    // Predicated region
    $region90: #{_lambda_.1} parent=1 // pred_check
      _
    $region91: #{_lambda_.1} parent=1 // pred_check_branch
      %156 = sbr.rel (0) target = $region93
    $region92: #{_lambda_.1} parent=1 // pred_region
      %158 = vsyncadd [#allocation14], 0
      %s160 = sshll.u32 %s22, 4
      %s161 = int_to_ptr.hbm [resolvable:$true] %s160
      %s162 = sshll.u32 [#allocation15], 4
      %s163 = int_to_ptr.vmem [resolvable:$true] %s162
      %165 = dma.hbm_to_vmem [thread:$0]  %s161, 64, %s163, [#allocation14]
    $region93: #{_lambda_.1} parent=1 // pred_fallthru
      _
    // Predicated region
    $region94: #{_lambda_.1} parent=1 // pred_check
      _
    $region95: #{_lambda_.1} parent=1 // pred_check_branch
      %167 = sbr.rel (0) target = $region97
    $region96: #{_lambda_.1} parent=1 // pred_region
      %169 = vsyncadd [#allocation17], 0
      %s171 = sshll.u32 %s23, 4
      %s172 = int_to_ptr.hbm [resolvable:$true] %s171
      %s173 = sshll.u32 [#allocation16], 4
      %s174 = int_to_ptr.vmem [resolvable:$true] %s173
      %176 = dma.hbm_to_vmem [thread:$0]  %s172, 64, %s174, [#allocation17]
    $region97: #{_lambda_.1} parent=1 // pred_fallthru
      _
    // Predicated region
    $region98: #{_lambda_.1} parent=1 // pred_check
      _
    $region99: #{_lambda_.1} parent=1 // pred_check_branch
      %178 = sbr.rel (0) target = $region101
    $region100: #{_lambda_.1} parent=1 // pred_region
      %180 = dma.done [#allocation3], 16
    $region101: #{_lambda_.1} parent=1 // pred_fallthru
      _
    // Predicated region
    $region102: #{_lambda_.1} parent=1 // pred_check
      _
    $region103: #{_lambda_.1} parent=1 // pred_check_branch
      %182 = sbr.rel (0) target = $region105
    $region104: #{_lambda_.1} parent=1 // pred_region
      %184 = dma.done [#allocation5], 16
    $region105: #{_lambda_.1} parent=1 // pred_fallthru
      _
    // Predicated region
    $region106: #{_lambda_.1} parent=1 // pred_check
      _
    $region107: #{_lambda_.1} parent=1 // pred_check_branch
      %186 = sbr.rel (0) target = $region109
    $region108: #{_lambda_.1} parent=1 // pred_region
      %188 = dma.done [#allocation5], 16
    $region109: #{_lambda_.1} parent=1 // pred_fallthru
      _
    // Predicated region
    $region110: #{_lambda_.1} parent=1 // pred_check
      _
    $region111: #{_lambda_.1} parent=1 // pred_check_branch
      %190 = sbr.rel (0) target = $region113
    $region112: #{_lambda_.1} parent=1 // pred_region
      %192 = dma.done [#allocation8], 512
    $region113: #{_lambda_.1} parent=1 // pred_fallthru
      _
    // Predicated region
    $region114: #{_lambda_.1} parent=1 // pred_check
      _
    $region115: #{_lambda_.1} parent=1 // pred_check_branch
      %194 = sbr.rel (0) target = $region117
    $region116: #{_lambda_.1} parent=1 // pred_region
      %196 = dma.done [#allocation8], 16
    $region117: #{_lambda_.1} parent=1 // pred_fallthru
      _
    // Predicated region
    $region118: #{_lambda_.1} parent=1 // pred_check
      _
    $region119: #{_lambda_.1} parent=1 // pred_check_branch
      %198 = sbr.rel (0) target = $region121
    $region120: #{_lambda_.1} parent=1 // pred_region
      %200 = dma.done [#allocation11], 512
    $region121: #{_lambda_.1} parent=1 // pred_fallthru
      _
    // Predicated region
    $region122: #{_lambda_.1} parent=1 // pred_check
      _
    $region123: #{_lambda_.1} parent=1 // pred_check_branch
      %202 = sbr.rel (0) target = $region125
    $region124: #{_lambda_.1} parent=1 // pred_region
      %204 = dma.done [#allocation11], 16
    $region125: #{_lambda_.1} parent=1 // pred_fallthru
      _
    // Predicated region
    $region126: #{_lambda_.1} parent=1 // pred_check
      _
    $region127: #{_lambda_.1} parent=1 // pred_check_branch
      %206 = sbr.rel (0) target = $region129
    $region128: #{_lambda_.1} parent=1 // pred_region
      %208 = dma.done [#allocation14], 16
    $region129: #{_lambda_.1} parent=1 // pred_fallthru
      _
    // Predicated region
    $region130: #{_lambda_.1} parent=1 // pred_check
      _
    $region131: #{_lambda_.1} parent=1 // pred_check_branch
      %210 = sbr.rel (0) target = $region133
    $region132: #{_lambda_.1} parent=1 // pred_region
      %212 = dma.done [#allocation14], 64
    $region133: #{_lambda_.1} parent=1 // pred_fallthru
      _
    // Predicated region
    $region134: #{_lambda_.1} parent=1 // pred_check
      _
    $region135: #{_lambda_.1} parent=1 // pred_check_branch
      %214 = sbr.rel (0) target = $region137
    $region136: #{_lambda_.1} parent=1 // pred_region
      %216 = dma.done [#allocation17], 64
    $region137: #{_lambda_.1} parent=1 // pred_fallthru
      _
    %v217 = vld [vmem:[#allocation15] sm:$0xf]
    %v218 = vld [vmem:[#allocation16] sm:$0xf]
    %v219 = vld [vmem:[%s0] sm:$0xff]
    %v220 = vld [vmem:[%s0 + $0x8] sm:$0xff]
    %v221 = vld [vmem:[%s3] sm:$0xff]
    %v222 = vld [vmem:[%s3 + $0x8] sm:$0xff]
    %v223 = vld [vmem:[%s1] sm:$0xff]
    %v224 = vld [vmem:[%s1 + $0x8] sm:$0xff]
    %v225 = vld [vmem:[%s1 + $0x10] sm:$0xff]
    %v226 = vld [vmem:[%s1 + $0x18] sm:$0xff]
    %v227 = vld [vmem:[%s2] sm:$0xff]
    %v228 = vld [vmem:[%s2 + $0x8] sm:$0xff]
    %v229 = vld [vmem:[%s2 + $0x10] sm:$0xff]
    %v230 = vld [vmem:[%s2 + $0x18] sm:$0xff]
    %v231 = vadd.f32 %v223, %v227
    %v232 = vadd.f32 %v224, %v228
    %v233 = vadd.f32 %v225, %v229
    %v234 = vadd.f32 %v226, %v230
    %v235 = vld [vmem:[%s12] sm:$0xff]
    %v236 = vld [vmem:[%s12 + $0x8] sm:$0xff]
    %v237 = vld [vmem:[%s12 + $0x10] sm:$0xff]
    %v238 = vld [vmem:[%s12 + $0x18] sm:$0xff]
    %v239 = vld [vmem:[#allocation4] sm:$0x1]
    %v241 = vperm.slane %v239, 0
    %vm243 = vcmask 261120
    %v245 = vsel %vm243, %v231, 0
    %v248 = vsel %vm243, %v232, 0
    %v251 = vsel %vm243, %v233, 0
    %v254 = vsel %vm243, %v234, 0
    %256 = vmatpush.msra.mxu0 0.0
    %257 = vmatpush.msra.mxu0 0.0
    %258 = vmatpush.msra.mxu0 0.0
    %259 = vmatpush.msra.mxu0 0.0
    %260 = vmatpush.msra.mxu0 0.0
    %261 = vmatpush.msra.mxu0 0.0
    %262 = vmatpush.msra.mxu0 0.0
    %263 = vmatpush.msra.mxu0 0.0
    %264 = vmatpush.msra.mxu0 0.0
    %265 = vmatpush.msra.mxu0 0.0
    %266 = vmatpush.msra.mxu0 0.0
    %267 = vmatpush.msra.mxu0 0.0
    %268 = vmatpush.msra.mxu0 %v238
    %269 = vmatpush.msra.mxu0 %v237
    %270 = vmatpush.msra.mxu0 %v236
    %271 = vmatpush.msra.mxu0 %v235
    %272 = vmatmul.f32.gmra.mxu0 %v245
    %v273 = vpop.f32.mrf.mxu0
    %v274 = vadd.f32 %v241, %v273
    %275 = vmatmul.f32.gmra.mxu0 %v248
    %v276 = vpop.f32.mrf.mxu0
    %v277 = vadd.f32 %v241, %v276
    %278 = vmatmul.f32.gmra.mxu0 %v251
    %v279 = vpop.f32.mrf.mxu0
    %v280 = vadd.f32 %v241, %v279
    %281 = vmatmul.f32.gmra.mxu0 %v254
    %v282 = vpop.f32.mrf.mxu0
    %v283 = vadd.f32 %v241, %v282
    %284 = vdwg.mxu0
    %v285 = vld [vmem:[%s14] sm:$0xff]
    %v286 = vld [vmem:[%s14 + $0x8] sm:$0xff]
    %v287 = vld [vmem:[%s14 + $0x10] sm:$0xff]
    %v288 = vld [vmem:[%s14 + $0x18] sm:$0xff]
    %v289 = vld [vmem:[#allocation6] sm:$0x1]
    %v291 = vperm.slane %v289, 0
    %v294 = vsel %vm243, %v223, 0
    %v297 = vsel %vm243, %v224, 0
    %v300 = vsel %vm243, %v225, 0
    %v303 = vsel %vm243, %v226, 0
    %305 = vmatpush.msra.mxu0 0.0
    %306 = vmatpush.msra.mxu0 0.0
    %307 = vmatpush.msra.mxu0 0.0
    %308 = vmatpush.msra.mxu0 0.0
    %309 = vmatpush.msra.mxu0 0.0
    %310 = vmatpush.msra.mxu0 0.0
    %311 = vmatpush.msra.mxu0 0.0
    %312 = vmatpush.msra.mxu0 0.0
    %313 = vmatpush.msra.mxu0 0.0
    %314 = vmatpush.msra.mxu0 0.0
    %315 = vmatpush.msra.mxu0 0.0
    %316 = vmatpush.msra.mxu0 0.0
    %317 = vmatpush.msra.mxu0 %v288
    %318 = vmatpush.msra.mxu0 %v287
    %319 = vmatpush.msra.mxu0 %v286
    %320 = vmatpush.msra.mxu0 %v285
    %321 = vmatmul.f32.gmra.mxu0 %v294
    %v322 = vpop.f32.mrf.mxu0
    %v323 = vadd.f32 %v291, %v322
    %324 = vmatmul.f32.gmra.mxu0 %v297
    %v325 = vpop.f32.mrf.mxu0
    %v326 = vadd.f32 %v291, %v325
    %327 = vmatmul.f32.gmra.mxu0 %v300
    %v328 = vpop.f32.mrf.mxu0
    %v329 = vadd.f32 %v291, %v328
    %330 = vmatmul.f32.gmra.mxu0 %v303
    %v331 = vpop.f32.mrf.mxu0
    %v332 = vadd.f32 %v291, %v331
    %333 = vdwg.mxu0
    %v334 = vld [vmem:[%s8] sm:$0xff]
    %v335 = vld [vmem:[%s8 + $0x8] sm:$0xff]
    %v336 = vld [vmem:[%s8 + $0x10] sm:$0xff]
    %v337 = vld [vmem:[%s8 + $0x18] sm:$0xff]
    %v338 = vld [vmem:[%s9] sm:$0x1]
    %v339 = vld [vmem:[#allocation7] sm:$0xff]
    %v340 = vld [vmem:[#allocation7 + $0x8] sm:$0xff]
    %v341 = vld [vmem:[#allocation7 + $0x10] sm:$0xff]
    %v342 = vld [vmem:[#allocation7 + $0x18] sm:$0xff]
    %v343 = vld [vmem:[#allocation9] sm:$0x1]
    %v344 = vadd.f32 %v219, %v221
    %v345 = vadd.f32 %v220, %v222
    %v346 = vld [vmem:[%s4] sm:$0xff]
    %v347 = vld [vmem:[%s4 + $0x8] sm:$0xff]
    %v348 = vld [vmem:[%s4 + $0x10] sm:$0xff]
    %v349 = vld [vmem:[%s4 + $0x18] sm:$0xff]
    %v350 = vld [vmem:[%s5] sm:$0x1]
    %v352 = vperm.slane %v350, 0
    %v355 = vsel %vm243, %v344, 0
    %v358 = vsel %vm243, %v345, 0
    %360 = vmatpush.msra.mxu0 0.0
    %361 = vmatpush.msra.mxu0 0.0
    %362 = vmatpush.msra.mxu0 0.0
    %363 = vmatpush.msra.mxu0 0.0
    %364 = vmatpush.msra.mxu0 0.0
    %365 = vmatpush.msra.mxu0 0.0
    %366 = vmatpush.msra.mxu0 0.0
    %367 = vmatpush.msra.mxu0 0.0
    %368 = vmatpush.msra.mxu0 0.0
    %369 = vmatpush.msra.mxu0 0.0
    %370 = vmatpush.msra.mxu0 0.0
    %371 = vmatpush.msra.mxu0 0.0
    %372 = vmatpush.msra.mxu0 %v349
    %373 = vmatpush.msra.mxu0 %v348
    %374 = vmatpush.msra.mxu0 %v347
    %375 = vmatpush.msra.mxu0 %v346
    %376 = vmatmul.f32.gmra.mxu0 %v355
    %v377 = vpop.f32.mrf.mxu0
    %v378 = vadd.f32 %v352, %v377
    %379 = vmatmul.f32.gmra.mxu0 %v358
    %v380 = vpop.f32.mrf.mxu0
    %v381 = vadd.f32 %v352, %v380
    %382 = vdwg.mxu0
    %v383 = vld [vmem:[%s6] sm:$0xff]
    %v384 = vld [vmem:[%s6 + $0x8] sm:$0xff]
    %v385 = vld [vmem:[%s6 + $0x10] sm:$0xff]
    %v386 = vld [vmem:[%s6 + $0x18] sm:$0xff]
    %v387 = vld [vmem:[%s7] sm:$0x1]
    %v389 = vperm.slane %v387, 0
    %v392 = vsel %vm243, %v219, 0
    %v395 = vsel %vm243, %v220, 0
    %397 = vmatpush.msra.mxu0 0.0
    %398 = vmatpush.msra.mxu0 0.0
    %399 = vmatpush.msra.mxu0 0.0
    %400 = vmatpush.msra.mxu0 0.0
    %401 = vmatpush.msra.mxu0 0.0
    %402 = vmatpush.msra.mxu0 0.0
    %403 = vmatpush.msra.mxu0 0.0
    %404 = vmatpush.msra.mxu0 0.0
    %405 = vmatpush.msra.mxu0 0.0
    %406 = vmatpush.msra.mxu0 0.0
    %407 = vmatpush.msra.mxu0 0.0
    %408 = vmatpush.msra.mxu0 0.0
    %409 = vmatpush.msra.mxu0 %v386
    %410 = vmatpush.msra.mxu0 %v385
    %411 = vmatpush.msra.mxu0 %v384
    %412 = vmatpush.msra.mxu0 %v383
    %413 = vmatmul.f32.gmra.mxu0 %v392
    %v414 = vpop.f32.mrf.mxu0
    %v415 = vadd.f32 %v389, %v414
    %416 = vmatmul.f32.gmra.mxu0 %v395
    %v417 = vpop.f32.mrf.mxu0
    %v418 = vadd.f32 %v389, %v417
    %419 = vdwg.mxu0
    %421 = vrot.lane.b32.xlu0 %v378, 96
    %v422 = vpop.permute.xlu0 %421
    %vm423 = vcmask 64512
    %v424 = vsel %vm423, %v378, 0
    %v426 = vsel %vm423, %v422, 0
    %428 = vmatpush.xpose.msra.mxu0 0.0
    %429 = vmatpush.xpose.msra.mxu0 0.0
    %430 = vmatpush.xpose.msra.mxu0 0.0
    %431 = vmatpush.xpose.msra.mxu0 0.0
    %432 = vmatpush.xpose.msra.mxu0 0.0
    %433 = vmatpush.xpose.msra.mxu0 0.0
    %434 = vmatpush.xpose.msra.mxu0 0.0
    %435 = vmatpush.xpose.msra.mxu0 0.0
    %436 = vmatpush.xpose.msra.mxu0 0.0
    %437 = vmatpush.xpose.msra.mxu0 0.0
    %438 = vmatpush.xpose.msra.mxu0 0.0
    %439 = vmatpush.xpose.msra.mxu0 0.0
    %440 = vmatpush.xpose.msra.mxu0 0.0
    %441 = vmatpush.xpose.msra.mxu0 0.0
    %442 = vmatpush.xpose.msra.mxu0 0.0
    %443 = vmatpush.xpose.msra.mxu0 %v426
    %444 = vmatmul.f32.gmra.mxu0 %v424
    %v445 = vpop.f32.mrf.mxu0
    %v446 = vadd.f32 0.0, %v445
    %447 = vdwg.mxu0
    %v448 = vsel %vm423, %v446, -inf
    %449 = vmax.xlane.f32.xlu0 %v448
    %v450 = vpop.xlane.xlu0 %449
    %v451 = vsub.f32 %v446, %v450
    %v452 = vmul.f32 %v451, 1.442695
    %v453 = vpow.pop %v452
    %v454 = vsel %vm423, %v453, 0.0
    %455 = vadd.xlane.f32.xlu0 %v454
    %v456 = vpop.xlane.xlu0 %455
    %v457 = vrcp.pop %v456
    %v458 = vmul.f32 %v456, %v457
    %v459 = vsub.f32 1.0, %v458
    %v460 = vmul.f32 %v457, %v459
    %v461 = vadd.f32 %v457, %v460
    %vm462 = vweird.f32 %v456
    %vm463 = vweird.f32 %v457
    %vm464 = vmor %vm462, %vm463
    %v465 = vsel %vm464, %v457, %v461
    %v466 = vand.u32 2147483647, %v456
    %vm467 = vcmp.eq.f32.partialorder %v466, 8.507059e+37
    %v468 = vand.u32 %v456, 2147483648
    %v469 = vor.u32 1.1754944e-38, %v468
    %v470 = vsel %vm467, %v469, %v465
    %v471 = vmul.f32 %v453, %v470
    %v473 = vsel %vm423, %v471, 0
    %475 = vmatpush.msra.mxu0 0.0
    %476 = vmatpush.msra.mxu0 0.0
    %477 = vmatpush.msra.mxu0 0.0
    %478 = vmatpush.msra.mxu0 0.0
    %479 = vmatpush.msra.mxu0 0.0
    %480 = vmatpush.msra.mxu0 0.0
    %481 = vmatpush.msra.mxu0 0.0
    %482 = vmatpush.msra.mxu0 0.0
    %483 = vmatpush.msra.mxu0 0.0
    %484 = vmatpush.msra.mxu0 0.0
    %485 = vmatpush.msra.mxu0 0.0
    %486 = vmatpush.msra.mxu0 0.0
    %487 = vmatpush.msra.mxu0 0.0
    %488 = vmatpush.msra.mxu0 0.0
    %489 = vmatpush.msra.mxu0 0.0
    %490 = vmatpush.msra.mxu0 %v415
    %491 = vmatmul.f32.gmra.mxu0 %v473
    %v492 = vpop.f32.mrf.mxu0
    %v493 = vadd.f32 0.0, %v492
    %494 = vdwg.mxu0
    %495 = vrot.lane.b32.xlu0 %v378, 120
    %v496 = vpop.permute.xlu0 %495
    %497 = vrot.lane.b32.xlu0 %v378, 88
    %v498 = vpop.permute.xlu0 %497
    %v499 = vsel %vm423, %v496, 0
    %v501 = vsel %vm423, %v498, 0
    %503 = vmatpush.xpose.msra.mxu0 0.0
    %504 = vmatpush.xpose.msra.mxu0 0.0
    %505 = vmatpush.xpose.msra.mxu0 0.0
    %506 = vmatpush.xpose.msra.mxu0 0.0
    %507 = vmatpush.xpose.msra.mxu0 0.0
    %508 = vmatpush.xpose.msra.mxu0 0.0
    %509 = vmatpush.xpose.msra.mxu0 0.0
    %510 = vmatpush.xpose.msra.mxu0 0.0
    %511 = vmatpush.xpose.msra.mxu0 0.0
    %512 = vmatpush.xpose.msra.mxu0 0.0
    %513 = vmatpush.xpose.msra.mxu0 0.0
    %514 = vmatpush.xpose.msra.mxu0 0.0
    %515 = vmatpush.xpose.msra.mxu0 0.0
    %516 = vmatpush.xpose.msra.mxu0 0.0
    %517 = vmatpush.xpose.msra.mxu0 0.0
    %518 = vmatpush.xpose.msra.mxu0 %v501
    %519 = vmatmul.f32.gmra.mxu0 %v499
    %v520 = vpop.f32.mrf.mxu0
    %v521 = vadd.f32 0.0, %v520
    %522 = vdwg.mxu0
    %v523 = vsel %vm423, %v521, -inf
    %524 = vmax.xlane.f32.xlu0 %v523
    %v525 = vpop.xlane.xlu0 %524
    %v526 = vsub.f32 %v521, %v525
    %v527 = vmul.f32 %v526, 1.442695
    %v528 = vpow.pop %v527
    %v529 = vsel %vm423, %v528, 0.0
    %530 = vadd.xlane.f32.xlu0 %v529
    %v531 = vpop.xlane.xlu0 %530
    %v532 = vrcp.pop %v531
    %v533 = vmul.f32 %v531, %v532
    %v534 = vsub.f32 1.0, %v533
    %v535 = vmul.f32 %v532, %v534
    %v536 = vadd.f32 %v532, %v535
    %vm537 = vweird.f32 %v531
    %vm538 = vweird.f32 %v532
    %vm539 = vmor %vm537, %vm538
    %v540 = vsel %vm539, %v532, %v536
    %v541 = vand.u32 2147483647, %v531
    %vm542 = vcmp.eq.f32.partialorder %v541, 8.507059e+37
    %v543 = vand.u32 %v531, 2147483648
    %v544 = vor.u32 1.1754944e-38, %v543
    %v545 = vsel %vm542, %v544, %v540
    %v546 = vmul.f32 %v528, %v545
    %548 = vrot.lane.b32.xlu0 %v415, 120
    %v549 = vpop.permute.xlu0 %548
    %v552 = vsel %vm423, %v546, 0
    %554 = vmatpush.msra.mxu0 0.0
    %555 = vmatpush.msra.mxu0 0.0
    %556 = vmatpush.msra.mxu0 0.0
    %557 = vmatpush.msra.mxu0 0.0
    %558 = vmatpush.msra.mxu0 0.0
    %559 = vmatpush.msra.mxu0 0.0
    %560 = vmatpush.msra.mxu0 0.0
    %561 = vmatpush.msra.mxu0 0.0
    %562 = vmatpush.msra.mxu0 0.0
    %563 = vmatpush.msra.mxu0 0.0
    %564 = vmatpush.msra.mxu0 0.0
    %565 = vmatpush.msra.mxu0 0.0
    %566 = vmatpush.msra.mxu0 0.0
    %567 = vmatpush.msra.mxu0 0.0
    %568 = vmatpush.msra.mxu0 0.0
    %569 = vmatpush.msra.mxu0 %v549
    %570 = vmatmul.f32.gmra.mxu0 %v552
    %v571 = vpop.f32.mrf.mxu0
    %v572 = vadd.f32 0.0, %v571
    %573 = vdwg.mxu0
    %574 = vrot.lane.b32.xlu0 %v378, 112
    %v575 = vpop.permute.xlu0 %574
    %576 = vrot.lane.b32.xlu0 %v378, 80
    %v577 = vpop.permute.xlu0 %576
    %v578 = vsel %vm423, %v575, 0
    %v580 = vsel %vm423, %v577, 0
    %582 = vmatpush.xpose.msra.mxu0 0.0
    %583 = vmatpush.xpose.msra.mxu0 0.0
    %584 = vmatpush.xpose.msra.mxu0 0.0
    %585 = vmatpush.xpose.msra.mxu0 0.0
    %586 = vmatpush.xpose.msra.mxu0 0.0
    %587 = vmatpush.xpose.msra.mxu0 0.0
    %588 = vmatpush.xpose.msra.mxu0 0.0
    %589 = vmatpush.xpose.msra.mxu0 0.0
    %590 = vmatpush.xpose.msra.mxu0 0.0
    %591 = vmatpush.xpose.msra.mxu0 0.0
    %592 = vmatpush.xpose.msra.mxu0 0.0
    %593 = vmatpush.xpose.msra.mxu0 0.0
    %594 = vmatpush.xpose.msra.mxu0 0.0
    %595 = vmatpush.xpose.msra.mxu0 0.0
    %596 = vmatpush.xpose.msra.mxu0 0.0
    %597 = vmatpush.xpose.msra.mxu0 %v580
    %598 = vmatmul.f32.gmra.mxu0 %v578
    %v599 = vpop.f32.mrf.mxu0
    %v600 = vadd.f32 0.0, %v599
    %601 = vdwg.mxu0
    %v602 = vsel %vm423, %v600, -inf
    %603 = vmax.xlane.f32.xlu0 %v602
    %v604 = vpop.xlane.xlu0 %603
    %v605 = vsub.f32 %v600, %v604
    %v606 = vmul.f32 %v605, 1.442695
    %v607 = vpow.pop %v606
    %v608 = vsel %vm423, %v607, 0.0
    %609 = vadd.xlane.f32.xlu0 %v608
    %v610 = vpop.xlane.xlu0 %609
    %v611 = vrcp.pop %v610
    %v612 = vmul.f32 %v610, %v611
    %v613 = vsub.f32 1.0, %v612
    %v614 = vmul.f32 %v611, %v613
    %v615 = vadd.f32 %v611, %v614
    %vm616 = vweird.f32 %v610
    %vm617 = vweird.f32 %v611
    %vm618 = vmor %vm616, %vm617
    %v619 = vsel %vm618, %v611, %v615
    %v620 = vand.u32 2147483647, %v610
    %vm621 = vcmp.eq.f32.partialorder %v620, 8.507059e+37
    %v622 = vand.u32 %v610, 2147483648
    %v623 = vor.u32 1.1754944e-38, %v622
    %v624 = vsel %vm621, %v623, %v619
    %v625 = vmul.f32 %v607, %v624
    %626 = vrot.lane.b32.xlu0 %v415, 112
    %v627 = vpop.permute.xlu0 %626
    %v630 = vsel %vm423, %v625, 0
    %632 = vmatpush.msra.mxu0 0.0
    %633 = vmatpush.msra.mxu0 0.0
    %634 = vmatpush.msra.mxu0 0.0
    %635 = vmatpush.msra.mxu0 0.0
    %636 = vmatpush.msra.mxu0 0.0
    %637 = vmatpush.msra.mxu0 0.0
    %638 = vmatpush.msra.mxu0 0.0
    %639 = vmatpush.msra.mxu0 0.0
    %640 = vmatpush.msra.mxu0 0.0
    %641 = vmatpush.msra.mxu0 0.0
    %642 = vmatpush.msra.mxu0 0.0
    %643 = vmatpush.msra.mxu0 0.0
    %644 = vmatpush.msra.mxu0 0.0
    %645 = vmatpush.msra.mxu0 0.0
    %646 = vmatpush.msra.mxu0 0.0
    %647 = vmatpush.msra.mxu0 %v627
    %648 = vmatmul.f32.gmra.mxu0 %v630
    %v649 = vpop.f32.mrf.mxu0
    %v650 = vadd.f32 0.0, %v649
    %651 = vdwg.mxu0
    %652 = vrot.lane.b32.xlu0 %v378, 104
    %v653 = vpop.permute.xlu0 %652
    %654 = vrot.lane.b32.xlu0 %v378, 72
    %v655 = vpop.permute.xlu0 %654
    %v656 = vsel %vm423, %v653, 0
    %v658 = vsel %vm423, %v655, 0
    %660 = vmatpush.xpose.msra.mxu0 0.0
    %661 = vmatpush.xpose.msra.mxu0 0.0
    %662 = vmatpush.xpose.msra.mxu0 0.0
    %663 = vmatpush.xpose.msra.mxu0 0.0
    %664 = vmatpush.xpose.msra.mxu0 0.0
    %665 = vmatpush.xpose.msra.mxu0 0.0
    %666 = vmatpush.xpose.msra.mxu0 0.0
    %667 = vmatpush.xpose.msra.mxu0 0.0
    %668 = vmatpush.xpose.msra.mxu0 0.0
    %669 = vmatpush.xpose.msra.mxu0 0.0
    %670 = vmatpush.xpose.msra.mxu0 0.0
    %671 = vmatpush.xpose.msra.mxu0 0.0
    %672 = vmatpush.xpose.msra.mxu0 0.0
    %673 = vmatpush.xpose.msra.mxu0 0.0
    %674 = vmatpush.xpose.msra.mxu0 0.0
    %675 = vmatpush.xpose.msra.mxu0 %v658
    %676 = vmatmul.f32.gmra.mxu0 %v656
    %v677 = vpop.f32.mrf.mxu0
    %v678 = vadd.f32 0.0, %v677
    %679 = vdwg.mxu0
    %v680 = vsel %vm423, %v678, -inf
    %681 = vmax.xlane.f32.xlu0 %v680
    %v682 = vpop.xlane.xlu0 %681
    %v683 = vsub.f32 %v678, %v682
    %v684 = vmul.f32 %v683, 1.442695
    %v685 = vpow.pop %v684
    %v686 = vsel %vm423, %v685, 0.0
    %687 = vadd.xlane.f32.xlu0 %v686
    %v688 = vpop.xlane.xlu0 %687
    %v689 = vrcp.pop %v688
    %v690 = vmul.f32 %v688, %v689
    %v691 = vsub.f32 1.0, %v690
    %v692 = vmul.f32 %v689, %v691
    %v693 = vadd.f32 %v689, %v692
    %vm694 = vweird.f32 %v688
    %vm695 = vweird.f32 %v689
    %vm696 = vmor %vm694, %vm695
    %v697 = vsel %vm696, %v689, %v693
    %v698 = vand.u32 2147483647, %v688
    %vm699 = vcmp.eq.f32.partialorder %v698, 8.507059e+37
    %v700 = vand.u32 %v688, 2147483648
    %v701 = vor.u32 1.1754944e-38, %v700
    %v702 = vsel %vm699, %v701, %v697
    %v703 = vmul.f32 %v685, %v702
    %704 = vrot.lane.b32.xlu0 %v415, 104
    %v705 = vpop.permute.xlu0 %704
    %v708 = vsel %vm423, %v703, 0
    %710 = vmatpush.msra.mxu0 0.0
    %711 = vmatpush.msra.mxu0 0.0
    %712 = vmatpush.msra.mxu0 0.0
    %713 = vmatpush.msra.mxu0 0.0
    %714 = vmatpush.msra.mxu0 0.0
    %715 = vmatpush.msra.mxu0 0.0
    %716 = vmatpush.msra.mxu0 0.0
    %717 = vmatpush.msra.mxu0 0.0
    %718 = vmatpush.msra.mxu0 0.0
    %719 = vmatpush.msra.mxu0 0.0
    %720 = vmatpush.msra.mxu0 0.0
    %721 = vmatpush.msra.mxu0 0.0
    %722 = vmatpush.msra.mxu0 0.0
    %723 = vmatpush.msra.mxu0 0.0
    %724 = vmatpush.msra.mxu0 0.0
    %725 = vmatpush.msra.mxu0 %v705
    %726 = vmatmul.f32.gmra.mxu0 %v708
    %v727 = vpop.f32.mrf.mxu0
    %v728 = vadd.f32 0.0, %v727
    %729 = vdwg.mxu0
    %731 = vrot.lane.b32.xlu0 %v572, 8
    %v732 = vpop.permute.xlu0 %731
    %735 = vrot.lane.b32.xlu0 %v650, 16
    %v736 = vpop.permute.xlu0 %735
    %739 = vrot.lane.b32.xlu0 %v728, 24
    %v740 = vpop.permute.xlu0 %739
    %v742 = vsel %vm423, %v493, %v732
    %vm743 = vcmask 130048
    %v744 = vsel %vm743, %v742, %v736
    %vm745 = vcmask 195584
    %v746 = vsel %vm745, %v744, %v740
    %748 = vrot.lane.b32.xlu0 %v381, 96
    %v749 = vpop.permute.xlu0 %748
    %v750 = vsel %vm423, %v381, 0
    %v752 = vsel %vm423, %v749, 0
    %754 = vmatpush.xpose.msra.mxu0 0.0
    %755 = vmatpush.xpose.msra.mxu0 0.0
    %756 = vmatpush.xpose.msra.mxu0 0.0
    %757 = vmatpush.xpose.msra.mxu0 0.0
    %758 = vmatpush.xpose.msra.mxu0 0.0
    %759 = vmatpush.xpose.msra.mxu0 0.0
    %760 = vmatpush.xpose.msra.mxu0 0.0
    %761 = vmatpush.xpose.msra.mxu0 0.0
    %762 = vmatpush.xpose.msra.mxu0 0.0
    %763 = vmatpush.xpose.msra.mxu0 0.0
    %764 = vmatpush.xpose.msra.mxu0 0.0
    %765 = vmatpush.xpose.msra.mxu0 0.0
    %766 = vmatpush.xpose.msra.mxu0 0.0
    %767 = vmatpush.xpose.msra.mxu0 0.0
    %768 = vmatpush.xpose.msra.mxu0 0.0
    %769 = vmatpush.xpose.msra.mxu0 %v752
    %770 = vmatmul.f32.gmra.mxu0 %v750
    %v771 = vpop.f32.mrf.mxu0
    %v772 = vadd.f32 0.0, %v771
    %773 = vdwg.mxu0
    %v774 = vsel %vm423, %v772, -inf
    %775 = vmax.xlane.f32.xlu0 %v774
    %v776 = vpop.xlane.xlu0 %775
    %v777 = vsub.f32 %v772, %v776
    %v778 = vmul.f32 %v777, 1.442695
    %v779 = vpow.pop %v778
    %v780 = vsel %vm423, %v779, 0.0
    %781 = vadd.xlane.f32.xlu0 %v780
    %v782 = vpop.xlane.xlu0 %781
    %v783 = vrcp.pop %v782
    %v784 = vmul.f32 %v782, %v783
    %v785 = vsub.f32 1.0, %v784
    %v786 = vmul.f32 %v783, %v785
    %v787 = vadd.f32 %v783, %v786
    %vm788 = vweird.f32 %v782
    %vm789 = vweird.f32 %v783
    %vm790 = vmor %vm788, %vm789
    %v791 = vsel %vm790, %v783, %v787
    %v792 = vand.u32 2147483647, %v782
    %vm793 = vcmp.eq.f32.partialorder %v792, 8.507059e+37
    %v794 = vand.u32 %v782, 2147483648
    %v795 = vor.u32 1.1754944e-38, %v794
    %v796 = vsel %vm793, %v795, %v791
    %v797 = vmul.f32 %v779, %v796
    %v799 = vsel %vm423, %v797, 0
    %801 = vmatpush.msra.mxu0 0.0
    %802 = vmatpush.msra.mxu0 0.0
    %803 = vmatpush.msra.mxu0 0.0
    %804 = vmatpush.msra.mxu0 0.0
    %805 = vmatpush.msra.mxu0 0.0
    %806 = vmatpush.msra.mxu0 0.0
    %807 = vmatpush.msra.mxu0 0.0
    %808 = vmatpush.msra.mxu0 0.0
    %809 = vmatpush.msra.mxu0 0.0
    %810 = vmatpush.msra.mxu0 0.0
    %811 = vmatpush.msra.mxu0 0.0
    %812 = vmatpush.msra.mxu0 0.0
    %813 = vmatpush.msra.mxu0 0.0
    %814 = vmatpush.msra.mxu0 0.0
    %815 = vmatpush.msra.mxu0 0.0
    %816 = vmatpush.msra.mxu0 %v418
    %817 = vmatmul.f32.gmra.mxu0 %v799
    %v818 = vpop.f32.mrf.mxu0
    %v819 = vadd.f32 0.0, %v818
    %820 = vdwg.mxu0
    %821 = vrot.lane.b32.xlu0 %v381, 120
    %v822 = vpop.permute.xlu0 %821
    %823 = vrot.lane.b32.xlu0 %v381, 88
    %v824 = vpop.permute.xlu0 %823
    %v825 = vsel %vm423, %v822, 0
    %v827 = vsel %vm423, %v824, 0
    %829 = vmatpush.xpose.msra.mxu0 0.0
    %830 = vmatpush.xpose.msra.mxu0 0.0
    %831 = vmatpush.xpose.msra.mxu0 0.0
    %832 = vmatpush.xpose.msra.mxu0 0.0
    %833 = vmatpush.xpose.msra.mxu0 0.0
    %834 = vmatpush.xpose.msra.mxu0 0.0
    %835 = vmatpush.xpose.msra.mxu0 0.0
    %836 = vmatpush.xpose.msra.mxu0 0.0
    %837 = vmatpush.xpose.msra.mxu0 0.0
    %838 = vmatpush.xpose.msra.mxu0 0.0
    %839 = vmatpush.xpose.msra.mxu0 0.0
    %840 = vmatpush.xpose.msra.mxu0 0.0
    %841 = vmatpush.xpose.msra.mxu0 0.0
    %842 = vmatpush.xpose.msra.mxu0 0.0
    %843 = vmatpush.xpose.msra.mxu0 0.0
    %844 = vmatpush.xpose.msra.mxu0 %v827
    %845 = vmatmul.f32.gmra.mxu0 %v825
    %v846 = vpop.f32.mrf.mxu0
    %v847 = vadd.f32 0.0, %v846
    %848 = vdwg.mxu0
    %v849 = vsel %vm423, %v847, -inf
    %850 = vmax.xlane.f32.xlu0 %v849
    %v851 = vpop.xlane.xlu0 %850
    %v852 = vsub.f32 %v847, %v851
    %v853 = vmul.f32 %v852, 1.442695
    %v854 = vpow.pop %v853
    %v855 = vsel %vm423, %v854, 0.0
    %856 = vadd.xlane.f32.xlu0 %v855
    %v857 = vpop.xlane.xlu0 %856
    %v858 = vrcp.pop %v857
    %v859 = vmul.f32 %v857, %v858
    %v860 = vsub.f32 1.0, %v859
    %v861 = vmul.f32 %v858, %v860
    %v862 = vadd.f32 %v858, %v861
    %vm863 = vweird.f32 %v857
    %vm864 = vweird.f32 %v858
    %vm865 = vmor %vm863, %vm864
    %v866 = vsel %vm865, %v858, %v862
    %v867 = vand.u32 2147483647, %v857
    %vm868 = vcmp.eq.f32.partialorder %v867, 8.507059e+37
    %v869 = vand.u32 %v857, 2147483648
    %v870 = vor.u32 1.1754944e-38, %v869
    %v871 = vsel %vm868, %v870, %v866
    %v872 = vmul.f32 %v854, %v871
    %874 = vrot.lane.b32.xlu0 %v418, 120
    %v875 = vpop.permute.xlu0 %874
    %v878 = vsel %vm423, %v872, 0
    %880 = vmatpush.msra.mxu0 0.0
    %881 = vmatpush.msra.mxu0 0.0
    %882 = vmatpush.msra.mxu0 0.0
    %883 = vmatpush.msra.mxu0 0.0
    %884 = vmatpush.msra.mxu0 0.0
    %885 = vmatpush.msra.mxu0 0.0
    %886 = vmatpush.msra.mxu0 0.0
    %887 = vmatpush.msra.mxu0 0.0
    %888 = vmatpush.msra.mxu0 0.0
    %889 = vmatpush.msra.mxu0 0.0
    %890 = vmatpush.msra.mxu0 0.0
    %891 = vmatpush.msra.mxu0 0.0
    %892 = vmatpush.msra.mxu0 0.0
    %893 = vmatpush.msra.mxu0 0.0
    %894 = vmatpush.msra.mxu0 0.0
    %895 = vmatpush.msra.mxu0 %v875
    %896 = vmatmul.f32.gmra.mxu0 %v878
    %v897 = vpop.f32.mrf.mxu0
    %v898 = vadd.f32 0.0, %v897
    %899 = vdwg.mxu0
    %900 = vrot.lane.b32.xlu0 %v381, 112
    %v901 = vpop.permute.xlu0 %900
    %902 = vrot.lane.b32.xlu0 %v381, 80
    %v903 = vpop.permute.xlu0 %902
    %v904 = vsel %vm423, %v901, 0
    %v906 = vsel %vm423, %v903, 0
    %908 = vmatpush.xpose.msra.mxu0 0.0
    %909 = vmatpush.xpose.msra.mxu0 0.0
    %910 = vmatpush.xpose.msra.mxu0 0.0
    %911 = vmatpush.xpose.msra.mxu0 0.0
    %912 = vmatpush.xpose.msra.mxu0 0.0
    %913 = vmatpush.xpose.msra.mxu0 0.0
    %914 = vmatpush.xpose.msra.mxu0 0.0
    %915 = vmatpush.xpose.msra.mxu0 0.0
    %916 = vmatpush.xpose.msra.mxu0 0.0
    %917 = vmatpush.xpose.msra.mxu0 0.0
    %918 = vmatpush.xpose.msra.mxu0 0.0
    %919 = vmatpush.xpose.msra.mxu0 0.0
    %920 = vmatpush.xpose.msra.mxu0 0.0
    %921 = vmatpush.xpose.msra.mxu0 0.0
    %922 = vmatpush.xpose.msra.mxu0 0.0
    %923 = vmatpush.xpose.msra.mxu0 %v906
    %924 = vmatmul.f32.gmra.mxu0 %v904
    %v925 = vpop.f32.mrf.mxu0
    %v926 = vadd.f32 0.0, %v925
    %927 = vdwg.mxu0
    %v928 = vsel %vm423, %v926, -inf
    %929 = vmax.xlane.f32.xlu0 %v928
    %v930 = vpop.xlane.xlu0 %929
    %v931 = vsub.f32 %v926, %v930
    %v932 = vmul.f32 %v931, 1.442695
    %v933 = vpow.pop %v932
    %v934 = vsel %vm423, %v933, 0.0
    %935 = vadd.xlane.f32.xlu0 %v934
    %v936 = vpop.xlane.xlu0 %935
    %v937 = vrcp.pop %v936
    %v938 = vmul.f32 %v936, %v937
    %v939 = vsub.f32 1.0, %v938
    %v940 = vmul.f32 %v937, %v939
    %v941 = vadd.f32 %v937, %v940
    %vm942 = vweird.f32 %v936
    %vm943 = vweird.f32 %v937
    %vm944 = vmor %vm942, %vm943
    %v945 = vsel %vm944, %v937, %v941
    %v946 = vand.u32 2147483647, %v936
    %vm947 = vcmp.eq.f32.partialorder %v946, 8.507059e+37
    %v948 = vand.u32 %v936, 2147483648
    %v949 = vor.u32 1.1754944e-38, %v948
    %v950 = vsel %vm947, %v949, %v945
    %v951 = vmul.f32 %v933, %v950
    %952 = vrot.lane.b32.xlu0 %v418, 112
    %v953 = vpop.permute.xlu0 %952
    %v956 = vsel %vm423, %v951, 0
    %958 = vmatpush.msra.mxu0 0.0
    %959 = vmatpush.msra.mxu0 0.0
    %960 = vmatpush.msra.mxu0 0.0
    %961 = vmatpush.msra.mxu0 0.0
    %962 = vmatpush.msra.mxu0 0.0
    %963 = vmatpush.msra.mxu0 0.0
    %964 = vmatpush.msra.mxu0 0.0
    %965 = vmatpush.msra.mxu0 0.0
    %966 = vmatpush.msra.mxu0 0.0
    %967 = vmatpush.msra.mxu0 0.0
    %968 = vmatpush.msra.mxu0 0.0
    %969 = vmatpush.msra.mxu0 0.0
    %970 = vmatpush.msra.mxu0 0.0
    %971 = vmatpush.msra.mxu0 0.0
    %972 = vmatpush.msra.mxu0 0.0
    %973 = vmatpush.msra.mxu0 %v953
    %974 = vmatmul.f32.gmra.mxu0 %v956
    %v975 = vpop.f32.mrf.mxu0
    %v976 = vadd.f32 0.0, %v975
    %977 = vdwg.mxu0
    %978 = vrot.lane.b32.xlu0 %v381, 104
    %v979 = vpop.permute.xlu0 %978
    %980 = vrot.lane.b32.xlu0 %v381, 72
    %v981 = vpop.permute.xlu0 %980
    %v982 = vsel %vm423, %v979, 0
    %v984 = vsel %vm423, %v981, 0
    %986 = vmatpush.xpose.msra.mxu0 0.0
    %987 = vmatpush.xpose.msra.mxu0 0.0
    %988 = vmatpush.xpose.msra.mxu0 0.0
    %989 = vmatpush.xpose.msra.mxu0 0.0
    %990 = vmatpush.xpose.msra.mxu0 0.0
    %991 = vmatpush.xpose.msra.mxu0 0.0
    %992 = vmatpush.xpose.msra.mxu0 0.0
    %993 = vmatpush.xpose.msra.mxu0 0.0
    %994 = vmatpush.xpose.msra.mxu0 0.0
    %995 = vmatpush.xpose.msra.mxu0 0.0
    %996 = vmatpush.xpose.msra.mxu0 0.0
    %997 = vmatpush.xpose.msra.mxu0 0.0
    %998 = vmatpush.xpose.msra.mxu0 0.0
    %999 = vmatpush.xpose.msra.mxu0 0.0
    %1000 = vmatpush.xpose.msra.mxu0 0.0
    %1001 = vmatpush.xpose.msra.mxu0 %v984
    %1002 = vmatmul.f32.gmra.mxu0 %v982
    %v1003 = vpop.f32.mrf.mxu0
    %v1004 = vadd.f32 0.0, %v1003
    %1005 = vdwg.mxu0
    %v1006 = vsel %vm423, %v1004, -inf
    %1007 = vmax.xlane.f32.xlu0 %v1006
    %v1008 = vpop.xlane.xlu0 %1007
    %v1009 = vsub.f32 %v1004, %v1008
    %v1010 = vmul.f32 %v1009, 1.442695
    %v1011 = vpow.pop %v1010
    %v1012 = vsel %vm423, %v1011, 0.0
    %1013 = vadd.xlane.f32.xlu0 %v1012
    %v1014 = vpop.xlane.xlu0 %1013
    %v1015 = vrcp.pop %v1014
    %v1016 = vmul.f32 %v1014, %v1015
    %v1017 = vsub.f32 1.0, %v1016
    %v1018 = vmul.f32 %v1015, %v1017
    %v1019 = vadd.f32 %v1015, %v1018
    %vm1020 = vweird.f32 %v1014
    %vm1021 = vweird.f32 %v1015
    %vm1022 = vmor %vm1020, %vm1021
    %v1023 = vsel %vm1022, %v1015, %v1019
    %v1024 = vand.u32 2147483647, %v1014
    %vm1025 = vcmp.eq.f32.partialorder %v1024, 8.507059e+37
    %v1026 = vand.u32 %v1014, 2147483648
    %v1027 = vor.u32 1.1754944e-38, %v1026
    %v1028 = vsel %vm1025, %v1027, %v1023
    %v1029 = vmul.f32 %v1011, %v1028
    %1030 = vrot.lane.b32.xlu0 %v418, 104
    %v1031 = vpop.permute.xlu0 %1030
    %v1034 = vsel %vm423, %v1029, 0
    %1036 = vmatpush.msra.mxu0 0.0
    %1037 = vmatpush.msra.mxu0 0.0
    %1038 = vmatpush.msra.mxu0 0.0
    %1039 = vmatpush.msra.mxu0 0.0
    %1040 = vmatpush.msra.mxu0 0.0
    %1041 = vmatpush.msra.mxu0 0.0
    %1042 = vmatpush.msra.mxu0 0.0
    %1043 = vmatpush.msra.mxu0 0.0
    %1044 = vmatpush.msra.mxu0 0.0
    %1045 = vmatpush.msra.mxu0 0.0
    %1046 = vmatpush.msra.mxu0 0.0
    %1047 = vmatpush.msra.mxu0 0.0
    %1048 = vmatpush.msra.mxu0 0.0
    %1049 = vmatpush.msra.mxu0 0.0
    %1050 = vmatpush.msra.mxu0 0.0
    %1051 = vmatpush.msra.mxu0 %v1031
    %1052 = vmatmul.f32.gmra.mxu0 %v1034
    %v1053 = vpop.f32.mrf.mxu0
    %v1054 = vadd.f32 0.0, %v1053
    %1055 = vdwg.mxu0
    %1057 = vrot.lane.b32.xlu0 %v898, 8
    %v1058 = vpop.permute.xlu0 %1057
    %1061 = vrot.lane.b32.xlu0 %v976, 16
    %v1062 = vpop.permute.xlu0 %1061
    %1065 = vrot.lane.b32.xlu0 %v1054, 24
    %v1066 = vpop.permute.xlu0 %1065
    %v1068 = vsel %vm423, %v819, %v1058
    %v1069 = vsel %vm743, %v1068, %v1062
    %v1070 = vsel %vm745, %v1069, %v1066
    %v1072 = vperm.slane %v338, 0
    %v1075 = vsel %vm243, %v746, 0
    %v1078 = vsel %vm243, %v1070, 0
    %1080 = vmatpush.msra.mxu0 0.0
    %1081 = vmatpush.msra.mxu0 0.0
    %1082 = vmatpush.msra.mxu0 0.0
    %1083 = vmatpush.msra.mxu0 0.0
    %1084 = vmatpush.msra.mxu0 0.0
    %1085 = vmatpush.msra.mxu0 0.0
    %1086 = vmatpush.msra.mxu0 0.0
    %1087 = vmatpush.msra.mxu0 0.0
    %1088 = vmatpush.msra.mxu0 0.0
    %1089 = vmatpush.msra.mxu0 0.0
    %1090 = vmatpush.msra.mxu0 0.0
    %1091 = vmatpush.msra.mxu0 0.0
    %1092 = vmatpush.msra.mxu0 %v337
    %1093 = vmatpush.msra.mxu0 %v336
    %1094 = vmatpush.msra.mxu0 %v335
    %1095 = vmatpush.msra.mxu0 %v334
    %1096 = vmatmul.f32.gmra.mxu0 %v1075
    %v1097 = vpop.f32.mrf.mxu0
    %v1098 = vadd.f32 %v1072, %v1097
    %1099 = vmatmul.f32.gmra.mxu0 %v1078
    %v1100 = vpop.f32.mrf.mxu0
    %v1101 = vadd.f32 %v1072, %v1100
    %1102 = vdwg.mxu0
    %v1103 = vadd.f32 %v219, %v1098
    %v1104 = vadd.f32 %v220, %v1101
    %v1105 = vsel %vm243, %v1103, 0.0
    %1106 = vadd.xlane.f32.xlu0 %v1105
    %v1107 = vpop.xlane.xlu0 %1106
    %v1108 = vsel %vm243, %v1104, 0.0
    %1109 = vadd.xlane.f32.xlu0 %v1108
    %v1110 = vpop.xlane.xlu0 %1109
    %v1111 = vrcp.pop 32.0
    %v1112 = vmul.f32 32.0, %v1111
    %v1113 = vsub.f32 1.0, %v1112
    %v1114 = vmul.f32 %v1111, %v1113
    %v1115 = vadd.f32 %v1111, %v1114
    %vm1116 = vweird.f32 %v1111
    %v1117 = vsel %vm1116, %v1111, %v1115
    %v1118 = vmul.f32 %v1107, %v1117
    %v1119 = vmul.f32 %v1110, %v1117
    %v1120 = vsub.f32 %v1103, %v1118
    %v1121 = vsub.f32 %v1104, %v1119
    %v1122 = vmul.f32 %v1120, %v1120
    %v1123 = vmul.f32 %v1121, %v1121
    %v1124 = vsel %vm243, %v1122, 0.0
    %1125 = vadd.xlane.f32.xlu0 %v1124
    %v1126 = vpop.xlane.xlu0 %1125
    %v1127 = vsel %vm243, %v1123, 0.0
    %1128 = vadd.xlane.f32.xlu0 %v1127
    %v1129 = vpop.xlane.xlu0 %1128
    %v1130 = vmul.f32 %v1126, %v1117
    %v1131 = vmul.f32 %v1129, %v1117
    %v1132 = vadd.f32 %v1130, 1e-05
    %v1133 = vadd.f32 %v1131, 1e-05
    %v1134 = vrsqrt.pop %v1132
    %v1135 = vmul.f32 %v1134, %v1132
    %v1136 = vmul.f32 %v1135, %v1134
    %v1137 = vmul.f32 0.5, %v1136
    %v1138 = vsub.f32 1.5, %v1137
    %v1139 = vmul.f32 %v1134, %v1138
    %vm1140 = vweird.f32 %v1132
    %vm1141 = vweird.f32 %v1134
    %vm1142 = vmor %vm1140, %vm1141
    %v1143 = vsel %vm1142, %v1134, %v1139
    %v1144 = vrsqrt.pop %v1133
    %v1145 = vmul.f32 %v1144, %v1133
    %v1146 = vmul.f32 %v1145, %v1144
    %v1147 = vmul.f32 0.5, %v1146
    %v1148 = vsub.f32 1.5, %v1147
    %v1149 = vmul.f32 %v1144, %v1148
    %vm1150 = vweird.f32 %v1133
    %vm1151 = vweird.f32 %v1144
    %vm1152 = vmor %vm1150, %vm1151
    %v1153 = vsel %vm1152, %v1144, %v1149
    %v1154 = vmul.f32 %v1120, %v1143
    %v1155 = vmul.f32 %v1121, %v1153
    %v1156 = vperm.slane %v217, 0
    %v1157 = vmul.f32 %v1154, %v1156
    %v1158 = vmul.f32 %v1155, %v1156
    %v1159 = vperm.slane %v218, 0
    %v1160 = vadd.f32 %v1157, %v1159
    %v1161 = vadd.f32 %v1158, %v1159
    %v1162 = vadd.f32 %v1160, %v221
    %v1163 = vadd.f32 %v1161, %v222
    %v1164 = vld [vmem:[%s10] sm:$0xff]
    %v1165 = vld [vmem:[%s10 + $0x8] sm:$0xff]
    %v1166 = vld [vmem:[%s10 + $0x10] sm:$0xff]
    %v1167 = vld [vmem:[%s10 + $0x18] sm:$0xff]
    %v1168 = vld [vmem:[#allocation2] sm:$0x1]
    %v1170 = vperm.slane %v1168, 0
    %v1173 = vsel %vm243, %v1162, 0
    %v1176 = vsel %vm243, %v1163, 0
    %1178 = vmatpush.msra.mxu0 0.0
    %1179 = vmatpush.msra.mxu0 0.0
    %1180 = vmatpush.msra.mxu0 0.0
    %1181 = vmatpush.msra.mxu0 0.0
    %1182 = vmatpush.msra.mxu0 0.0
    %1183 = vmatpush.msra.mxu0 0.0
    %1184 = vmatpush.msra.mxu0 0.0
    %1185 = vmatpush.msra.mxu0 0.0
    %1186 = vmatpush.msra.mxu0 0.0
    %1187 = vmatpush.msra.mxu0 0.0
    %1188 = vmatpush.msra.mxu0 0.0
    %1189 = vmatpush.msra.mxu0 0.0
    %1190 = vmatpush.msra.mxu0 %v1167
    %1191 = vmatpush.msra.mxu0 %v1166
    %1192 = vmatpush.msra.mxu0 %v1165
    %1193 = vmatpush.msra.mxu0 %v1164
    %1194 = vmatmul.f32.gmra.mxu0 %v1173
    %v1195 = vpop.f32.mrf.mxu0
    %v1196 = vadd.f32 %v1170, %v1195
    %1197 = vmatmul.f32.gmra.mxu0 %v1176
    %v1198 = vpop.f32.mrf.mxu0
    %v1199 = vadd.f32 %v1170, %v1198
    %1200 = vdwg.mxu0
    %v1202 = vsel %vm423, %v1196, 0
    %v1205 = vsel %vm423, %v274, 0
    %v1208 = vsel %vm423, %v277, 0
    %1210 = vmatpush.xpose.msra.mxu0 0.0
    %1211 = vmatpush.xpose.msra.mxu0 0.0
    %1212 = vmatpush.xpose.msra.mxu0 0.0
    %1213 = vmatpush.xpose.msra.mxu0 0.0
    %1214 = vmatpush.xpose.msra.mxu0 0.0
    %1215 = vmatpush.xpose.msra.mxu0 0.0
    %1216 = vmatpush.xpose.msra.mxu0 0.0
    %1217 = vmatpush.xpose.msra.mxu0 0.0
    %1218 = vmatpush.xpose.msra.mxu0 0.0
    %1219 = vmatpush.xpose.msra.mxu0 0.0
    %1220 = vmatpush.xpose.msra.mxu0 0.0
    %1221 = vmatpush.xpose.msra.mxu0 0.0
    %1222 = vmatpush.xpose.msra.mxu0 0.0
    %1223 = vmatpush.xpose.msra.mxu0 0.0
    %1224 = vmatpush.xpose.msra.mxu0 %v1208
    %1225 = vmatpush.xpose.msra.mxu0 %v1205
    %1226 = vmatmul.f32.gmra.mxu0 %v1202
    %v1227 = vpop.f32.mrf.mxu0
    %v1228 = vadd.f32 0.0, %v1227
    %1229 = vdwg.mxu0
    %v1230 = vsel %vm743, %v1228, -inf
    %1231 = vmax.xlane.f32.xlu0 %v1230
    %v1232 = vpop.xlane.xlu0 %1231
    %v1233 = vsub.f32 %v1228, %v1232
    %v1234 = vmul.f32 %v1233, 1.442695
    %v1235 = vpow.pop %v1234
    %v1236 = vsel %vm743, %v1235, 0.0
    %1237 = vadd.xlane.f32.xlu0 %v1236
    %v1238 = vpop.xlane.xlu0 %1237
    %v1239 = vrcp.pop %v1238
    %v1240 = vmul.f32 %v1238, %v1239
    %v1241 = vsub.f32 1.0, %v1240
    %v1242 = vmul.f32 %v1239, %v1241
    %v1243 = vadd.f32 %v1239, %v1242
    %vm1244 = vweird.f32 %v1238
    %vm1245 = vweird.f32 %v1239
    %vm1246 = vmor %vm1244, %vm1245
    %v1247 = vsel %vm1246, %v1239, %v1243
    %v1248 = vand.u32 2147483647, %v1238
    %vm1249 = vcmp.eq.f32.partialorder %v1248, 8.507059e+37
    %v1250 = vand.u32 %v1238, 2147483648
    %v1251 = vor.u32 1.1754944e-38, %v1250
    %v1252 = vsel %vm1249, %v1251, %v1247
    %v1253 = vmul.f32 %v1235, %v1252
    %v1255 = vsel %vm743, %v1253, 0
    %1257 = vmatpush.msra.mxu0 0.0
    %1258 = vmatpush.msra.mxu0 0.0
    %1259 = vmatpush.msra.mxu0 0.0
    %1260 = vmatpush.msra.mxu0 0.0
    %1261 = vmatpush.msra.mxu0 0.0
    %1262 = vmatpush.msra.mxu0 0.0
    %1263 = vmatpush.msra.mxu0 0.0
    %1264 = vmatpush.msra.mxu0 0.0
    %1265 = vmatpush.msra.mxu0 0.0
    %1266 = vmatpush.msra.mxu0 0.0
    %1267 = vmatpush.msra.mxu0 0.0
    %1268 = vmatpush.msra.mxu0 0.0
    %1269 = vmatpush.msra.mxu0 0.0
    %1270 = vmatpush.msra.mxu0 0.0
    %1271 = vmatpush.msra.mxu0 %v326
    %1272 = vmatpush.msra.mxu0 %v323
    %1273 = vmatmul.f32.gmra.mxu0 %v1255
    %v1274 = vpop.f32.mrf.mxu0
    %v1275 = vadd.f32 0.0, %v1274
    %1276 = vdwg.mxu0
    %1277 = vrot.lane.b32.xlu0 %v1196, 120
    %v1278 = vpop.permute.xlu0 %1277
    %1279 = vrot.lane.b32.xlu0 %v274, 120
    %v1280 = vpop.permute.xlu0 %1279
    %1281 = vrot.lane.b32.xlu0 %v277, 120
    %v1282 = vpop.permute.xlu0 %1281
    %v1283 = vsel %vm423, %v1278, 0
    %v1285 = vsel %vm423, %v1280, 0
    %v1287 = vsel %vm423, %v1282, 0
    %1289 = vmatpush.xpose.msra.mxu0 0.0
    %1290 = vmatpush.xpose.msra.mxu0 0.0
    %1291 = vmatpush.xpose.msra.mxu0 0.0
    %1292 = vmatpush.xpose.msra.mxu0 0.0
    %1293 = vmatpush.xpose.msra.mxu0 0.0
    %1294 = vmatpush.xpose.msra.mxu0 0.0
    %1295 = vmatpush.xpose.msra.mxu0 0.0
    %1296 = vmatpush.xpose.msra.mxu0 0.0
    %1297 = vmatpush.xpose.msra.mxu0 0.0
    %1298 = vmatpush.xpose.msra.mxu0 0.0
    %1299 = vmatpush.xpose.msra.mxu0 0.0
    %1300 = vmatpush.xpose.msra.mxu0 0.0
    %1301 = vmatpush.xpose.msra.mxu0 0.0
    %1302 = vmatpush.xpose.msra.mxu0 0.0
    %1303 = vmatpush.xpose.msra.mxu0 %v1287
    %1304 = vmatpush.xpose.msra.mxu0 %v1285
    %1305 = vmatmul.f32.gmra.mxu0 %v1283
    %v1306 = vpop.f32.mrf.mxu0
    %v1307 = vadd.f32 0.0, %v1306
    %1308 = vdwg.mxu0
    %v1309 = vsel %vm743, %v1307, -inf
    %1310 = vmax.xlane.f32.xlu0 %v1309
    %v1311 = vpop.xlane.xlu0 %1310
    %v1312 = vsub.f32 %v1307, %v1311
    %v1313 = vmul.f32 %v1312, 1.442695
    %v1314 = vpow.pop %v1313
    %v1315 = vsel %vm743, %v1314, 0.0
    %1316 = vadd.xlane.f32.xlu0 %v1315
    %v1317 = vpop.xlane.xlu0 %1316
    %v1318 = vrcp.pop %v1317
    %v1319 = vmul.f32 %v1317, %v1318
    %v1320 = vsub.f32 1.0, %v1319
    %v1321 = vmul.f32 %v1318, %v1320
    %v1322 = vadd.f32 %v1318, %v1321
    %vm1323 = vweird.f32 %v1317
    %vm1324 = vweird.f32 %v1318
    %vm1325 = vmor %vm1323, %vm1324
    %v1326 = vsel %vm1325, %v1318, %v1322
    %v1327 = vand.u32 2147483647, %v1317
    %vm1328 = vcmp.eq.f32.partialorder %v1327, 8.507059e+37
    %v1329 = vand.u32 %v1317, 2147483648
    %v1330 = vor.u32 1.1754944e-38, %v1329
    %v1331 = vsel %vm1328, %v1330, %v1326
    %v1332 = vmul.f32 %v1314, %v1331
    %1335 = vrot.lane.b32.xlu0 %v323, 120
    %v1336 = vpop.permute.xlu0 %1335
    %1337 = vrot.lane.b32.xlu0 %v326, 120
    %v1338 = vpop.permute.xlu0 %1337
    %v1342 = vsel %vm743, %v1332, 0
    %1344 = vmatpush.msra.mxu0 0.0
    %1345 = vmatpush.msra.mxu0 0.0
    %1346 = vmatpush.msra.mxu0 0.0
    %1347 = vmatpush.msra.mxu0 0.0
    %1348 = vmatpush.msra.mxu0 0.0
    %1349 = vmatpush.msra.mxu0 0.0
    %1350 = vmatpush.msra.mxu0 0.0
    %1351 = vmatpush.msra.mxu0 0.0
    %1352 = vmatpush.msra.mxu0 0.0
    %1353 = vmatpush.msra.mxu0 0.0
    %1354 = vmatpush.msra.mxu0 0.0
    %1355 = vmatpush.msra.mxu0 0.0
    %1356 = vmatpush.msra.mxu0 0.0
    %1357 = vmatpush.msra.mxu0 0.0
    %1358 = vmatpush.msra.mxu0 %v1338
    %1359 = vmatpush.msra.mxu0 %v1336
    %1360 = vmatmul.f32.gmra.mxu0 %v1342
    %v1361 = vpop.f32.mrf.mxu0
    %v1362 = vadd.f32 0.0, %v1361
    %1363 = vdwg.mxu0
    %1364 = vrot.lane.b32.xlu0 %v1196, 112
    %v1365 = vpop.permute.xlu0 %1364
    %1366 = vrot.lane.b32.xlu0 %v274, 112
    %v1367 = vpop.permute.xlu0 %1366
    %1368 = vrot.lane.b32.xlu0 %v277, 112
    %v1369 = vpop.permute.xlu0 %1368
    %v1370 = vsel %vm423, %v1365, 0
    %v1372 = vsel %vm423, %v1367, 0
    %v1374 = vsel %vm423, %v1369, 0
    %1376 = vmatpush.xpose.msra.mxu0 0.0
    %1377 = vmatpush.xpose.msra.mxu0 0.0
    %1378 = vmatpush.xpose.msra.mxu0 0.0
    %1379 = vmatpush.xpose.msra.mxu0 0.0
    %1380 = vmatpush.xpose.msra.mxu0 0.0
    %1381 = vmatpush.xpose.msra.mxu0 0.0
    %1382 = vmatpush.xpose.msra.mxu0 0.0
    %1383 = vmatpush.xpose.msra.mxu0 0.0
    %1384 = vmatpush.xpose.msra.mxu0 0.0
    %1385 = vmatpush.xpose.msra.mxu0 0.0
    %1386 = vmatpush.xpose.msra.mxu0 0.0
    %1387 = vmatpush.xpose.msra.mxu0 0.0
    %1388 = vmatpush.xpose.msra.mxu0 0.0
    %1389 = vmatpush.xpose.msra.mxu0 0.0
    %1390 = vmatpush.xpose.msra.mxu0 %v1374
    %1391 = vmatpush.xpose.msra.mxu0 %v1372
    %1392 = vmatmul.f32.gmra.mxu0 %v1370
    %v1393 = vpop.f32.mrf.mxu0
    %v1394 = vadd.f32 0.0, %v1393
    %1395 = vdwg.mxu0
    %v1396 = vsel %vm743, %v1394, -inf
    %1397 = vmax.xlane.f32.xlu0 %v1396
    %v1398 = vpop.xlane.xlu0 %1397
    %v1399 = vsub.f32 %v1394, %v1398
    %v1400 = vmul.f32 %v1399, 1.442695
    %v1401 = vpow.pop %v1400
    %v1402 = vsel %vm743, %v1401, 0.0
    %1403 = vadd.xlane.f32.xlu0 %v1402
    %v1404 = vpop.xlane.xlu0 %1403
    %v1405 = vrcp.pop %v1404
    %v1406 = vmul.f32 %v1404, %v1405
    %v1407 = vsub.f32 1.0, %v1406
    %v1408 = vmul.f32 %v1405, %v1407
    %v1409 = vadd.f32 %v1405, %v1408
    %vm1410 = vweird.f32 %v1404
    %vm1411 = vweird.f32 %v1405
    %vm1412 = vmor %vm1410, %vm1411
    %v1413 = vsel %vm1412, %v1405, %v1409
    %v1414 = vand.u32 2147483647, %v1404
    %vm1415 = vcmp.eq.f32.partialorder %v1414, 8.507059e+37
    %v1416 = vand.u32 %v1404, 2147483648
    %v1417 = vor.u32 1.1754944e-38, %v1416
    %v1418 = vsel %vm1415, %v1417, %v1413
    %v1419 = vmul.f32 %v1401, %v1418
    %1420 = vrot.lane.b32.xlu0 %v323, 112
    %v1421 = vpop.permute.xlu0 %1420
    %1422 = vrot.lane.b32.xlu0 %v326, 112
    %v1423 = vpop.permute.xlu0 %1422
    %v1427 = vsel %vm743, %v1419, 0
    %1429 = vmatpush.msra.mxu0 0.0
    %1430 = vmatpush.msra.mxu0 0.0
    %1431 = vmatpush.msra.mxu0 0.0
    %1432 = vmatpush.msra.mxu0 0.0
    %1433 = vmatpush.msra.mxu0 0.0
    %1434 = vmatpush.msra.mxu0 0.0
    %1435 = vmatpush.msra.mxu0 0.0
    %1436 = vmatpush.msra.mxu0 0.0
    %1437 = vmatpush.msra.mxu0 0.0
    %1438 = vmatpush.msra.mxu0 0.0
    %1439 = vmatpush.msra.mxu0 0.0
    %1440 = vmatpush.msra.mxu0 0.0
    %1441 = vmatpush.msra.mxu0 0.0
    %1442 = vmatpush.msra.mxu0 0.0
    %1443 = vmatpush.msra.mxu0 %v1423
    %1444 = vmatpush.msra.mxu0 %v1421
    %1445 = vmatmul.f32.gmra.mxu0 %v1427
    %v1446 = vpop.f32.mrf.mxu0
    %v1447 = vadd.f32 0.0, %v1446
    %1448 = vdwg.mxu0
    %1449 = vrot.lane.b32.xlu0 %v1196, 104
    %v1450 = vpop.permute.xlu0 %1449
    %1451 = vrot.lane.b32.xlu0 %v274, 104
    %v1452 = vpop.permute.xlu0 %1451
    %1453 = vrot.lane.b32.xlu0 %v277, 104
    %v1454 = vpop.permute.xlu0 %1453
    %v1455 = vsel %vm423, %v1450, 0
    %v1457 = vsel %vm423, %v1452, 0
    %v1459 = vsel %vm423, %v1454, 0
    %1461 = vmatpush.xpose.msra.mxu0 0.0
    %1462 = vmatpush.xpose.msra.mxu0 0.0
    %1463 = vmatpush.xpose.msra.mxu0 0.0
    %1464 = vmatpush.xpose.msra.mxu0 0.0
    %1465 = vmatpush.xpose.msra.mxu0 0.0
    %1466 = vmatpush.xpose.msra.mxu0 0.0
    %1467 = vmatpush.xpose.msra.mxu0 0.0
    %1468 = vmatpush.xpose.msra.mxu0 0.0
    %1469 = vmatpush.xpose.msra.mxu0 0.0
    %1470 = vmatpush.xpose.msra.mxu0 0.0
    %1471 = vmatpush.xpose.msra.mxu0 0.0
    %1472 = vmatpush.xpose.msra.mxu0 0.0
    %1473 = vmatpush.xpose.msra.mxu0 0.0
    %1474 = vmatpush.xpose.msra.mxu0 0.0
    %1475 = vmatpush.xpose.msra.mxu0 %v1459
    %1476 = vmatpush.xpose.msra.mxu0 %v1457
    %1477 = vmatmul.f32.gmra.mxu0 %v1455
    %v1478 = vpop.f32.mrf.mxu0
    %v1479 = vadd.f32 0.0, %v1478
    %1480 = vdwg.mxu0
    %v1481 = vsel %vm743, %v1479, -inf
    %1482 = vmax.xlane.f32.xlu0 %v1481
    %v1483 = vpop.xlane.xlu0 %1482
    %v1484 = vsub.f32 %v1479, %v1483
    %v1485 = vmul.f32 %v1484, 1.442695
    %v1486 = vpow.pop %v1485
    %v1487 = vsel %vm743, %v1486, 0.0
    %1488 = vadd.xlane.f32.xlu0 %v1487
    %v1489 = vpop.xlane.xlu0 %1488
    %v1490 = vrcp.pop %v1489
    %v1491 = vmul.f32 %v1489, %v1490
    %v1492 = vsub.f32 1.0, %v1491
    %v1493 = vmul.f32 %v1490, %v1492
    %v1494 = vadd.f32 %v1490, %v1493
    %vm1495 = vweird.f32 %v1489
    %vm1496 = vweird.f32 %v1490
    %vm1497 = vmor %vm1495, %vm1496
    %v1498 = vsel %vm1497, %v1490, %v1494
    %v1499 = vand.u32 2147483647, %v1489
    %vm1500 = vcmp.eq.f32.partialorder %v1499, 8.507059e+37
    %v1501 = vand.u32 %v1489, 2147483648
    %v1502 = vor.u32 1.1754944e-38, %v1501
    %v1503 = vsel %vm1500, %v1502, %v1498
    %v1504 = vmul.f32 %v1486, %v1503
    %1505 = vrot.lane.b32.xlu0 %v323, 104
    %v1506 = vpop.permute.xlu0 %1505
    %1507 = vrot.lane.b32.xlu0 %v326, 104
    %v1508 = vpop.permute.xlu0 %1507
    %v1512 = vsel %vm743, %v1504, 0
    %1514 = vmatpush.msra.mxu0 0.0
    %1515 = vmatpush.msra.mxu0 0.0
    %1516 = vmatpush.msra.mxu0 0.0
    %1517 = vmatpush.msra.mxu0 0.0
    %1518 = vmatpush.msra.mxu0 0.0
    %1519 = vmatpush.msra.mxu0 0.0
    %1520 = vmatpush.msra.mxu0 0.0
    %1521 = vmatpush.msra.mxu0 0.0
    %1522 = vmatpush.msra.mxu0 0.0
    %1523 = vmatpush.msra.mxu0 0.0
    %1524 = vmatpush.msra.mxu0 0.0
    %1525 = vmatpush.msra.mxu0 0.0
    %1526 = vmatpush.msra.mxu0 0.0
    %1527 = vmatpush.msra.mxu0 0.0
    %1528 = vmatpush.msra.mxu0 %v1508
    %1529 = vmatpush.msra.mxu0 %v1506
    %1530 = vmatmul.f32.gmra.mxu0 %v1512
    %v1531 = vpop.f32.mrf.mxu0
    %v1532 = vadd.f32 0.0, %v1531
    %1533 = vdwg.mxu0
    %1535 = vrot.lane.b32.xlu0 %v1362, 8
    %v1536 = vpop.permute.xlu0 %1535
    %1539 = vrot.lane.b32.xlu0 %v1447, 16
    %v1540 = vpop.permute.xlu0 %1539
    %1543 = vrot.lane.b32.xlu0 %v1532, 24
    %v1544 = vpop.permute.xlu0 %1543
    %v1546 = vsel %vm423, %v1275, %v1536
    %v1547 = vsel %vm743, %v1546, %v1540
    %v1548 = vsel %vm745, %v1547, %v1544
    %v1550 = vsel %vm423, %v1199, 0
    %v1553 = vsel %vm423, %v280, 0
    %v1556 = vsel %vm423, %v283, 0
    %1558 = vmatpush.xpose.msra.mxu0 0.0
    %1559 = vmatpush.xpose.msra.mxu0 0.0
    %1560 = vmatpush.xpose.msra.mxu0 0.0
    %1561 = vmatpush.xpose.msra.mxu0 0.0
    %1562 = vmatpush.xpose.msra.mxu0 0.0
    %1563 = vmatpush.xpose.msra.mxu0 0.0
    %1564 = vmatpush.xpose.msra.mxu0 0.0
    %1565 = vmatpush.xpose.msra.mxu0 0.0
    %1566 = vmatpush.xpose.msra.mxu0 0.0
    %1567 = vmatpush.xpose.msra.mxu0 0.0
    %1568 = vmatpush.xpose.msra.mxu0 0.0
    %1569 = vmatpush.xpose.msra.mxu0 0.0
    %1570 = vmatpush.xpose.msra.mxu0 0.0
    %1571 = vmatpush.xpose.msra.mxu0 0.0
    %1572 = vmatpush.xpose.msra.mxu0 %v1556
    %1573 = vmatpush.xpose.msra.mxu0 %v1553
    %1574 = vmatmul.f32.gmra.mxu0 %v1550
    %v1575 = vpop.f32.mrf.mxu0
    %v1576 = vadd.f32 0.0, %v1575
    %1577 = vdwg.mxu0
    %v1578 = vsel %vm743, %v1576, -inf
    %1579 = vmax.xlane.f32.xlu0 %v1578
    %v1580 = vpop.xlane.xlu0 %1579
    %v1581 = vsub.f32 %v1576, %v1580
    %v1582 = vmul.f32 %v1581, 1.442695
    %v1583 = vpow.pop %v1582
    %v1584 = vsel %vm743, %v1583, 0.0
    %1585 = vadd.xlane.f32.xlu0 %v1584
    %v1586 = vpop.xlane.xlu0 %1585
    %v1587 = vrcp.pop %v1586
    %v1588 = vmul.f32 %v1586, %v1587
    %v1589 = vsub.f32 1.0, %v1588
    %v1590 = vmul.f32 %v1587, %v1589
    %v1591 = vadd.f32 %v1587, %v1590
    %vm1592 = vweird.f32 %v1586
    %vm1593 = vweird.f32 %v1587
    %vm1594 = vmor %vm1592, %vm1593
    %v1595 = vsel %vm1594, %v1587, %v1591
    %v1596 = vand.u32 2147483647, %v1586
    %vm1597 = vcmp.eq.f32.partialorder %v1596, 8.507059e+37
    %v1598 = vand.u32 %v1586, 2147483648
    %v1599 = vor.u32 1.1754944e-38, %v1598
    %v1600 = vsel %vm1597, %v1599, %v1595
    %v1601 = vmul.f32 %v1583, %v1600
    %v1603 = vsel %vm743, %v1601, 0
    %1605 = vmatpush.msra.mxu0 0.0
    %1606 = vmatpush.msra.mxu0 0.0
    %1607 = vmatpush.msra.mxu0 0.0
    %1608 = vmatpush.msra.mxu0 0.0
    %1609 = vmatpush.msra.mxu0 0.0
    %1610 = vmatpush.msra.mxu0 0.0
    %1611 = vmatpush.msra.mxu0 0.0
    %1612 = vmatpush.msra.mxu0 0.0
    %1613 = vmatpush.msra.mxu0 0.0
    %1614 = vmatpush.msra.mxu0 0.0
    %1615 = vmatpush.msra.mxu0 0.0
    %1616 = vmatpush.msra.mxu0 0.0
    %1617 = vmatpush.msra.mxu0 0.0
    %1618 = vmatpush.msra.mxu0 0.0
    %1619 = vmatpush.msra.mxu0 %v332
    %1620 = vmatpush.msra.mxu0 %v329
    %1621 = vmatmul.f32.gmra.mxu0 %v1603
    %v1622 = vpop.f32.mrf.mxu0
    %v1623 = vadd.f32 0.0, %v1622
    %1624 = vdwg.mxu0
    %1625 = vrot.lane.b32.xlu0 %v1199, 120
    %v1626 = vpop.permute.xlu0 %1625
    %1627 = vrot.lane.b32.xlu0 %v280, 120
    %v1628 = vpop.permute.xlu0 %1627
    %1629 = vrot.lane.b32.xlu0 %v283, 120
    %v1630 = vpop.permute.xlu0 %1629
    %v1631 = vsel %vm423, %v1626, 0
    %v1633 = vsel %vm423, %v1628, 0
    %v1635 = vsel %vm423, %v1630, 0
    %1637 = vmatpush.xpose.msra.mxu0 0.0
    %1638 = vmatpush.xpose.msra.mxu0 0.0
    %1639 = vmatpush.xpose.msra.mxu0 0.0
    %1640 = vmatpush.xpose.msra.mxu0 0.0
    %1641 = vmatpush.xpose.msra.mxu0 0.0
    %1642 = vmatpush.xpose.msra.mxu0 0.0
    %1643 = vmatpush.xpose.msra.mxu0 0.0
    %1644 = vmatpush.xpose.msra.mxu0 0.0
    %1645 = vmatpush.xpose.msra.mxu0 0.0
    %1646 = vmatpush.xpose.msra.mxu0 0.0
    %1647 = vmatpush.xpose.msra.mxu0 0.0
    %1648 = vmatpush.xpose.msra.mxu0 0.0
    %1649 = vmatpush.xpose.msra.mxu0 0.0
    %1650 = vmatpush.xpose.msra.mxu0 0.0
    %1651 = vmatpush.xpose.msra.mxu0 %v1635
    %1652 = vmatpush.xpose.msra.mxu0 %v1633
    %1653 = vmatmul.f32.gmra.mxu0 %v1631
    %v1654 = vpop.f32.mrf.mxu0
    %v1655 = vadd.f32 0.0, %v1654
    %1656 = vdwg.mxu0
    %v1657 = vsel %vm743, %v1655, -inf
    %1658 = vmax.xlane.f32.xlu0 %v1657
    %v1659 = vpop.xlane.xlu0 %1658
    %v1660 = vsub.f32 %v1655, %v1659
    %v1661 = vmul.f32 %v1660, 1.442695
    %v1662 = vpow.pop %v1661
    %v1663 = vsel %vm743, %v1662, 0.0
    %1664 = vadd.xlane.f32.xlu0 %v1663
    %v1665 = vpop.xlane.xlu0 %1664
    %v1666 = vrcp.pop %v1665
    %v1667 = vmul.f32 %v1665, %v1666
    %v1668 = vsub.f32 1.0, %v1667
    %v1669 = vmul.f32 %v1666, %v1668
    %v1670 = vadd.f32 %v1666, %v1669
    %vm1671 = vweird.f32 %v1665
    %vm1672 = vweird.f32 %v1666
    %vm1673 = vmor %vm1671, %vm1672
    %v1674 = vsel %vm1673, %v1666, %v1670
    %v1675 = vand.u32 2147483647, %v1665
    %vm1676 = vcmp.eq.f32.partialorder %v1675, 8.507059e+37
    %v1677 = vand.u32 %v1665, 2147483648
    %v1678 = vor.u32 1.1754944e-38, %v1677
    %v1679 = vsel %vm1676, %v1678, %v1674
    %v1680 = vmul.f32 %v1662, %v1679
    %1683 = vrot.lane.b32.xlu0 %v329, 120
    %v1684 = vpop.permute.xlu0 %1683
    %1685 = vrot.lane.b32.xlu0 %v332, 120
    %v1686 = vpop.permute.xlu0 %1685
    %v1690 = vsel %vm743, %v1680, 0
    %1692 = vmatpush.msra.mxu0 0.0
    %1693 = vmatpush.msra.mxu0 0.0
    %1694 = vmatpush.msra.mxu0 0.0
    %1695 = vmatpush.msra.mxu0 0.0
    %1696 = vmatpush.msra.mxu0 0.0
    %1697 = vmatpush.msra.mxu0 0.0
    %1698 = vmatpush.msra.mxu0 0.0
    %1699 = vmatpush.msra.mxu0 0.0
    %1700 = vmatpush.msra.mxu0 0.0
    %1701 = vmatpush.msra.mxu0 0.0
    %1702 = vmatpush.msra.mxu0 0.0
    %1703 = vmatpush.msra.mxu0 0.0
    %1704 = vmatpush.msra.mxu0 0.0
    %1705 = vmatpush.msra.mxu0 0.0
    %1706 = vmatpush.msra.mxu0 %v1686
    %1707 = vmatpush.msra.mxu0 %v1684
    %1708 = vmatmul.f32.gmra.mxu0 %v1690
    %v1709 = vpop.f32.mrf.mxu0
    %v1710 = vadd.f32 0.0, %v1709
    %1711 = vdwg.mxu0
    %1712 = vrot.lane.b32.xlu0 %v1199, 112
    %v1713 = vpop.permute.xlu0 %1712
    %1714 = vrot.lane.b32.xlu0 %v280, 112
    %v1715 = vpop.permute.xlu0 %1714
    %1716 = vrot.lane.b32.xlu0 %v283, 112
    %v1717 = vpop.permute.xlu0 %1716
    %v1718 = vsel %vm423, %v1713, 0
    %v1720 = vsel %vm423, %v1715, 0
    %v1722 = vsel %vm423, %v1717, 0
    %1724 = vmatpush.xpose.msra.mxu0 0.0
    %1725 = vmatpush.xpose.msra.mxu0 0.0
    %1726 = vmatpush.xpose.msra.mxu0 0.0
    %1727 = vmatpush.xpose.msra.mxu0 0.0
    %1728 = vmatpush.xpose.msra.mxu0 0.0
    %1729 = vmatpush.xpose.msra.mxu0 0.0
    %1730 = vmatpush.xpose.msra.mxu0 0.0
    %1731 = vmatpush.xpose.msra.mxu0 0.0
    %1732 = vmatpush.xpose.msra.mxu0 0.0
    %1733 = vmatpush.xpose.msra.mxu0 0.0
    %1734 = vmatpush.xpose.msra.mxu0 0.0
    %1735 = vmatpush.xpose.msra.mxu0 0.0
    %1736 = vmatpush.xpose.msra.mxu0 0.0
    %1737 = vmatpush.xpose.msra.mxu0 0.0
    %1738 = vmatpush.xpose.msra.mxu0 %v1722
    %1739 = vmatpush.xpose.msra.mxu0 %v1720
    %1740 = vmatmul.f32.gmra.mxu0 %v1718
    %v1741 = vpop.f32.mrf.mxu0
    %v1742 = vadd.f32 0.0, %v1741
    %1743 = vdwg.mxu0
    %v1744 = vsel %vm743, %v1742, -inf
    %1745 = vmax.xlane.f32.xlu0 %v1744
    %v1746 = vpop.xlane.xlu0 %1745
    %v1747 = vsub.f32 %v1742, %v1746
    %v1748 = vmul.f32 %v1747, 1.442695
    %v1749 = vpow.pop %v1748
    %v1750 = vsel %vm743, %v1749, 0.0
    %1751 = vadd.xlane.f32.xlu0 %v1750
    %v1752 = vpop.xlane.xlu0 %1751
    %v1753 = vrcp.pop %v1752
    %v1754 = vmul.f32 %v1752, %v1753
    %v1755 = vsub.f32 1.0, %v1754
    %v1756 = vmul.f32 %v1753, %v1755
    %v1757 = vadd.f32 %v1753, %v1756
    %vm1758 = vweird.f32 %v1752
    %vm1759 = vweird.f32 %v1753
    %vm1760 = vmor %vm1758, %vm1759
    %v1761 = vsel %vm1760, %v1753, %v1757
    %v1762 = vand.u32 2147483647, %v1752
    %vm1763 = vcmp.eq.f32.partialorder %v1762, 8.507059e+37
    %v1764 = vand.u32 %v1752, 2147483648
    %v1765 = vor.u32 1.1754944e-38, %v1764
    %v1766 = vsel %vm1763, %v1765, %v1761
    %v1767 = vmul.f32 %v1749, %v1766
    %1768 = vrot.lane.b32.xlu0 %v329, 112
    %v1769 = vpop.permute.xlu0 %1768
    %1770 = vrot.lane.b32.xlu0 %v332, 112
    %v1771 = vpop.permute.xlu0 %1770
    %v1775 = vsel %vm743, %v1767, 0
    %1777 = vmatpush.msra.mxu0 0.0
    %1778 = vmatpush.msra.mxu0 0.0
    %1779 = vmatpush.msra.mxu0 0.0
    %1780 = vmatpush.msra.mxu0 0.0
    %1781 = vmatpush.msra.mxu0 0.0
    %1782 = vmatpush.msra.mxu0 0.0
    %1783 = vmatpush.msra.mxu0 0.0
    %1784 = vmatpush.msra.mxu0 0.0
    %1785 = vmatpush.msra.mxu0 0.0
    %1786 = vmatpush.msra.mxu0 0.0
    %1787 = vmatpush.msra.mxu0 0.0
    %1788 = vmatpush.msra.mxu0 0.0
    %1789 = vmatpush.msra.mxu0 0.0
    %1790 = vmatpush.msra.mxu0 0.0
    %1791 = vmatpush.msra.mxu0 %v1771
    %1792 = vmatpush.msra.mxu0 %v1769
    %1793 = vmatmul.f32.gmra.mxu0 %v1775
    %v1794 = vpop.f32.mrf.mxu0
    %v1795 = vadd.f32 0.0, %v1794
    %1796 = vdwg.mxu0
    %1797 = vrot.lane.b32.xlu0 %v1199, 104
    %v1798 = vpop.permute.xlu0 %1797
    %1799 = vrot.lane.b32.xlu0 %v280, 104
    %v1800 = vpop.permute.xlu0 %1799
    %1801 = vrot.lane.b32.xlu0 %v283, 104
    %v1802 = vpop.permute.xlu0 %1801
    %v1803 = vsel %vm423, %v1798, 0
    %v1805 = vsel %vm423, %v1800, 0
    %v1807 = vsel %vm423, %v1802, 0
    %1809 = vmatpush.xpose.msra.mxu0 0.0
    %1810 = vmatpush.xpose.msra.mxu0 0.0
    %1811 = vmatpush.xpose.msra.mxu0 0.0
    %1812 = vmatpush.xpose.msra.mxu0 0.0
    %1813 = vmatpush.xpose.msra.mxu0 0.0
    %1814 = vmatpush.xpose.msra.mxu0 0.0
    %1815 = vmatpush.xpose.msra.mxu0 0.0
    %1816 = vmatpush.xpose.msra.mxu0 0.0
    %1817 = vmatpush.xpose.msra.mxu0 0.0
    %1818 = vmatpush.xpose.msra.mxu0 0.0
    %1819 = vmatpush.xpose.msra.mxu0 0.0
    %1820 = vmatpush.xpose.msra.mxu0 0.0
    %1821 = vmatpush.xpose.msra.mxu0 0.0
    %1822 = vmatpush.xpose.msra.mxu0 0.0
    %1823 = vmatpush.xpose.msra.mxu0 %v1807
    %1824 = vmatpush.xpose.msra.mxu0 %v1805
    %1825 = vmatmul.f32.gmra.mxu0 %v1803
    %v1826 = vpop.f32.mrf.mxu0
    %v1827 = vadd.f32 0.0, %v1826
    %1828 = vdwg.mxu0
    %v1829 = vsel %vm743, %v1827, -inf
    %1830 = vmax.xlane.f32.xlu0 %v1829
    %v1831 = vpop.xlane.xlu0 %1830
    %v1832 = vsub.f32 %v1827, %v1831
    %v1833 = vmul.f32 %v1832, 1.442695
    %v1834 = vpow.pop %v1833
    %v1835 = vsel %vm743, %v1834, 0.0
    %1836 = vadd.xlane.f32.xlu0 %v1835
    %v1837 = vpop.xlane.xlu0 %1836
    %v1838 = vrcp.pop %v1837
    %v1839 = vmul.f32 %v1837, %v1838
    %v1840 = vsub.f32 1.0, %v1839
    %v1841 = vmul.f32 %v1838, %v1840
    %v1842 = vadd.f32 %v1838, %v1841
    %vm1843 = vweird.f32 %v1837
    %vm1844 = vweird.f32 %v1838
    %vm1845 = vmor %vm1843, %vm1844
    %v1846 = vsel %vm1845, %v1838, %v1842
    %v1847 = vand.u32 2147483647, %v1837
    %vm1848 = vcmp.eq.f32.partialorder %v1847, 8.507059e+37
    %v1849 = vand.u32 %v1837, 2147483648
    %v1850 = vor.u32 1.1754944e-38, %v1849
    %v1851 = vsel %vm1848, %v1850, %v1846
    %v1852 = vmul.f32 %v1834, %v1851
    %1853 = vrot.lane.b32.xlu0 %v329, 104
    %v1854 = vpop.permute.xlu0 %1853
    %1855 = vrot.lane.b32.xlu0 %v332, 104
    %v1856 = vpop.permute.xlu0 %1855
    %v1860 = vsel %vm743, %v1852, 0
    %1862 = vmatpush.msra.mxu0 0.0
    %1863 = vmatpush.msra.mxu0 0.0
    %1864 = vmatpush.msra.mxu0 0.0
    %1865 = vmatpush.msra.mxu0 0.0
    %1866 = vmatpush.msra.mxu0 0.0
    %1867 = vmatpush.msra.mxu0 0.0
    %1868 = vmatpush.msra.mxu0 0.0
    %1869 = vmatpush.msra.mxu0 0.0
    %1870 = vmatpush.msra.mxu0 0.0
    %1871 = vmatpush.msra.mxu0 0.0
    %1872 = vmatpush.msra.mxu0 0.0
    %1873 = vmatpush.msra.mxu0 0.0
    %1874 = vmatpush.msra.mxu0 0.0
    %1875 = vmatpush.msra.mxu0 0.0
    %1876 = vmatpush.msra.mxu0 %v1856
    %1877 = vmatpush.msra.mxu0 %v1854
    %1878 = vmatmul.f32.gmra.mxu0 %v1860
    %v1879 = vpop.f32.mrf.mxu0
    %v1880 = vadd.f32 0.0, %v1879
    %1881 = vdwg.mxu0
    %1883 = vrot.lane.b32.xlu0 %v1710, 8
    %v1884 = vpop.permute.xlu0 %1883
    %1887 = vrot.lane.b32.xlu0 %v1795, 16
    %v1888 = vpop.permute.xlu0 %1887
    %1891 = vrot.lane.b32.xlu0 %v1880, 24
    %v1892 = vpop.permute.xlu0 %1891
    %v1894 = vsel %vm423, %v1623, %v1884
    %v1895 = vsel %vm743, %v1894, %v1888
    %v1896 = vsel %vm745, %v1895, %v1892
    %v1898 = vperm.slane %v343, 0
    %v1901 = vsel %vm243, %v1548, 0
    %v1904 = vsel %vm243, %v1896, 0
    %1906 = vmatpush.msra.mxu0 0.0
    %1907 = vmatpush.msra.mxu0 0.0
    %1908 = vmatpush.msra.mxu0 0.0
    %1909 = vmatpush.msra.mxu0 0.0
    %1910 = vmatpush.msra.mxu0 0.0
    %1911 = vmatpush.msra.mxu0 0.0
    %1912 = vmatpush.msra.mxu0 0.0
    %1913 = vmatpush.msra.mxu0 0.0
    %1914 = vmatpush.msra.mxu0 0.0
    %1915 = vmatpush.msra.mxu0 0.0
    %1916 = vmatpush.msra.mxu0 0.0
    %1917 = vmatpush.msra.mxu0 0.0
    %1918 = vmatpush.msra.mxu0 %v342
    %1919 = vmatpush.msra.mxu0 %v341
    %1920 = vmatpush.msra.mxu0 %v340
    %1921 = vmatpush.msra.mxu0 %v339
    %1922 = vmatmul.f32.gmra.mxu0 %v1901
    %v1923 = vpop.f32.mrf.mxu0
    %v1924 = vadd.f32 %v1898, %v1923
    %1925 = vmatmul.f32.gmra.mxu0 %v1904
    %v1926 = vpop.f32.mrf.mxu0
    %v1927 = vadd.f32 %v1898, %v1926
    %1928 = vdwg.mxu0
    %v1929 = vadd.f32 %v1160, %v1924
    %v1930 = vadd.f32 %v1161, %v1927
    %v1931 = vsel %vm243, %v1929, 0.0
    %1932 = vadd.xlane.f32.xlu0 %v1931
    %v1933 = vpop.xlane.xlu0 %1932
    %v1934 = vsel %vm243, %v1930, 0.0
    %1935 = vadd.xlane.f32.xlu0 %v1934
    %v1936 = vpop.xlane.xlu0 %1935
    %v1937 = vmul.f32 %v1933, %v1117
    %v1938 = vmul.f32 %v1936, %v1117
    %v1939 = vsub.f32 %v1929, %v1937
    %v1940 = vsub.f32 %v1930, %v1938
    %v1941 = vmul.f32 %v1939, %v1939
    %v1942 = vmul.f32 %v1940, %v1940
    %v1943 = vsel %vm243, %v1941, 0.0
    %1944 = vadd.xlane.f32.xlu0 %v1943
    %v1945 = vpop.xlane.xlu0 %1944
    %v1946 = vsel %vm243, %v1942, 0.0
    %1947 = vadd.xlane.f32.xlu0 %v1946
    %v1948 = vpop.xlane.xlu0 %1947
    %v1949 = vmul.f32 %v1945, %v1117
    %v1950 = vmul.f32 %v1948, %v1117
    %v1951 = vadd.f32 %v1949, 1e-05
    %v1952 = vadd.f32 %v1950, 1e-05
    %v1953 = vrsqrt.pop %v1951
    %v1954 = vmul.f32 %v1953, %v1951
    %v1955 = vmul.f32 %v1954, %v1953
    %v1956 = vmul.f32 0.5, %v1955
    %v1957 = vsub.f32 1.5, %v1956
    %v1958 = vmul.f32 %v1953, %v1957
    %vm1959 = vweird.f32 %v1951
    %vm1960 = vweird.f32 %v1953
    %vm1961 = vmor %vm1959, %vm1960
    %v1962 = vsel %vm1961, %v1953, %v1958
    %v1963 = vrsqrt.pop %v1952
    %v1964 = vmul.f32 %v1963, %v1952
    %v1965 = vmul.f32 %v1964, %v1963
    %v1966 = vmul.f32 0.5, %v1965
    %v1967 = vsub.f32 1.5, %v1966
    %v1968 = vmul.f32 %v1963, %v1967
    %vm1969 = vweird.f32 %v1952
    %vm1970 = vweird.f32 %v1963
    %vm1971 = vmor %vm1969, %vm1970
    %v1972 = vsel %vm1971, %v1963, %v1968
    %v1973 = vmul.f32 %v1939, %v1962
    %v1974 = vmul.f32 %v1940, %v1972
    %v1975 = vperm.slane %v217, 1
    %v1976 = vmul.f32 %v1973, %v1975
    %v1977 = vmul.f32 %v1974, %v1975
    %v1978 = vperm.slane %v218, 1
    %v1979 = vadd.f32 %v1976, %v1978
    %v1980 = vadd.f32 %v1977, %v1978
    %v1981 = vld [vmem:[#allocation10] sm:$0xff]
    %v1982 = vld [vmem:[#allocation10 + $0x8] sm:$0xff]
    %v1983 = vld [vmem:[#allocation10 + $0x10] sm:$0xff]
    %v1984 = vld [vmem:[#allocation10 + $0x18] sm:$0xff]
    %v1985 = vld [vmem:[#allocation12] sm:$0x1]
    %v1987 = vperm.slane %v1985, 0
    %v1990 = vsel %vm243, %v1979, 0
    %v1993 = vsel %vm243, %v1980, 0
    %1995 = vmatpush.msra.mxu0 0.0
    %1996 = vmatpush.msra.mxu0 0.0
    %1997 = vmatpush.msra.mxu0 0.0
    %1998 = vmatpush.msra.mxu0 0.0
    %1999 = vmatpush.msra.mxu0 0.0
    %2000 = vmatpush.msra.mxu0 0.0
    %2001 = vmatpush.msra.mxu0 0.0
    %2002 = vmatpush.msra.mxu0 0.0
    %2003 = vmatpush.msra.mxu0 0.0
    %2004 = vmatpush.msra.mxu0 0.0
    %2005 = vmatpush.msra.mxu0 0.0
    %2006 = vmatpush.msra.mxu0 0.0
    %2007 = vmatpush.msra.mxu0 %v1984
    %2008 = vmatpush.msra.mxu0 %v1983
    %2009 = vmatpush.msra.mxu0 %v1982
    %2010 = vmatpush.msra.mxu0 %v1981
    %2011 = vmatmul.f32.gmra.mxu0 %v1990
    %v2012 = vpop.f32.mrf.mxu0
    %v2013 = vadd.f32 %v1987, %v2012
    %2014 = vmatmul.f32.gmra.mxu0 %v1993
    %v2015 = vpop.f32.mrf.mxu0
    %v2016 = vadd.f32 %v1987, %v2015
    %2017 = vdwg.mxu0
    %v2018 = vmax.f32 %v2013, 0.0
    %v2019 = vmax.f32 %v2016, 0.0
    %v2020 = vld [vmem:[%s20] sm:$0xff]
    %v2021 = vld [vmem:[%s20 + $0x8] sm:$0xff]
    %v2022 = vld [vmem:[%s20 + $0x10] sm:$0xff]
    %v2023 = vld [vmem:[%s20 + $0x18] sm:$0xff]
    %v2024 = vld [vmem:[%s20 + $0x20] sm:$0xff]
    %v2025 = vld [vmem:[%s20 + $0x28] sm:$0xff]
    %v2026 = vld [vmem:[%s20 + $0x30] sm:$0xff]
    %v2027 = vld [vmem:[%s20 + $0x38] sm:$0xff]
    %v2028 = vld [vmem:[#allocation13] sm:$0x1]
    %v2030 = vperm.slane %v2028, 0
    %vm2032 = vcmask 523264
    %v2034 = vsel %vm2032, %v2018, 0
    %v2037 = vsel %vm2032, %v2019, 0
    %2039 = vmatpush.msra.mxu0 0.0
    %2040 = vmatpush.msra.mxu0 0.0
    %2041 = vmatpush.msra.mxu0 0.0
    %2042 = vmatpush.msra.mxu0 0.0
    %2043 = vmatpush.msra.mxu0 0.0
    %2044 = vmatpush.msra.mxu0 0.0
    %2045 = vmatpush.msra.mxu0 0.0
    %2046 = vmatpush.msra.mxu0 0.0
    %2047 = vmatpush.msra.mxu0 %v2027
    %2048 = vmatpush.msra.mxu0 %v2026
    %2049 = vmatpush.msra.mxu0 %v2025
    %2050 = vmatpush.msra.mxu0 %v2024
    %2051 = vmatpush.msra.mxu0 %v2023
    %2052 = vmatpush.msra.mxu0 %v2022
    %2053 = vmatpush.msra.mxu0 %v2021
    %2054 = vmatpush.msra.mxu0 %v2020
    %2055 = vmatmul.f32.gmra.mxu0 %v2034
    %v2056 = vpop.f32.mrf.mxu0
    %v2057 = vadd.f32 %v2030, %v2056
    %2058 = vmatmul.f32.gmra.mxu0 %v2037
    %v2059 = vpop.f32.mrf.mxu0
    %v2060 = vadd.f32 %v2030, %v2059
    %2061 = vdwg.mxu0
    %v2062 = vadd.f32 %v1979, %v2057
    %v2063 = vadd.f32 %v1980, %v2060
    %v2064 = vsel %vm243, %v2062, 0.0
    %2065 = vadd.xlane.f32.xlu0 %v2064
    %v2066 = vpop.xlane.xlu0 %2065
    %v2067 = vsel %vm243, %v2063, 0.0
    %2068 = vadd.xlane.f32.xlu0 %v2067
    %v2069 = vpop.xlane.xlu0 %2068
    %v2070 = vmul.f32 %v2066, %v1117
    %v2071 = vmul.f32 %v2069, %v1117
    %v2072 = vsub.f32 %v2062, %v2070
    %v2073 = vsub.f32 %v2063, %v2071
    %v2074 = vmul.f32 %v2072, %v2072
    %v2075 = vmul.f32 %v2073, %v2073
    %v2076 = vsel %vm243, %v2074, 0.0
    %2077 = vadd.xlane.f32.xlu0 %v2076
    %v2078 = vpop.xlane.xlu0 %2077
    %v2079 = vsel %vm243, %v2075, 0.0
    %2080 = vadd.xlane.f32.xlu0 %v2079
    %v2081 = vpop.xlane.xlu0 %2080
    %v2082 = vmul.f32 %v2078, %v1117
    %v2083 = vmul.f32 %v2081, %v1117
    %v2084 = vadd.f32 %v2082, 1e-05
    %v2085 = vadd.f32 %v2083, 1e-05
    %v2086 = vrsqrt.pop %v2084
    %v2087 = vmul.f32 %v2086, %v2084
    %v2088 = vmul.f32 %v2087, %v2086
    %v2089 = vmul.f32 0.5, %v2088
    %v2090 = vsub.f32 1.5, %v2089
    %v2091 = vmul.f32 %v2086, %v2090
    %vm2092 = vweird.f32 %v2084
    %vm2093 = vweird.f32 %v2086
    %vm2094 = vmor %vm2092, %vm2093
    %v2095 = vsel %vm2094, %v2086, %v2091
    %v2096 = vrsqrt.pop %v2085
    %v2097 = vmul.f32 %v2096, %v2085
    %v2098 = vmul.f32 %v2097, %v2096
    %v2099 = vmul.f32 0.5, %v2098
    %v2100 = vsub.f32 1.5, %v2099
    %v2101 = vmul.f32 %v2096, %v2100
    %vm2102 = vweird.f32 %v2085
    %vm2103 = vweird.f32 %v2096
    %vm2104 = vmor %vm2102, %vm2103
    %v2105 = vsel %vm2104, %v2096, %v2101
    %v2106 = vmul.f32 %v2072, %v2095
    %v2107 = vmul.f32 %v2073, %v2105
    %v2108 = vperm.slane %v217, 2
    %v2109 = vmul.f32 %v2106, %v2108
    %v2110 = vmul.f32 %v2107, %v2108
    %v2111 = vperm.slane %v218, 2
    %v2112 = vadd.f32 %v2109, %v2111
    %v2113 = vadd.f32 %v2110, %v2111
    %v2114 = vsel %vm243, %v2112, 0.0
    %2115 = vadd.xlane.f32.xlu0 %v2114
    %v2116 = vpop.xlane.xlu0 %2115
    %v2117 = vsel %vm243, %v2113, 0.0
    %2118 = vadd.xlane.f32.xlu0 %v2117
    %v2119 = vpop.xlane.xlu0 %2118
    %v2120 = vmul.f32 %v2116, %v1117
    %v2121 = vmul.f32 %v2119, %v1117
    %v2122 = vsub.f32 %v2112, %v2120
    %v2123 = vsub.f32 %v2113, %v2121
    %v2124 = vmul.f32 %v2122, %v2122
    %v2125 = vmul.f32 %v2123, %v2123
    %v2126 = vsel %vm243, %v2124, 0.0
    %2127 = vadd.xlane.f32.xlu0 %v2126
    %v2128 = vpop.xlane.xlu0 %2127
    %v2129 = vsel %vm243, %v2125, 0.0
    %2130 = vadd.xlane.f32.xlu0 %v2129
    %v2131 = vpop.xlane.xlu0 %2130
    %v2132 = vmul.f32 %v2128, %v1117
    %v2133 = vmul.f32 %v2131, %v1117
    %v2134 = vadd.f32 %v2132, 1e-05
    %v2135 = vadd.f32 %v2133, 1e-05
    %v2136 = vrsqrt.pop %v2134
    %v2137 = vmul.f32 %v2136, %v2134
    %v2138 = vmul.f32 %v2137, %v2136
    %v2139 = vmul.f32 0.5, %v2138
    %v2140 = vsub.f32 1.5, %v2139
    %v2141 = vmul.f32 %v2136, %v2140
    %vm2142 = vweird.f32 %v2134
    %vm2143 = vweird.f32 %v2136
    %vm2144 = vmor %vm2142, %vm2143
    %v2145 = vsel %vm2144, %v2136, %v2141
    %v2146 = vrsqrt.pop %v2135
    %v2147 = vmul.f32 %v2146, %v2135
    %v2148 = vmul.f32 %v2147, %v2146
    %v2149 = vmul.f32 0.5, %v2148
    %v2150 = vsub.f32 1.5, %v2149
    %v2151 = vmul.f32 %v2146, %v2150
    %vm2152 = vweird.f32 %v2135
    %vm2153 = vweird.f32 %v2146
    %vm2154 = vmor %vm2152, %vm2153
    %v2155 = vsel %vm2154, %v2146, %v2151
    %v2156 = vmul.f32 %v2122, %v2145
    %v2157 = vmul.f32 %v2123, %v2155
    %v2158 = vperm.slane %v217, 3
    %v2159 = vmul.f32 %v2156, %v2158
    %v2160 = vmul.f32 %v2157, %v2158
    %v2161 = vperm.slane %v218, 3
    %v2162 = vadd.f32 %v2159, %v2161
    %v2163 = vadd.f32 %v2160, %v2161
    %2164 = vst.msk [vmem:[%s24] sm:$0xff] %vm243, %v2162
    %2165 = vst.msk [vmem:[%s24 + $0x8] sm:$0xff] %vm243, %v2163
    %v2166 = vadd.f32 %v2112, %v221
    %v2167 = vadd.f32 %v2113, %v222
    %v2168 = vld [vmem:[%s4] sm:$0xff]
    %v2169 = vld [vmem:[%s4 + $0x8] sm:$0xff]
    %v2170 = vld [vmem:[%s4 + $0x10] sm:$0xff]
    %v2171 = vld [vmem:[%s4 + $0x18] sm:$0xff]
    %v2172 = vld [vmem:[%s5] sm:$0x1]
    %v2174 = vperm.slane %v2172, 0
    %v2177 = vsel %vm243, %v2166, 0
    %v2180 = vsel %vm243, %v2167, 0
    %2182 = vmatpush.msra.mxu0 0.0
    %2183 = vmatpush.msra.mxu0 0.0
    %2184 = vmatpush.msra.mxu0 0.0
    %2185 = vmatpush.msra.mxu0 0.0
    %2186 = vmatpush.msra.mxu0 0.0
    %2187 = vmatpush.msra.mxu0 0.0
    %2188 = vmatpush.msra.mxu0 0.0
    %2189 = vmatpush.msra.mxu0 0.0
    %2190 = vmatpush.msra.mxu0 0.0
    %2191 = vmatpush.msra.mxu0 0.0
    %2192 = vmatpush.msra.mxu0 0.0
    %2193 = vmatpush.msra.mxu0 0.0
    %2194 = vmatpush.msra.mxu0 %v2171
    %2195 = vmatpush.msra.mxu0 %v2170
    %2196 = vmatpush.msra.mxu0 %v2169
    %2197 = vmatpush.msra.mxu0 %v2168
    %2198 = vmatmul.f32.gmra.mxu0 %v2177
    %v2199 = vpop.f32.mrf.mxu0
    %v2200 = vadd.f32 %v2174, %v2199
    %2201 = vmatmul.f32.gmra.mxu0 %v2180
    %v2202 = vpop.f32.mrf.mxu0
    %v2203 = vadd.f32 %v2174, %v2202
    %2204 = vdwg.mxu0
    %v2205 = vld [vmem:[%s6] sm:$0xff]
    %v2206 = vld [vmem:[%s6 + $0x8] sm:$0xff]
    %v2207 = vld [vmem:[%s6 + $0x10] sm:$0xff]
    %v2208 = vld [vmem:[%s6 + $0x18] sm:$0xff]
    %v2209 = vld [vmem:[%s7] sm:$0x1]
    %v2211 = vperm.slane %v2209, 0
    %v2214 = vsel %vm243, %v2112, 0
    %v2217 = vsel %vm243, %v2113, 0
    %2219 = vmatpush.msra.mxu0 0.0
    %2220 = vmatpush.msra.mxu0 0.0
    %2221 = vmatpush.msra.mxu0 0.0
    %2222 = vmatpush.msra.mxu0 0.0
    %2223 = vmatpush.msra.mxu0 0.0
    %2224 = vmatpush.msra.mxu0 0.0
    %2225 = vmatpush.msra.mxu0 0.0
    %2226 = vmatpush.msra.mxu0 0.0
    %2227 = vmatpush.msra.mxu0 0.0
    %2228 = vmatpush.msra.mxu0 0.0
    %2229 = vmatpush.msra.mxu0 0.0
    %2230 = vmatpush.msra.mxu0 0.0
    %2231 = vmatpush.msra.mxu0 %v2208
    %2232 = vmatpush.msra.mxu0 %v2207
    %2233 = vmatpush.msra.mxu0 %v2206
    %2234 = vmatpush.msra.mxu0 %v2205
    %2235 = vmatmul.f32.gmra.mxu0 %v2214
    %v2236 = vpop.f32.mrf.mxu0
    %v2237 = vadd.f32 %v2211, %v2236
    %2238 = vmatmul.f32.gmra.mxu0 %v2217
    %v2239 = vpop.f32.mrf.mxu0
    %v2240 = vadd.f32 %v2211, %v2239
    %2241 = vdwg.mxu0
    %2243 = vrot.lane.b32.xlu0 %v2200, 96
    %v2244 = vpop.permute.xlu0 %2243
    %v2245 = vsel %vm423, %v2200, 0
    %v2247 = vsel %vm423, %v2244, 0
    %2249 = vmatpush.xpose.msra.mxu0 0.0
    %2250 = vmatpush.xpose.msra.mxu0 0.0
    %2251 = vmatpush.xpose.msra.mxu0 0.0
    %2252 = vmatpush.xpose.msra.mxu0 0.0
    %2253 = vmatpush.xpose.msra.mxu0 0.0
    %2254 = vmatpush.xpose.msra.mxu0 0.0
    %2255 = vmatpush.xpose.msra.mxu0 0.0
    %2256 = vmatpush.xpose.msra.mxu0 0.0
    %2257 = vmatpush.xpose.msra.mxu0 0.0
    %2258 = vmatpush.xpose.msra.mxu0 0.0
    %2259 = vmatpush.xpose.msra.mxu0 0.0
    %2260 = vmatpush.xpose.msra.mxu0 0.0
    %2261 = vmatpush.xpose.msra.mxu0 0.0
    %2262 = vmatpush.xpose.msra.mxu0 0.0
    %2263 = vmatpush.xpose.msra.mxu0 0.0
    %2264 = vmatpush.xpose.msra.mxu0 %v2247
    %2265 = vmatmul.f32.gmra.mxu0 %v2245
    %v2266 = vpop.f32.mrf.mxu0
    %v2267 = vadd.f32 0.0, %v2266
    %2268 = vdwg.mxu0
    %v2269 = vsel %vm423, %v2267, -inf
    %2270 = vmax.xlane.f32.xlu0 %v2269
    %v2271 = vpop.xlane.xlu0 %2270
    %v2272 = vsub.f32 %v2267, %v2271
    %v2273 = vmul.f32 %v2272, 1.442695
    %v2274 = vpow.pop %v2273
    %v2275 = vsel %vm423, %v2274, 0.0
    %2276 = vadd.xlane.f32.xlu0 %v2275
    %v2277 = vpop.xlane.xlu0 %2276
    %v2278 = vrcp.pop %v2277
    %v2279 = vmul.f32 %v2277, %v2278
    %v2280 = vsub.f32 1.0, %v2279
    %v2281 = vmul.f32 %v2278, %v2280
    %v2282 = vadd.f32 %v2278, %v2281
    %vm2283 = vweird.f32 %v2277
    %vm2284 = vweird.f32 %v2278
    %vm2285 = vmor %vm2283, %vm2284
    %v2286 = vsel %vm2285, %v2278, %v2282
    %v2287 = vand.u32 2147483647, %v2277
    %vm2288 = vcmp.eq.f32.partialorder %v2287, 8.507059e+37
    %v2289 = vand.u32 %v2277, 2147483648
    %v2290 = vor.u32 1.1754944e-38, %v2289
    %v2291 = vsel %vm2288, %v2290, %v2286
    %v2292 = vmul.f32 %v2274, %v2291
    %v2294 = vsel %vm423, %v2292, 0
    %2296 = vmatpush.msra.mxu0 0.0
    %2297 = vmatpush.msra.mxu0 0.0
    %2298 = vmatpush.msra.mxu0 0.0
    %2299 = vmatpush.msra.mxu0 0.0
    %2300 = vmatpush.msra.mxu0 0.0
    %2301 = vmatpush.msra.mxu0 0.0
    %2302 = vmatpush.msra.mxu0 0.0
    %2303 = vmatpush.msra.mxu0 0.0
    %2304 = vmatpush.msra.mxu0 0.0
    %2305 = vmatpush.msra.mxu0 0.0
    %2306 = vmatpush.msra.mxu0 0.0
    %2307 = vmatpush.msra.mxu0 0.0
    %2308 = vmatpush.msra.mxu0 0.0
    %2309 = vmatpush.msra.mxu0 0.0
    %2310 = vmatpush.msra.mxu0 0.0
    %2311 = vmatpush.msra.mxu0 %v2237
    %2312 = vmatmul.f32.gmra.mxu0 %v2294
    %v2313 = vpop.f32.mrf.mxu0
    %v2314 = vadd.f32 0.0, %v2313
    %2315 = vdwg.mxu0
    %2316 = vrot.lane.b32.xlu0 %v2200, 120
    %v2317 = vpop.permute.xlu0 %2316
    %2318 = vrot.lane.b32.xlu0 %v2200, 88
    %v2319 = vpop.permute.xlu0 %2318
    %v2320 = vsel %vm423, %v2317, 0
    %v2322 = vsel %vm423, %v2319, 0
    %2324 = vmatpush.xpose.msra.mxu0 0.0
    %2325 = vmatpush.xpose.msra.mxu0 0.0
    %2326 = vmatpush.xpose.msra.mxu0 0.0
    %2327 = vmatpush.xpose.msra.mxu0 0.0
    %2328 = vmatpush.xpose.msra.mxu0 0.0
    %2329 = vmatpush.xpose.msra.mxu0 0.0
    %2330 = vmatpush.xpose.msra.mxu0 0.0
    %2331 = vmatpush.xpose.msra.mxu0 0.0
    %2332 = vmatpush.xpose.msra.mxu0 0.0
    %2333 = vmatpush.xpose.msra.mxu0 0.0
    %2334 = vmatpush.xpose.msra.mxu0 0.0
    %2335 = vmatpush.xpose.msra.mxu0 0.0
    %2336 = vmatpush.xpose.msra.mxu0 0.0
    %2337 = vmatpush.xpose.msra.mxu0 0.0
    %2338 = vmatpush.xpose.msra.mxu0 0.0
    %2339 = vmatpush.xpose.msra.mxu0 %v2322
    %2340 = vmatmul.f32.gmra.mxu0 %v2320
    %v2341 = vpop.f32.mrf.mxu0
    %v2342 = vadd.f32 0.0, %v2341
    %2343 = vdwg.mxu0
    %v2344 = vsel %vm423, %v2342, -inf
    %2345 = vmax.xlane.f32.xlu0 %v2344
    %v2346 = vpop.xlane.xlu0 %2345
    %v2347 = vsub.f32 %v2342, %v2346
    %v2348 = vmul.f32 %v2347, 1.442695
    %v2349 = vpow.pop %v2348
    %v2350 = vsel %vm423, %v2349, 0.0
    %2351 = vadd.xlane.f32.xlu0 %v2350
    %v2352 = vpop.xlane.xlu0 %2351
    %v2353 = vrcp.pop %v2352
    %v2354 = vmul.f32 %v2352, %v2353
    %v2355 = vsub.f32 1.0, %v2354
    %v2356 = vmul.f32 %v2353, %v2355
    %v2357 = vadd.f32 %v2353, %v2356
    %vm2358 = vweird.f32 %v2352
    %vm2359 = vweird.f32 %v2353
    %vm2360 = vmor %vm2358, %vm2359
    %v2361 = vsel %vm2360, %v2353, %v2357
    %v2362 = vand.u32 2147483647, %v2352
    %vm2363 = vcmp.eq.f32.partialorder %v2362, 8.507059e+37
    %v2364 = vand.u32 %v2352, 2147483648
    %v2365 = vor.u32 1.1754944e-38, %v2364
    %v2366 = vsel %vm2363, %v2365, %v2361
    %v2367 = vmul.f32 %v2349, %v2366
    %2369 = vrot.lane.b32.xlu0 %v2237, 120
    %v2370 = vpop.permute.xlu0 %2369
    %v2373 = vsel %vm423, %v2367, 0
    %2375 = vmatpush.msra.mxu0 0.0
    %2376 = vmatpush.msra.mxu0 0.0
    %2377 = vmatpush.msra.mxu0 0.0
    %2378 = vmatpush.msra.mxu0 0.0
    %2379 = vmatpush.msra.mxu0 0.0
    %2380 = vmatpush.msra.mxu0 0.0
    %2381 = vmatpush.msra.mxu0 0.0
    %2382 = vmatpush.msra.mxu0 0.0
    %2383 = vmatpush.msra.mxu0 0.0
    %2384 = vmatpush.msra.mxu0 0.0
    %2385 = vmatpush.msra.mxu0 0.0
    %2386 = vmatpush.msra.mxu0 0.0
    %2387 = vmatpush.msra.mxu0 0.0
    %2388 = vmatpush.msra.mxu0 0.0
    %2389 = vmatpush.msra.mxu0 0.0
    %2390 = vmatpush.msra.mxu0 %v2370
    %2391 = vmatmul.f32.gmra.mxu0 %v2373
    %v2392 = vpop.f32.mrf.mxu0
    %v2393 = vadd.f32 0.0, %v2392
    %2394 = vdwg.mxu0
    %2395 = vrot.lane.b32.xlu0 %v2200, 112
    %v2396 = vpop.permute.xlu0 %2395
    %2397 = vrot.lane.b32.xlu0 %v2200, 80
    %v2398 = vpop.permute.xlu0 %2397
    %v2399 = vsel %vm423, %v2396, 0
    %v2401 = vsel %vm423, %v2398, 0
    %2403 = vmatpush.xpose.msra.mxu0 0.0
    %2404 = vmatpush.xpose.msra.mxu0 0.0
    %2405 = vmatpush.xpose.msra.mxu0 0.0
    %2406 = vmatpush.xpose.msra.mxu0 0.0
    %2407 = vmatpush.xpose.msra.mxu0 0.0
    %2408 = vmatpush.xpose.msra.mxu0 0.0
    %2409 = vmatpush.xpose.msra.mxu0 0.0
    %2410 = vmatpush.xpose.msra.mxu0 0.0
    %2411 = vmatpush.xpose.msra.mxu0 0.0
    %2412 = vmatpush.xpose.msra.mxu0 0.0
    %2413 = vmatpush.xpose.msra.mxu0 0.0
    %2414 = vmatpush.xpose.msra.mxu0 0.0
    %2415 = vmatpush.xpose.msra.mxu0 0.0
    %2416 = vmatpush.xpose.msra.mxu0 0.0
    %2417 = vmatpush.xpose.msra.mxu0 0.0
    %2418 = vmatpush.xpose.msra.mxu0 %v2401
    %2419 = vmatmul.f32.gmra.mxu0 %v2399
    %v2420 = vpop.f32.mrf.mxu0
    %v2421 = vadd.f32 0.0, %v2420
    %2422 = vdwg.mxu0
    %v2423 = vsel %vm423, %v2421, -inf
    %2424 = vmax.xlane.f32.xlu0 %v2423
    %v2425 = vpop.xlane.xlu0 %2424
    %v2426 = vsub.f32 %v2421, %v2425
    %v2427 = vmul.f32 %v2426, 1.442695
    %v2428 = vpow.pop %v2427
    %v2429 = vsel %vm423, %v2428, 0.0
    %2430 = vadd.xlane.f32.xlu0 %v2429
    %v2431 = vpop.xlane.xlu0 %2430
    %v2432 = vrcp.pop %v2431
    %v2433 = vmul.f32 %v2431, %v2432
    %v2434 = vsub.f32 1.0, %v2433
    %v2435 = vmul.f32 %v2432, %v2434
    %v2436 = vadd.f32 %v2432, %v2435
    %vm2437 = vweird.f32 %v2431
    %vm2438 = vweird.f32 %v2432
    %vm2439 = vmor %vm2437, %vm2438
    %v2440 = vsel %vm2439, %v2432, %v2436
    %v2441 = vand.u32 2147483647, %v2431
    %vm2442 = vcmp.eq.f32.partialorder %v2441, 8.507059e+37
    %v2443 = vand.u32 %v2431, 2147483648
    %v2444 = vor.u32 1.1754944e-38, %v2443
    %v2445 = vsel %vm2442, %v2444, %v2440
    %v2446 = vmul.f32 %v2428, %v2445
    %2447 = vrot.lane.b32.xlu0 %v2237, 112
    %v2448 = vpop.permute.xlu0 %2447
    %v2451 = vsel %vm423, %v2446, 0
    %2453 = vmatpush.msra.mxu0 0.0
    %2454 = vmatpush.msra.mxu0 0.0
    %2455 = vmatpush.msra.mxu0 0.0
    %2456 = vmatpush.msra.mxu0 0.0
    %2457 = vmatpush.msra.mxu0 0.0
    %2458 = vmatpush.msra.mxu0 0.0
    %2459 = vmatpush.msra.mxu0 0.0
    %2460 = vmatpush.msra.mxu0 0.0
    %2461 = vmatpush.msra.mxu0 0.0
    %2462 = vmatpush.msra.mxu0 0.0
    %2463 = vmatpush.msra.mxu0 0.0
    %2464 = vmatpush.msra.mxu0 0.0
    %2465 = vmatpush.msra.mxu0 0.0
    %2466 = vmatpush.msra.mxu0 0.0
    %2467 = vmatpush.msra.mxu0 0.0
    %2468 = vmatpush.msra.mxu0 %v2448
    %2469 = vmatmul.f32.gmra.mxu0 %v2451
    %v2470 = vpop.f32.mrf.mxu0
    %v2471 = vadd.f32 0.0, %v2470
    %2472 = vdwg.mxu0
    %2473 = vrot.lane.b32.xlu0 %v2200, 104
    %v2474 = vpop.permute.xlu0 %2473
    %2475 = vrot.lane.b32.xlu0 %v2200, 72
    %v2476 = vpop.permute.xlu0 %2475
    %v2477 = vsel %vm423, %v2474, 0
    %v2479 = vsel %vm423, %v2476, 0
    %2481 = vmatpush.xpose.msra.mxu0 0.0
    %2482 = vmatpush.xpose.msra.mxu0 0.0
    %2483 = vmatpush.xpose.msra.mxu0 0.0
    %2484 = vmatpush.xpose.msra.mxu0 0.0
    %2485 = vmatpush.xpose.msra.mxu0 0.0
    %2486 = vmatpush.xpose.msra.mxu0 0.0
    %2487 = vmatpush.xpose.msra.mxu0 0.0
    %2488 = vmatpush.xpose.msra.mxu0 0.0
    %2489 = vmatpush.xpose.msra.mxu0 0.0
    %2490 = vmatpush.xpose.msra.mxu0 0.0
    %2491 = vmatpush.xpose.msra.mxu0 0.0
    %2492 = vmatpush.xpose.msra.mxu0 0.0
    %2493 = vmatpush.xpose.msra.mxu0 0.0
    %2494 = vmatpush.xpose.msra.mxu0 0.0
    %2495 = vmatpush.xpose.msra.mxu0 0.0
    %2496 = vmatpush.xpose.msra.mxu0 %v2479
    %2497 = vmatmul.f32.gmra.mxu0 %v2477
    %v2498 = vpop.f32.mrf.mxu0
    %v2499 = vadd.f32 0.0, %v2498
    %2500 = vdwg.mxu0
    %v2501 = vsel %vm423, %v2499, -inf
    %2502 = vmax.xlane.f32.xlu0 %v2501
    %v2503 = vpop.xlane.xlu0 %2502
    %v2504 = vsub.f32 %v2499, %v2503
    %v2505 = vmul.f32 %v2504, 1.442695
    %v2506 = vpow.pop %v2505
    %v2507 = vsel %vm423, %v2506, 0.0
    %2508 = vadd.xlane.f32.xlu0 %v2507
    %v2509 = vpop.xlane.xlu0 %2508
    %v2510 = vrcp.pop %v2509
    %v2511 = vmul.f32 %v2509, %v2510
    %v2512 = vsub.f32 1.0, %v2511
    %v2513 = vmul.f32 %v2510, %v2512
    %v2514 = vadd.f32 %v2510, %v2513
    %vm2515 = vweird.f32 %v2509
    %vm2516 = vweird.f32 %v2510
    %vm2517 = vmor %vm2515, %vm2516
    %v2518 = vsel %vm2517, %v2510, %v2514
    %v2519 = vand.u32 2147483647, %v2509
    %vm2520 = vcmp.eq.f32.partialorder %v2519, 8.507059e+37
    %v2521 = vand.u32 %v2509, 2147483648
    %v2522 = vor.u32 1.1754944e-38, %v2521
    %v2523 = vsel %vm2520, %v2522, %v2518
    %v2524 = vmul.f32 %v2506, %v2523
    %2525 = vrot.lane.b32.xlu0 %v2237, 104
    %v2526 = vpop.permute.xlu0 %2525
    %v2529 = vsel %vm423, %v2524, 0
    %2531 = vmatpush.msra.mxu0 0.0
    %2532 = vmatpush.msra.mxu0 0.0
    %2533 = vmatpush.msra.mxu0 0.0
    %2534 = vmatpush.msra.mxu0 0.0
    %2535 = vmatpush.msra.mxu0 0.0
    %2536 = vmatpush.msra.mxu0 0.0
    %2537 = vmatpush.msra.mxu0 0.0
    %2538 = vmatpush.msra.mxu0 0.0
    %2539 = vmatpush.msra.mxu0 0.0
    %2540 = vmatpush.msra.mxu0 0.0
    %2541 = vmatpush.msra.mxu0 0.0
    %2542 = vmatpush.msra.mxu0 0.0
    %2543 = vmatpush.msra.mxu0 0.0
    %2544 = vmatpush.msra.mxu0 0.0
    %2545 = vmatpush.msra.mxu0 0.0
    %2546 = vmatpush.msra.mxu0 %v2526
    %2547 = vmatmul.f32.gmra.mxu0 %v2529
    %v2548 = vpop.f32.mrf.mxu0
    %v2549 = vadd.f32 0.0, %v2548
    %2550 = vdwg.mxu0
    %2552 = vrot.lane.b32.xlu0 %v2393, 8
    %v2553 = vpop.permute.xlu0 %2552
    %2556 = vrot.lane.b32.xlu0 %v2471, 16
    %v2557 = vpop.permute.xlu0 %2556
    %2560 = vrot.lane.b32.xlu0 %v2549, 24
    %v2561 = vpop.permute.xlu0 %2560
    %v2563 = vsel %vm423, %v2314, %v2553
    %v2564 = vsel %vm743, %v2563, %v2557
    %v2565 = vsel %vm745, %v2564, %v2561
    %2567 = vrot.lane.b32.xlu0 %v2203, 96
    %v2568 = vpop.permute.xlu0 %2567
    %v2569 = vsel %vm423, %v2203, 0
    %v2571 = vsel %vm423, %v2568, 0
    %2573 = vmatpush.xpose.msra.mxu0 0.0
    %2574 = vmatpush.xpose.msra.mxu0 0.0
    %2575 = vmatpush.xpose.msra.mxu0 0.0
    %2576 = vmatpush.xpose.msra.mxu0 0.0
    %2577 = vmatpush.xpose.msra.mxu0 0.0
    %2578 = vmatpush.xpose.msra.mxu0 0.0
    %2579 = vmatpush.xpose.msra.mxu0 0.0
    %2580 = vmatpush.xpose.msra.mxu0 0.0
    %2581 = vmatpush.xpose.msra.mxu0 0.0
    %2582 = vmatpush.xpose.msra.mxu0 0.0
    %2583 = vmatpush.xpose.msra.mxu0 0.0
    %2584 = vmatpush.xpose.msra.mxu0 0.0
    %2585 = vmatpush.xpose.msra.mxu0 0.0
    %2586 = vmatpush.xpose.msra.mxu0 0.0
    %2587 = vmatpush.xpose.msra.mxu0 0.0
    %2588 = vmatpush.xpose.msra.mxu0 %v2571
    %2589 = vmatmul.f32.gmra.mxu0 %v2569
    %v2590 = vpop.f32.mrf.mxu0
    %v2591 = vadd.f32 0.0, %v2590
    %2592 = vdwg.mxu0
    %v2593 = vsel %vm423, %v2591, -inf
    %2594 = vmax.xlane.f32.xlu0 %v2593
    %v2595 = vpop.xlane.xlu0 %2594
    %v2596 = vsub.f32 %v2591, %v2595
    %v2597 = vmul.f32 %v2596, 1.442695
    %v2598 = vpow.pop %v2597
    %v2599 = vsel %vm423, %v2598, 0.0
    %2600 = vadd.xlane.f32.xlu0 %v2599
    %v2601 = vpop.xlane.xlu0 %2600
    %v2602 = vrcp.pop %v2601
    %v2603 = vmul.f32 %v2601, %v2602
    %v2604 = vsub.f32 1.0, %v2603
    %v2605 = vmul.f32 %v2602, %v2604
    %v2606 = vadd.f32 %v2602, %v2605
    %vm2607 = vweird.f32 %v2601
    %vm2608 = vweird.f32 %v2602
    %vm2609 = vmor %vm2607, %vm2608
    %v2610 = vsel %vm2609, %v2602, %v2606
    %v2611 = vand.u32 2147483647, %v2601
    %vm2612 = vcmp.eq.f32.partialorder %v2611, 8.507059e+37
    %v2613 = vand.u32 %v2601, 2147483648
    %v2614 = vor.u32 1.1754944e-38, %v2613
    %v2615 = vsel %vm2612, %v2614, %v2610
    %v2616 = vmul.f32 %v2598, %v2615
    %v2618 = vsel %vm423, %v2616, 0
    %2620 = vmatpush.msra.mxu0 0.0
    %2621 = vmatpush.msra.mxu0 0.0
    %2622 = vmatpush.msra.mxu0 0.0
    %2623 = vmatpush.msra.mxu0 0.0
    %2624 = vmatpush.msra.mxu0 0.0
    %2625 = vmatpush.msra.mxu0 0.0
    %2626 = vmatpush.msra.mxu0 0.0
    %2627 = vmatpush.msra.mxu0 0.0
    %2628 = vmatpush.msra.mxu0 0.0
    %2629 = vmatpush.msra.mxu0 0.0
    %2630 = vmatpush.msra.mxu0 0.0
    %2631 = vmatpush.msra.mxu0 0.0
    %2632 = vmatpush.msra.mxu0 0.0
    %2633 = vmatpush.msra.mxu0 0.0
    %2634 = vmatpush.msra.mxu0 0.0
    %2635 = vmatpush.msra.mxu0 %v2240
    %2636 = vmatmul.f32.gmra.mxu0 %v2618
    %v2637 = vpop.f32.mrf.mxu0
    %v2638 = vadd.f32 0.0, %v2637
    %2639 = vdwg.mxu0
    %2640 = vrot.lane.b32.xlu0 %v2203, 120
    %v2641 = vpop.permute.xlu0 %2640
    %2642 = vrot.lane.b32.xlu0 %v2203, 88
    %v2643 = vpop.permute.xlu0 %2642
    %v2644 = vsel %vm423, %v2641, 0
    %v2646 = vsel %vm423, %v2643, 0
    %2648 = vmatpush.xpose.msra.mxu0 0.0
    %2649 = vmatpush.xpose.msra.mxu0 0.0
    %2650 = vmatpush.xpose.msra.mxu0 0.0
    %2651 = vmatpush.xpose.msra.mxu0 0.0
    %2652 = vmatpush.xpose.msra.mxu0 0.0
    %2653 = vmatpush.xpose.msra.mxu0 0.0
    %2654 = vmatpush.xpose.msra.mxu0 0.0
    %2655 = vmatpush.xpose.msra.mxu0 0.0
    %2656 = vmatpush.xpose.msra.mxu0 0.0
    %2657 = vmatpush.xpose.msra.mxu0 0.0
    %2658 = vmatpush.xpose.msra.mxu0 0.0
    %2659 = vmatpush.xpose.msra.mxu0 0.0
    %2660 = vmatpush.xpose.msra.mxu0 0.0
    %2661 = vmatpush.xpose.msra.mxu0 0.0
    %2662 = vmatpush.xpose.msra.mxu0 0.0
    %2663 = vmatpush.xpose.msra.mxu0 %v2646
    %2664 = vmatmul.f32.gmra.mxu0 %v2644
    %v2665 = vpop.f32.mrf.mxu0
    %v2666 = vadd.f32 0.0, %v2665
    %2667 = vdwg.mxu0
    %v2668 = vsel %vm423, %v2666, -inf
    %2669 = vmax.xlane.f32.xlu0 %v2668
    %v2670 = vpop.xlane.xlu0 %2669
    %v2671 = vsub.f32 %v2666, %v2670
    %v2672 = vmul.f32 %v2671, 1.442695
    %v2673 = vpow.pop %v2672
    %v2674 = vsel %vm423, %v2673, 0.0
    %2675 = vadd.xlane.f32.xlu0 %v2674
    %v2676 = vpop.xlane.xlu0 %2675
    %v2677 = vrcp.pop %v2676
    %v2678 = vmul.f32 %v2676, %v2677
    %v2679 = vsub.f32 1.0, %v2678
    %v2680 = vmul.f32 %v2677, %v2679
    %v2681 = vadd.f32 %v2677, %v2680
    %vm2682 = vweird.f32 %v2676
    %vm2683 = vweird.f32 %v2677
    %vm2684 = vmor %vm2682, %vm2683
    %v2685 = vsel %vm2684, %v2677, %v2681
    %v2686 = vand.u32 2147483647, %v2676
    %vm2687 = vcmp.eq.f32.partialorder %v2686, 8.507059e+37
    %v2688 = vand.u32 %v2676, 2147483648
    %v2689 = vor.u32 1.1754944e-38, %v2688
    %v2690 = vsel %vm2687, %v2689, %v2685
    %v2691 = vmul.f32 %v2673, %v2690
    %2693 = vrot.lane.b32.xlu0 %v2240, 120
    %v2694 = vpop.permute.xlu0 %2693
    %v2697 = vsel %vm423, %v2691, 0
    %2699 = vmatpush.msra.mxu0 0.0
    %2700 = vmatpush.msra.mxu0 0.0
    %2701 = vmatpush.msra.mxu0 0.0
    %2702 = vmatpush.msra.mxu0 0.0
    %2703 = vmatpush.msra.mxu0 0.0
    %2704 = vmatpush.msra.mxu0 0.0
    %2705 = vmatpush.msra.mxu0 0.0
    %2706 = vmatpush.msra.mxu0 0.0
    %2707 = vmatpush.msra.mxu0 0.0
    %2708 = vmatpush.msra.mxu0 0.0
    %2709 = vmatpush.msra.mxu0 0.0
    %2710 = vmatpush.msra.mxu0 0.0
    %2711 = vmatpush.msra.mxu0 0.0
    %2712 = vmatpush.msra.mxu0 0.0
    %2713 = vmatpush.msra.mxu0 0.0
    %2714 = vmatpush.msra.mxu0 %v2694
    %2715 = vmatmul.f32.gmra.mxu0 %v2697
    %v2716 = vpop.f32.mrf.mxu0
    %v2717 = vadd.f32 0.0, %v2716
    %2718 = vdwg.mxu0
    %2719 = vrot.lane.b32.xlu0 %v2203, 112
    %v2720 = vpop.permute.xlu0 %2719
    %2721 = vrot.lane.b32.xlu0 %v2203, 80
    %v2722 = vpop.permute.xlu0 %2721
    %v2723 = vsel %vm423, %v2720, 0
    %v2725 = vsel %vm423, %v2722, 0
    %2727 = vmatpush.xpose.msra.mxu0 0.0
    %2728 = vmatpush.xpose.msra.mxu0 0.0
    %2729 = vmatpush.xpose.msra.mxu0 0.0
    %2730 = vmatpush.xpose.msra.mxu0 0.0
    %2731 = vmatpush.xpose.msra.mxu0 0.0
    %2732 = vmatpush.xpose.msra.mxu0 0.0
    %2733 = vmatpush.xpose.msra.mxu0 0.0
    %2734 = vmatpush.xpose.msra.mxu0 0.0
    %2735 = vmatpush.xpose.msra.mxu0 0.0
    %2736 = vmatpush.xpose.msra.mxu0 0.0
    %2737 = vmatpush.xpose.msra.mxu0 0.0
    %2738 = vmatpush.xpose.msra.mxu0 0.0
    %2739 = vmatpush.xpose.msra.mxu0 0.0
    %2740 = vmatpush.xpose.msra.mxu0 0.0
    %2741 = vmatpush.xpose.msra.mxu0 0.0
    %2742 = vmatpush.xpose.msra.mxu0 %v2725
    %2743 = vmatmul.f32.gmra.mxu0 %v2723
    %v2744 = vpop.f32.mrf.mxu0
    %v2745 = vadd.f32 0.0, %v2744
    %2746 = vdwg.mxu0
    %v2747 = vsel %vm423, %v2745, -inf
    %2748 = vmax.xlane.f32.xlu0 %v2747
    %v2749 = vpop.xlane.xlu0 %2748
    %v2750 = vsub.f32 %v2745, %v2749
    %v2751 = vmul.f32 %v2750, 1.442695
    %v2752 = vpow.pop %v2751
    %v2753 = vsel %vm423, %v2752, 0.0
    %2754 = vadd.xlane.f32.xlu0 %v2753
    %v2755 = vpop.xlane.xlu0 %2754
    %v2756 = vrcp.pop %v2755
    %v2757 = vmul.f32 %v2755, %v2756
    %v2758 = vsub.f32 1.0, %v2757
    %v2759 = vmul.f32 %v2756, %v2758
    %v2760 = vadd.f32 %v2756, %v2759
    %vm2761 = vweird.f32 %v2755
    %vm2762 = vweird.f32 %v2756
    %vm2763 = vmor %vm2761, %vm2762
    %v2764 = vsel %vm2763, %v2756, %v2760
    %v2765 = vand.u32 2147483647, %v2755
    %vm2766 = vcmp.eq.f32.partialorder %v2765, 8.507059e+37
    %v2767 = vand.u32 %v2755, 2147483648
    %v2768 = vor.u32 1.1754944e-38, %v2767
    %v2769 = vsel %vm2766, %v2768, %v2764
    %v2770 = vmul.f32 %v2752, %v2769
    %2771 = vrot.lane.b32.xlu0 %v2240, 112
    %v2772 = vpop.permute.xlu0 %2771
    %v2775 = vsel %vm423, %v2770, 0
    %2777 = vmatpush.msra.mxu0 0.0
    %2778 = vmatpush.msra.mxu0 0.0
    %2779 = vmatpush.msra.mxu0 0.0
    %2780 = vmatpush.msra.mxu0 0.0
    %2781 = vmatpush.msra.mxu0 0.0
    %2782 = vmatpush.msra.mxu0 0.0
    %2783 = vmatpush.msra.mxu0 0.0
    %2784 = vmatpush.msra.mxu0 0.0
    %2785 = vmatpush.msra.mxu0 0.0
    %2786 = vmatpush.msra.mxu0 0.0
    %2787 = vmatpush.msra.mxu0 0.0
    %2788 = vmatpush.msra.mxu0 0.0
    %2789 = vmatpush.msra.mxu0 0.0
    %2790 = vmatpush.msra.mxu0 0.0
    %2791 = vmatpush.msra.mxu0 0.0
    %2792 = vmatpush.msra.mxu0 %v2772
    %2793 = vmatmul.f32.gmra.mxu0 %v2775
    %v2794 = vpop.f32.mrf.mxu0
    %v2795 = vadd.f32 0.0, %v2794
    %2796 = vdwg.mxu0
    %2797 = vrot.lane.b32.xlu0 %v2203, 104
    %v2798 = vpop.permute.xlu0 %2797
    %2799 = vrot.lane.b32.xlu0 %v2203, 72
    %v2800 = vpop.permute.xlu0 %2799
    %v2801 = vsel %vm423, %v2798, 0
    %v2803 = vsel %vm423, %v2800, 0
    %2805 = vmatpush.xpose.msra.mxu0 0.0
    %2806 = vmatpush.xpose.msra.mxu0 0.0
    %2807 = vmatpush.xpose.msra.mxu0 0.0
    %2808 = vmatpush.xpose.msra.mxu0 0.0
    %2809 = vmatpush.xpose.msra.mxu0 0.0
    %2810 = vmatpush.xpose.msra.mxu0 0.0
    %2811 = vmatpush.xpose.msra.mxu0 0.0
    %2812 = vmatpush.xpose.msra.mxu0 0.0
    %2813 = vmatpush.xpose.msra.mxu0 0.0
    %2814 = vmatpush.xpose.msra.mxu0 0.0
    %2815 = vmatpush.xpose.msra.mxu0 0.0
    %2816 = vmatpush.xpose.msra.mxu0 0.0
    %2817 = vmatpush.xpose.msra.mxu0 0.0
    %2818 = vmatpush.xpose.msra.mxu0 0.0
    %2819 = vmatpush.xpose.msra.mxu0 0.0
    %2820 = vmatpush.xpose.msra.mxu0 %v2803
    %2821 = vmatmul.f32.gmra.mxu0 %v2801
    %v2822 = vpop.f32.mrf.mxu0
    %v2823 = vadd.f32 0.0, %v2822
    %2824 = vdwg.mxu0
    %v2825 = vsel %vm423, %v2823, -inf
    %2826 = vmax.xlane.f32.xlu0 %v2825
    %v2827 = vpop.xlane.xlu0 %2826
    %v2828 = vsub.f32 %v2823, %v2827
    %v2829 = vmul.f32 %v2828, 1.442695
    %v2830 = vpow.pop %v2829
    %v2831 = vsel %vm423, %v2830, 0.0
    %2832 = vadd.xlane.f32.xlu0 %v2831
    %v2833 = vpop.xlane.xlu0 %2832
    %v2834 = vrcp.pop %v2833
    %v2835 = vmul.f32 %v2833, %v2834
    %v2836 = vsub.f32 1.0, %v2835
    %v2837 = vmul.f32 %v2834, %v2836
    %v2838 = vadd.f32 %v2834, %v2837
    %vm2839 = vweird.f32 %v2833
    %vm2840 = vweird.f32 %v2834
    %vm2841 = vmor %vm2839, %vm2840
    %v2842 = vsel %vm2841, %v2834, %v2838
    %v2843 = vand.u32 2147483647, %v2833
    %vm2844 = vcmp.eq.f32.partialorder %v2843, 8.507059e+37
    %v2845 = vand.u32 %v2833, 2147483648
    %v2846 = vor.u32 1.1754944e-38, %v2845
    %v2847 = vsel %vm2844, %v2846, %v2842
    %v2848 = vmul.f32 %v2830, %v2847
    %2849 = vrot.lane.b32.xlu0 %v2240, 104
    %v2850 = vpop.permute.xlu0 %2849
    %v2853 = vsel %vm423, %v2848, 0
    %2855 = vmatpush.msra.mxu0 0.0
    %2856 = vmatpush.msra.mxu0 0.0
    %2857 = vmatpush.msra.mxu0 0.0
    %2858 = vmatpush.msra.mxu0 0.0
    %2859 = vmatpush.msra.mxu0 0.0
    %2860 = vmatpush.msra.mxu0 0.0
    %2861 = vmatpush.msra.mxu0 0.0
    %2862 = vmatpush.msra.mxu0 0.0
    %2863 = vmatpush.msra.mxu0 0.0
    %2864 = vmatpush.msra.mxu0 0.0
    %2865 = vmatpush.msra.mxu0 0.0
    %2866 = vmatpush.msra.mxu0 0.0
    %2867 = vmatpush.msra.mxu0 0.0
    %2868 = vmatpush.msra.mxu0 0.0
    %2869 = vmatpush.msra.mxu0 0.0
    %2870 = vmatpush.msra.mxu0 %v2850
    %2871 = vmatmul.f32.gmra.mxu0 %v2853
    %v2872 = vpop.f32.mrf.mxu0
    %v2873 = vadd.f32 0.0, %v2872
    %2874 = vdwg.mxu0
    %2876 = vrot.lane.b32.xlu0 %v2717, 8
    %v2877 = vpop.permute.xlu0 %2876
    %2880 = vrot.lane.b32.xlu0 %v2795, 16
    %v2881 = vpop.permute.xlu0 %2880
    %2884 = vrot.lane.b32.xlu0 %v2873, 24
    %v2885 = vpop.permute.xlu0 %2884
    %v2887 = vsel %vm423, %v2638, %v2877
    %v2888 = vsel %vm743, %v2887, %v2881
    %v2889 = vsel %vm745, %v2888, %v2885
    %v2891 = vsel %vm243, %v2565, 0
    %v2894 = vsel %vm243, %v2889, 0
    %2896 = vmatpush.msra.mxu0 0.0
    %2897 = vmatpush.msra.mxu0 0.0
    %2898 = vmatpush.msra.mxu0 0.0
    %2899 = vmatpush.msra.mxu0 0.0
    %2900 = vmatpush.msra.mxu0 0.0
    %2901 = vmatpush.msra.mxu0 0.0
    %2902 = vmatpush.msra.mxu0 0.0
    %2903 = vmatpush.msra.mxu0 0.0
    %2904 = vmatpush.msra.mxu0 0.0
    %2905 = vmatpush.msra.mxu0 0.0
    %2906 = vmatpush.msra.mxu0 0.0
    %2907 = vmatpush.msra.mxu0 0.0
    %2908 = vmatpush.msra.mxu0 %v337
    %2909 = vmatpush.msra.mxu0 %v336
    %2910 = vmatpush.msra.mxu0 %v335
    %2911 = vmatpush.msra.mxu0 %v334
    %2912 = vmatmul.f32.gmra.mxu0 %v2891
    %v2913 = vpop.f32.mrf.mxu0
    %v2914 = vadd.f32 %v1072, %v2913
    %2915 = vmatmul.f32.gmra.mxu0 %v2894
    %v2916 = vpop.f32.mrf.mxu0
    %v2917 = vadd.f32 %v1072, %v2916
    %2918 = vdwg.mxu0
    %v2919 = vadd.f32 %v2112, %v2914
    %v2920 = vadd.f32 %v2113, %v2917
    %v2921 = vsel %vm243, %v2919, 0.0
    %2922 = vadd.xlane.f32.xlu0 %v2921
    %v2923 = vpop.xlane.xlu0 %2922
    %v2924 = vsel %vm243, %v2920, 0.0
    %2925 = vadd.xlane.f32.xlu0 %v2924
    %v2926 = vpop.xlane.xlu0 %2925
    %v2927 = vmul.f32 %v2923, %v1117
    %v2928 = vmul.f32 %v2926, %v1117
    %v2929 = vsub.f32 %v2919, %v2927
    %v2930 = vsub.f32 %v2920, %v2928
    %v2931 = vmul.f32 %v2929, %v2929
    %v2932 = vmul.f32 %v2930, %v2930
    %v2933 = vsel %vm243, %v2931, 0.0
    %2934 = vadd.xlane.f32.xlu0 %v2933
    %v2935 = vpop.xlane.xlu0 %2934
    %v2936 = vsel %vm243, %v2932, 0.0
    %2937 = vadd.xlane.f32.xlu0 %v2936
    %v2938 = vpop.xlane.xlu0 %2937
    %v2939 = vmul.f32 %v2935, %v1117
    %v2940 = vmul.f32 %v2938, %v1117
    %v2941 = vadd.f32 %v2939, 1e-05
    %v2942 = vadd.f32 %v2940, 1e-05
    %v2943 = vrsqrt.pop %v2941
    %v2944 = vmul.f32 %v2943, %v2941
    %v2945 = vmul.f32 %v2944, %v2943
    %v2946 = vmul.f32 0.5, %v2945
    %v2947 = vsub.f32 1.5, %v2946
    %v2948 = vmul.f32 %v2943, %v2947
    %vm2949 = vweird.f32 %v2941
    %vm2950 = vweird.f32 %v2943
    %vm2951 = vmor %vm2949, %vm2950
    %v2952 = vsel %vm2951, %v2943, %v2948
    %v2953 = vrsqrt.pop %v2942
    %v2954 = vmul.f32 %v2953, %v2942
    %v2955 = vmul.f32 %v2954, %v2953
    %v2956 = vmul.f32 0.5, %v2955
    %v2957 = vsub.f32 1.5, %v2956
    %v2958 = vmul.f32 %v2953, %v2957
    %vm2959 = vweird.f32 %v2942
    %vm2960 = vweird.f32 %v2953
    %vm2961 = vmor %vm2959, %vm2960
    %v2962 = vsel %vm2961, %v2953, %v2958
    %v2963 = vmul.f32 %v2929, %v2952
    %v2964 = vmul.f32 %v2930, %v2962
    %v2965 = vmul.f32 %v2963, %v1156
    %v2966 = vmul.f32 %v2964, %v1156
    %v2967 = vadd.f32 %v2965, %v1159
    %v2968 = vadd.f32 %v2966, %v1159
    %v2969 = vadd.f32 %v2967, %v221
    %v2970 = vadd.f32 %v2968, %v222
    %v2971 = vld [vmem:[%s10] sm:$0xff]
    %v2972 = vld [vmem:[%s10 + $0x8] sm:$0xff]
    %v2973 = vld [vmem:[%s10 + $0x10] sm:$0xff]
    %v2974 = vld [vmem:[%s10 + $0x18] sm:$0xff]
    %v2975 = vld [vmem:[#allocation2] sm:$0x1]
    %v2977 = vperm.slane %v2975, 0
    %v2980 = vsel %vm243, %v2969, 0
    %v2983 = vsel %vm243, %v2970, 0
    %2985 = vmatpush.msra.mxu0 0.0
    %2986 = vmatpush.msra.mxu0 0.0
    %2987 = vmatpush.msra.mxu0 0.0
    %2988 = vmatpush.msra.mxu0 0.0
    %2989 = vmatpush.msra.mxu0 0.0
    %2990 = vmatpush.msra.mxu0 0.0
    %2991 = vmatpush.msra.mxu0 0.0
    %2992 = vmatpush.msra.mxu0 0.0
    %2993 = vmatpush.msra.mxu0 0.0
    %2994 = vmatpush.msra.mxu0 0.0
    %2995 = vmatpush.msra.mxu0 0.0
    %2996 = vmatpush.msra.mxu0 0.0
    %2997 = vmatpush.msra.mxu0 %v2974
    %2998 = vmatpush.msra.mxu0 %v2973
    %2999 = vmatpush.msra.mxu0 %v2972
    %3000 = vmatpush.msra.mxu0 %v2971
    %3001 = vmatmul.f32.gmra.mxu0 %v2980
    %v3002 = vpop.f32.mrf.mxu0
    %v3003 = vadd.f32 %v2977, %v3002
    %3004 = vmatmul.f32.gmra.mxu0 %v2983
    %v3005 = vpop.f32.mrf.mxu0
    %v3006 = vadd.f32 %v2977, %v3005
    %3007 = vdwg.mxu0
    %v3009 = vsel %vm423, %v3003, 0
    %3011 = vmatpush.xpose.msra.mxu0 0.0
    %3012 = vmatpush.xpose.msra.mxu0 0.0
    %3013 = vmatpush.xpose.msra.mxu0 0.0
    %3014 = vmatpush.xpose.msra.mxu0 0.0
    %3015 = vmatpush.xpose.msra.mxu0 0.0
    %3016 = vmatpush.xpose.msra.mxu0 0.0
    %3017 = vmatpush.xpose.msra.mxu0 0.0
    %3018 = vmatpush.xpose.msra.mxu0 0.0
    %3019 = vmatpush.xpose.msra.mxu0 0.0
    %3020 = vmatpush.xpose.msra.mxu0 0.0
    %3021 = vmatpush.xpose.msra.mxu0 0.0
    %3022 = vmatpush.xpose.msra.mxu0 0.0
    %3023 = vmatpush.xpose.msra.mxu0 0.0
    %3024 = vmatpush.xpose.msra.mxu0 0.0
    %3025 = vmatpush.xpose.msra.mxu0 %v1208
    %3026 = vmatpush.xpose.msra.mxu0 %v1205
    %3027 = vmatmul.f32.gmra.mxu0 %v3009
    %v3028 = vpop.f32.mrf.mxu0
    %v3029 = vadd.f32 0.0, %v3028
    %3030 = vdwg.mxu0
    %v3031 = vsel %vm743, %v3029, -inf
    %3032 = vmax.xlane.f32.xlu0 %v3031
    %v3033 = vpop.xlane.xlu0 %3032
    %v3034 = vsub.f32 %v3029, %v3033
    %v3035 = vmul.f32 %v3034, 1.442695
    %v3036 = vpow.pop %v3035
    %v3037 = vsel %vm743, %v3036, 0.0
    %3038 = vadd.xlane.f32.xlu0 %v3037
    %v3039 = vpop.xlane.xlu0 %3038
    %v3040 = vrcp.pop %v3039
    %v3041 = vmul.f32 %v3039, %v3040
    %v3042 = vsub.f32 1.0, %v3041
    %v3043 = vmul.f32 %v3040, %v3042
    %v3044 = vadd.f32 %v3040, %v3043
    %vm3045 = vweird.f32 %v3039
    %vm3046 = vweird.f32 %v3040
    %vm3047 = vmor %vm3045, %vm3046
    %v3048 = vsel %vm3047, %v3040, %v3044
    %v3049 = vand.u32 2147483647, %v3039
    %vm3050 = vcmp.eq.f32.partialorder %v3049, 8.507059e+37
    %v3051 = vand.u32 %v3039, 2147483648
    %v3052 = vor.u32 1.1754944e-38, %v3051
    %v3053 = vsel %vm3050, %v3052, %v3048
    %v3054 = vmul.f32 %v3036, %v3053
    %v3056 = vsel %vm743, %v3054, 0
    %3058 = vmatpush.msra.mxu0 0.0
    %3059 = vmatpush.msra.mxu0 0.0
    %3060 = vmatpush.msra.mxu0 0.0
    %3061 = vmatpush.msra.mxu0 0.0
    %3062 = vmatpush.msra.mxu0 0.0
    %3063 = vmatpush.msra.mxu0 0.0
    %3064 = vmatpush.msra.mxu0 0.0
    %3065 = vmatpush.msra.mxu0 0.0
    %3066 = vmatpush.msra.mxu0 0.0
    %3067 = vmatpush.msra.mxu0 0.0
    %3068 = vmatpush.msra.mxu0 0.0
    %3069 = vmatpush.msra.mxu0 0.0
    %3070 = vmatpush.msra.mxu0 0.0
    %3071 = vmatpush.msra.mxu0 0.0
    %3072 = vmatpush.msra.mxu0 %v326
    %3073 = vmatpush.msra.mxu0 %v323
    %3074 = vmatmul.f32.gmra.mxu0 %v3056
    %v3075 = vpop.f32.mrf.mxu0
    %v3076 = vadd.f32 0.0, %v3075
    %3077 = vdwg.mxu0
    %3078 = vrot.lane.b32.xlu0 %v3003, 120
    %v3079 = vpop.permute.xlu0 %3078
    %v3080 = vsel %vm423, %v3079, 0
    %3082 = vmatpush.xpose.msra.mxu0 0.0
    %3083 = vmatpush.xpose.msra.mxu0 0.0
    %3084 = vmatpush.xpose.msra.mxu0 0.0
    %3085 = vmatpush.xpose.msra.mxu0 0.0
    %3086 = vmatpush.xpose.msra.mxu0 0.0
    %3087 = vmatpush.xpose.msra.mxu0 0.0
    %3088 = vmatpush.xpose.msra.mxu0 0.0
    %3089 = vmatpush.xpose.msra.mxu0 0.0
    %3090 = vmatpush.xpose.msra.mxu0 0.0
    %3091 = vmatpush.xpose.msra.mxu0 0.0
    %3092 = vmatpush.xpose.msra.mxu0 0.0
    %3093 = vmatpush.xpose.msra.mxu0 0.0
    %3094 = vmatpush.xpose.msra.mxu0 0.0
    %3095 = vmatpush.xpose.msra.mxu0 0.0
    %3096 = vmatpush.xpose.msra.mxu0 %v1287
    %3097 = vmatpush.xpose.msra.mxu0 %v1285
    %3098 = vmatmul.f32.gmra.mxu0 %v3080
    %v3099 = vpop.f32.mrf.mxu0
    %v3100 = vadd.f32 0.0, %v3099
    %3101 = vdwg.mxu0
    %v3102 = vsel %vm743, %v3100, -inf
    %3103 = vmax.xlane.f32.xlu0 %v3102
    %v3104 = vpop.xlane.xlu0 %3103
    %v3105 = vsub.f32 %v3100, %v3104
    %v3106 = vmul.f32 %v3105, 1.442695
    %v3107 = vpow.pop %v3106
    %v3108 = vsel %vm743, %v3107, 0.0
    %3109 = vadd.xlane.f32.xlu0 %v3108
    %v3110 = vpop.xlane.xlu0 %3109
    %v3111 = vrcp.pop %v3110
    %v3112 = vmul.f32 %v3110, %v3111
    %v3113 = vsub.f32 1.0, %v3112
    %v3114 = vmul.f32 %v3111, %v3113
    %v3115 = vadd.f32 %v3111, %v3114
    %vm3116 = vweird.f32 %v3110
    %vm3117 = vweird.f32 %v3111
    %vm3118 = vmor %vm3116, %vm3117
    %v3119 = vsel %vm3118, %v3111, %v3115
    %v3120 = vand.u32 2147483647, %v3110
    %vm3121 = vcmp.eq.f32.partialorder %v3120, 8.507059e+37
    %v3122 = vand.u32 %v3110, 2147483648
    %v3123 = vor.u32 1.1754944e-38, %v3122
    %v3124 = vsel %vm3121, %v3123, %v3119
    %v3125 = vmul.f32 %v3107, %v3124
    %v3127 = vsel %vm743, %v3125, 0
    %3129 = vmatpush.msra.mxu0 0.0
    %3130 = vmatpush.msra.mxu0 0.0
    %3131 = vmatpush.msra.mxu0 0.0
    %3132 = vmatpush.msra.mxu0 0.0
    %3133 = vmatpush.msra.mxu0 0.0
    %3134 = vmatpush.msra.mxu0 0.0
    %3135 = vmatpush.msra.mxu0 0.0
    %3136 = vmatpush.msra.mxu0 0.0
    %3137 = vmatpush.msra.mxu0 0.0
    %3138 = vmatpush.msra.mxu0 0.0
    %3139 = vmatpush.msra.mxu0 0.0
    %3140 = vmatpush.msra.mxu0 0.0
    %3141 = vmatpush.msra.mxu0 0.0
    %3142 = vmatpush.msra.mxu0 0.0
    %3143 = vmatpush.msra.mxu0 %v1338
    %3144 = vmatpush.msra.mxu0 %v1336
    %3145 = vmatmul.f32.gmra.mxu0 %v3127
    %v3146 = vpop.f32.mrf.mxu0
    %v3147 = vadd.f32 0.0, %v3146
    %3148 = vdwg.mxu0
    %3149 = vrot.lane.b32.xlu0 %v3003, 112
    %v3150 = vpop.permute.xlu0 %3149
    %v3151 = vsel %vm423, %v3150, 0
    %3153 = vmatpush.xpose.msra.mxu0 0.0
    %3154 = vmatpush.xpose.msra.mxu0 0.0
    %3155 = vmatpush.xpose.msra.mxu0 0.0
    %3156 = vmatpush.xpose.msra.mxu0 0.0
    %3157 = vmatpush.xpose.msra.mxu0 0.0
    %3158 = vmatpush.xpose.msra.mxu0 0.0
    %3159 = vmatpush.xpose.msra.mxu0 0.0
    %3160 = vmatpush.xpose.msra.mxu0 0.0
    %3161 = vmatpush.xpose.msra.mxu0 0.0
    %3162 = vmatpush.xpose.msra.mxu0 0.0
    %3163 = vmatpush.xpose.msra.mxu0 0.0
    %3164 = vmatpush.xpose.msra.mxu0 0.0
    %3165 = vmatpush.xpose.msra.mxu0 0.0
    %3166 = vmatpush.xpose.msra.mxu0 0.0
    %3167 = vmatpush.xpose.msra.mxu0 %v1374
    %3168 = vmatpush.xpose.msra.mxu0 %v1372
    %3169 = vmatmul.f32.gmra.mxu0 %v3151
    %v3170 = vpop.f32.mrf.mxu0
    %v3171 = vadd.f32 0.0, %v3170
    %3172 = vdwg.mxu0
    %v3173 = vsel %vm743, %v3171, -inf
    %3174 = vmax.xlane.f32.xlu0 %v3173
    %v3175 = vpop.xlane.xlu0 %3174
    %v3176 = vsub.f32 %v3171, %v3175
    %v3177 = vmul.f32 %v3176, 1.442695
    %v3178 = vpow.pop %v3177
    %v3179 = vsel %vm743, %v3178, 0.0
    %3180 = vadd.xlane.f32.xlu0 %v3179
    %v3181 = vpop.xlane.xlu0 %3180
    %v3182 = vrcp.pop %v3181
    %v3183 = vmul.f32 %v3181, %v3182
    %v3184 = vsub.f32 1.0, %v3183
    %v3185 = vmul.f32 %v3182, %v3184
    %v3186 = vadd.f32 %v3182, %v3185
    %vm3187 = vweird.f32 %v3181
    %vm3188 = vweird.f32 %v3182
    %vm3189 = vmor %vm3187, %vm3188
    %v3190 = vsel %vm3189, %v3182, %v3186
    %v3191 = vand.u32 2147483647, %v3181
    %vm3192 = vcmp.eq.f32.partialorder %v3191, 8.507059e+37
    %v3193 = vand.u32 %v3181, 2147483648
    %v3194 = vor.u32 1.1754944e-38, %v3193
    %v3195 = vsel %vm3192, %v3194, %v3190
    %v3196 = vmul.f32 %v3178, %v3195
    %v3198 = vsel %vm743, %v3196, 0
    %3200 = vmatpush.msra.mxu0 0.0
    %3201 = vmatpush.msra.mxu0 0.0
    %3202 = vmatpush.msra.mxu0 0.0
    %3203 = vmatpush.msra.mxu0 0.0
    %3204 = vmatpush.msra.mxu0 0.0
    %3205 = vmatpush.msra.mxu0 0.0
    %3206 = vmatpush.msra.mxu0 0.0
    %3207 = vmatpush.msra.mxu0 0.0
    %3208 = vmatpush.msra.mxu0 0.0
    %3209 = vmatpush.msra.mxu0 0.0
    %3210 = vmatpush.msra.mxu0 0.0
    %3211 = vmatpush.msra.mxu0 0.0
    %3212 = vmatpush.msra.mxu0 0.0
    %3213 = vmatpush.msra.mxu0 0.0
    %3214 = vmatpush.msra.mxu0 %v1423
    %3215 = vmatpush.msra.mxu0 %v1421
    %3216 = vmatmul.f32.gmra.mxu0 %v3198
    %v3217 = vpop.f32.mrf.mxu0
    %v3218 = vadd.f32 0.0, %v3217
    %3219 = vdwg.mxu0
    %3220 = vrot.lane.b32.xlu0 %v3003, 104
    %v3221 = vpop.permute.xlu0 %3220
    %v3222 = vsel %vm423, %v3221, 0
    %3224 = vmatpush.xpose.msra.mxu0 0.0
    %3225 = vmatpush.xpose.msra.mxu0 0.0
    %3226 = vmatpush.xpose.msra.mxu0 0.0
    %3227 = vmatpush.xpose.msra.mxu0 0.0
    %3228 = vmatpush.xpose.msra.mxu0 0.0
    %3229 = vmatpush.xpose.msra.mxu0 0.0
    %3230 = vmatpush.xpose.msra.mxu0 0.0
    %3231 = vmatpush.xpose.msra.mxu0 0.0
    %3232 = vmatpush.xpose.msra.mxu0 0.0
    %3233 = vmatpush.xpose.msra.mxu0 0.0
    %3234 = vmatpush.xpose.msra.mxu0 0.0
    %3235 = vmatpush.xpose.msra.mxu0 0.0
    %3236 = vmatpush.xpose.msra.mxu0 0.0
    %3237 = vmatpush.xpose.msra.mxu0 0.0
    %3238 = vmatpush.xpose.msra.mxu0 %v1459
    %3239 = vmatpush.xpose.msra.mxu0 %v1457
    %3240 = vmatmul.f32.gmra.mxu0 %v3222
    %v3241 = vpop.f32.mrf.mxu0
    %v3242 = vadd.f32 0.0, %v3241
    %3243 = vdwg.mxu0
    %v3244 = vsel %vm743, %v3242, -inf
    %3245 = vmax.xlane.f32.xlu0 %v3244
    %v3246 = vpop.xlane.xlu0 %3245
    %v3247 = vsub.f32 %v3242, %v3246
    %v3248 = vmul.f32 %v3247, 1.442695
    %v3249 = vpow.pop %v3248
    %v3250 = vsel %vm743, %v3249, 0.0
    %3251 = vadd.xlane.f32.xlu0 %v3250
    %v3252 = vpop.xlane.xlu0 %3251
    %v3253 = vrcp.pop %v3252
    %v3254 = vmul.f32 %v3252, %v3253
    %v3255 = vsub.f32 1.0, %v3254
    %v3256 = vmul.f32 %v3253, %v3255
    %v3257 = vadd.f32 %v3253, %v3256
    %vm3258 = vweird.f32 %v3252
    %vm3259 = vweird.f32 %v3253
    %vm3260 = vmor %vm3258, %vm3259
    %v3261 = vsel %vm3260, %v3253, %v3257
    %v3262 = vand.u32 2147483647, %v3252
    %vm3263 = vcmp.eq.f32.partialorder %v3262, 8.507059e+37
    %v3264 = vand.u32 %v3252, 2147483648
    %v3265 = vor.u32 1.1754944e-38, %v3264
    %v3266 = vsel %vm3263, %v3265, %v3261
    %v3267 = vmul.f32 %v3249, %v3266
    %v3269 = vsel %vm743, %v3267, 0
    %3271 = vmatpush.msra.mxu0 0.0
    %3272 = vmatpush.msra.mxu0 0.0
    %3273 = vmatpush.msra.mxu0 0.0
    %3274 = vmatpush.msra.mxu0 0.0
    %3275 = vmatpush.msra.mxu0 0.0
    %3276 = vmatpush.msra.mxu0 0.0
    %3277 = vmatpush.msra.mxu0 0.0
    %3278 = vmatpush.msra.mxu0 0.0
    %3279 = vmatpush.msra.mxu0 0.0
    %3280 = vmatpush.msra.mxu0 0.0
    %3281 = vmatpush.msra.mxu0 0.0
    %3282 = vmatpush.msra.mxu0 0.0
    %3283 = vmatpush.msra.mxu0 0.0
    %3284 = vmatpush.msra.mxu0 0.0
    %3285 = vmatpush.msra.mxu0 %v1508
    %3286 = vmatpush.msra.mxu0 %v1506
    %3287 = vmatmul.f32.gmra.mxu0 %v3269
    %v3288 = vpop.f32.mrf.mxu0
    %v3289 = vadd.f32 0.0, %v3288
    %3290 = vdwg.mxu0
    %3292 = vrot.lane.b32.xlu0 %v3147, 8
    %v3293 = vpop.permute.xlu0 %3292
    %3296 = vrot.lane.b32.xlu0 %v3218, 16
    %v3297 = vpop.permute.xlu0 %3296
    %3300 = vrot.lane.b32.xlu0 %v3289, 24
    %v3301 = vpop.permute.xlu0 %3300
    %v3303 = vsel %vm423, %v3076, %v3293
    %v3304 = vsel %vm743, %v3303, %v3297
    %v3305 = vsel %vm745, %v3304, %v3301
    %v3307 = vsel %vm423, %v3006, 0
    %3309 = vmatpush.xpose.msra.mxu0 0.0
    %3310 = vmatpush.xpose.msra.mxu0 0.0
    %3311 = vmatpush.xpose.msra.mxu0 0.0
    %3312 = vmatpush.xpose.msra.mxu0 0.0
    %3313 = vmatpush.xpose.msra.mxu0 0.0
    %3314 = vmatpush.xpose.msra.mxu0 0.0
    %3315 = vmatpush.xpose.msra.mxu0 0.0
    %3316 = vmatpush.xpose.msra.mxu0 0.0
    %3317 = vmatpush.xpose.msra.mxu0 0.0
    %3318 = vmatpush.xpose.msra.mxu0 0.0
    %3319 = vmatpush.xpose.msra.mxu0 0.0
    %3320 = vmatpush.xpose.msra.mxu0 0.0
    %3321 = vmatpush.xpose.msra.mxu0 0.0
    %3322 = vmatpush.xpose.msra.mxu0 0.0
    %3323 = vmatpush.xpose.msra.mxu0 %v1556
    %3324 = vmatpush.xpose.msra.mxu0 %v1553
    %3325 = vmatmul.f32.gmra.mxu0 %v3307
    %v3326 = vpop.f32.mrf.mxu0
    %v3327 = vadd.f32 0.0, %v3326
    %3328 = vdwg.mxu0
    %v3329 = vsel %vm743, %v3327, -inf
    %3330 = vmax.xlane.f32.xlu0 %v3329
    %v3331 = vpop.xlane.xlu0 %3330
    %v3332 = vsub.f32 %v3327, %v3331
    %v3333 = vmul.f32 %v3332, 1.442695
    %v3334 = vpow.pop %v3333
    %v3335 = vsel %vm743, %v3334, 0.0
    %3336 = vadd.xlane.f32.xlu0 %v3335
    %v3337 = vpop.xlane.xlu0 %3336
    %v3338 = vrcp.pop %v3337
    %v3339 = vmul.f32 %v3337, %v3338
    %v3340 = vsub.f32 1.0, %v3339
    %v3341 = vmul.f32 %v3338, %v3340
    %v3342 = vadd.f32 %v3338, %v3341
    %vm3343 = vweird.f32 %v3337
    %vm3344 = vweird.f32 %v3338
    %vm3345 = vmor %vm3343, %vm3344
    %v3346 = vsel %vm3345, %v3338, %v3342
    %v3347 = vand.u32 2147483647, %v3337
    %vm3348 = vcmp.eq.f32.partialorder %v3347, 8.507059e+37
    %v3349 = vand.u32 %v3337, 2147483648
    %v3350 = vor.u32 1.1754944e-38, %v3349
    %v3351 = vsel %vm3348, %v3350, %v3346
    %v3352 = vmul.f32 %v3334, %v3351
    %v3354 = vsel %vm743, %v3352, 0
    %3356 = vmatpush.msra.mxu0 0.0
    %3357 = vmatpush.msra.mxu0 0.0
    %3358 = vmatpush.msra.mxu0 0.0
    %3359 = vmatpush.msra.mxu0 0.0
    %3360 = vmatpush.msra.mxu0 0.0
    %3361 = vmatpush.msra.mxu0 0.0
    %3362 = vmatpush.msra.mxu0 0.0
    %3363 = vmatpush.msra.mxu0 0.0
    %3364 = vmatpush.msra.mxu0 0.0
    %3365 = vmatpush.msra.mxu0 0.0
    %3366 = vmatpush.msra.mxu0 0.0
    %3367 = vmatpush.msra.mxu0 0.0
    %3368 = vmatpush.msra.mxu0 0.0
    %3369 = vmatpush.msra.mxu0 0.0
    %3370 = vmatpush.msra.mxu0 %v332
    %3371 = vmatpush.msra.mxu0 %v329
    %3372 = vmatmul.f32.gmra.mxu0 %v3354
    %v3373 = vpop.f32.mrf.mxu0
    %v3374 = vadd.f32 0.0, %v3373
    %3375 = vdwg.mxu0
    %3376 = vrot.lane.b32.xlu0 %v3006, 120
    %v3377 = vpop.permute.xlu0 %3376
    %v3378 = vsel %vm423, %v3377, 0
    %3380 = vmatpush.xpose.msra.mxu0 0.0
    %3381 = vmatpush.xpose.msra.mxu0 0.0
    %3382 = vmatpush.xpose.msra.mxu0 0.0
    %3383 = vmatpush.xpose.msra.mxu0 0.0
    %3384 = vmatpush.xpose.msra.mxu0 0.0
    %3385 = vmatpush.xpose.msra.mxu0 0.0
    %3386 = vmatpush.xpose.msra.mxu0 0.0
    %3387 = vmatpush.xpose.msra.mxu0 0.0
    %3388 = vmatpush.xpose.msra.mxu0 0.0
    %3389 = vmatpush.xpose.msra.mxu0 0.0
    %3390 = vmatpush.xpose.msra.mxu0 0.0
    %3391 = vmatpush.xpose.msra.mxu0 0.0
    %3392 = vmatpush.xpose.msra.mxu0 0.0
    %3393 = vmatpush.xpose.msra.mxu0 0.0
    %3394 = vmatpush.xpose.msra.mxu0 %v1635
    %3395 = vmatpush.xpose.msra.mxu0 %v1633
    %3396 = vmatmul.f32.gmra.mxu0 %v3378
    %v3397 = vpop.f32.mrf.mxu0
    %v3398 = vadd.f32 0.0, %v3397
    %3399 = vdwg.mxu0
    %v3400 = vsel %vm743, %v3398, -inf
    %3401 = vmax.xlane.f32.xlu0 %v3400
    %v3402 = vpop.xlane.xlu0 %3401
    %v3403 = vsub.f32 %v3398, %v3402
    %v3404 = vmul.f32 %v3403, 1.442695
    %v3405 = vpow.pop %v3404
    %v3406 = vsel %vm743, %v3405, 0.0
    %3407 = vadd.xlane.f32.xlu0 %v3406
    %v3408 = vpop.xlane.xlu0 %3407
    %v3409 = vrcp.pop %v3408
    %v3410 = vmul.f32 %v3408, %v3409
    %v3411 = vsub.f32 1.0, %v3410
    %v3412 = vmul.f32 %v3409, %v3411
    %v3413 = vadd.f32 %v3409, %v3412
    %vm3414 = vweird.f32 %v3408
    %vm3415 = vweird.f32 %v3409
    %vm3416 = vmor %vm3414, %vm3415
    %v3417 = vsel %vm3416, %v3409, %v3413
    %v3418 = vand.u32 2147483647, %v3408
    %vm3419 = vcmp.eq.f32.partialorder %v3418, 8.507059e+37
    %v3420 = vand.u32 %v3408, 2147483648
    %v3421 = vor.u32 1.1754944e-38, %v3420
    %v3422 = vsel %vm3419, %v3421, %v3417
    %v3423 = vmul.f32 %v3405, %v3422
    %v3425 = vsel %vm743, %v3423, 0
    %3427 = vmatpush.msra.mxu0 0.0
    %3428 = vmatpush.msra.mxu0 0.0
    %3429 = vmatpush.msra.mxu0 0.0
    %3430 = vmatpush.msra.mxu0 0.0
    %3431 = vmatpush.msra.mxu0 0.0
    %3432 = vmatpush.msra.mxu0 0.0
    %3433 = vmatpush.msra.mxu0 0.0
    %3434 = vmatpush.msra.mxu0 0.0
    %3435 = vmatpush.msra.mxu0 0.0
    %3436 = vmatpush.msra.mxu0 0.0
    %3437 = vmatpush.msra.mxu0 0.0
    %3438 = vmatpush.msra.mxu0 0.0
    %3439 = vmatpush.msra.mxu0 0.0
    %3440 = vmatpush.msra.mxu0 0.0
    %3441 = vmatpush.msra.mxu0 %v1686
    %3442 = vmatpush.msra.mxu0 %v1684
    %3443 = vmatmul.f32.gmra.mxu0 %v3425
    %v3444 = vpop.f32.mrf.mxu0
    %v3445 = vadd.f32 0.0, %v3444
    %3446 = vdwg.mxu0
    %3447 = vrot.lane.b32.xlu0 %v3006, 112
    %v3448 = vpop.permute.xlu0 %3447
    %v3449 = vsel %vm423, %v3448, 0
    %3451 = vmatpush.xpose.msra.mxu0 0.0
    %3452 = vmatpush.xpose.msra.mxu0 0.0
    %3453 = vmatpush.xpose.msra.mxu0 0.0
    %3454 = vmatpush.xpose.msra.mxu0 0.0
    %3455 = vmatpush.xpose.msra.mxu0 0.0
    %3456 = vmatpush.xpose.msra.mxu0 0.0
    %3457 = vmatpush.xpose.msra.mxu0 0.0
    %3458 = vmatpush.xpose.msra.mxu0 0.0
    %3459 = vmatpush.xpose.msra.mxu0 0.0
    %3460 = vmatpush.xpose.msra.mxu0 0.0
    %3461 = vmatpush.xpose.msra.mxu0 0.0
    %3462 = vmatpush.xpose.msra.mxu0 0.0
    %3463 = vmatpush.xpose.msra.mxu0 0.0
    %3464 = vmatpush.xpose.msra.mxu0 0.0
    %3465 = vmatpush.xpose.msra.mxu0 %v1722
    %3466 = vmatpush.xpose.msra.mxu0 %v1720
    %3467 = vmatmul.f32.gmra.mxu0 %v3449
    %v3468 = vpop.f32.mrf.mxu0
    %v3469 = vadd.f32 0.0, %v3468
    %3470 = vdwg.mxu0
    %v3471 = vsel %vm743, %v3469, -inf
    %3472 = vmax.xlane.f32.xlu0 %v3471
    %v3473 = vpop.xlane.xlu0 %3472
    %v3474 = vsub.f32 %v3469, %v3473
    %v3475 = vmul.f32 %v3474, 1.442695
    %v3476 = vpow.pop %v3475
    %v3477 = vsel %vm743, %v3476, 0.0
    %3478 = vadd.xlane.f32.xlu0 %v3477
    %v3479 = vpop.xlane.xlu0 %3478
    %v3480 = vrcp.pop %v3479
    %v3481 = vmul.f32 %v3479, %v3480
    %v3482 = vsub.f32 1.0, %v3481
    %v3483 = vmul.f32 %v3480, %v3482
    %v3484 = vadd.f32 %v3480, %v3483
    %vm3485 = vweird.f32 %v3479
    %vm3486 = vweird.f32 %v3480
    %vm3487 = vmor %vm3485, %vm3486
    %v3488 = vsel %vm3487, %v3480, %v3484
    %v3489 = vand.u32 2147483647, %v3479
    %vm3490 = vcmp.eq.f32.partialorder %v3489, 8.507059e+37
    %v3491 = vand.u32 %v3479, 2147483648
    %v3492 = vor.u32 1.1754944e-38, %v3491
    %v3493 = vsel %vm3490, %v3492, %v3488
    %v3494 = vmul.f32 %v3476, %v3493
    %v3496 = vsel %vm743, %v3494, 0
    %3498 = vmatpush.msra.mxu0 0.0
    %3499 = vmatpush.msra.mxu0 0.0
    %3500 = vmatpush.msra.mxu0 0.0
    %3501 = vmatpush.msra.mxu0 0.0
    %3502 = vmatpush.msra.mxu0 0.0
    %3503 = vmatpush.msra.mxu0 0.0
    %3504 = vmatpush.msra.mxu0 0.0
    %3505 = vmatpush.msra.mxu0 0.0
    %3506 = vmatpush.msra.mxu0 0.0
    %3507 = vmatpush.msra.mxu0 0.0
    %3508 = vmatpush.msra.mxu0 0.0
    %3509 = vmatpush.msra.mxu0 0.0
    %3510 = vmatpush.msra.mxu0 0.0
    %3511 = vmatpush.msra.mxu0 0.0
    %3512 = vmatpush.msra.mxu0 %v1771
    %3513 = vmatpush.msra.mxu0 %v1769
    %3514 = vmatmul.f32.gmra.mxu0 %v3496
    %v3515 = vpop.f32.mrf.mxu0
    %v3516 = vadd.f32 0.0, %v3515
    %3517 = vdwg.mxu0
    %3518 = vrot.lane.b32.xlu0 %v3006, 104
    %v3519 = vpop.permute.xlu0 %3518
    %v3520 = vsel %vm423, %v3519, 0
    %3522 = vmatpush.xpose.msra.mxu0 0.0
    %3523 = vmatpush.xpose.msra.mxu0 0.0
    %3524 = vmatpush.xpose.msra.mxu0 0.0
    %3525 = vmatpush.xpose.msra.mxu0 0.0
    %3526 = vmatpush.xpose.msra.mxu0 0.0
    %3527 = vmatpush.xpose.msra.mxu0 0.0
    %3528 = vmatpush.xpose.msra.mxu0 0.0
    %3529 = vmatpush.xpose.msra.mxu0 0.0
    %3530 = vmatpush.xpose.msra.mxu0 0.0
    %3531 = vmatpush.xpose.msra.mxu0 0.0
    %3532 = vmatpush.xpose.msra.mxu0 0.0
    %3533 = vmatpush.xpose.msra.mxu0 0.0
    %3534 = vmatpush.xpose.msra.mxu0 0.0
    %3535 = vmatpush.xpose.msra.mxu0 0.0
    %3536 = vmatpush.xpose.msra.mxu0 %v1807
    %3537 = vmatpush.xpose.msra.mxu0 %v1805
    %3538 = vmatmul.f32.gmra.mxu0 %v3520
    %v3539 = vpop.f32.mrf.mxu0
    %v3540 = vadd.f32 0.0, %v3539
    %3541 = vdwg.mxu0
    %v3542 = vsel %vm743, %v3540, -inf
    %3543 = vmax.xlane.f32.xlu0 %v3542
    %v3544 = vpop.xlane.xlu0 %3543
    %v3545 = vsub.f32 %v3540, %v3544
    %v3546 = vmul.f32 %v3545, 1.442695
    %v3547 = vpow.pop %v3546
    %v3548 = vsel %vm743, %v3547, 0.0
    %3549 = vadd.xlane.f32.xlu0 %v3548
    %v3550 = vpop.xlane.xlu0 %3549
    %v3551 = vrcp.pop %v3550
    %v3552 = vmul.f32 %v3550, %v3551
    %v3553 = vsub.f32 1.0, %v3552
    %v3554 = vmul.f32 %v3551, %v3553
    %v3555 = vadd.f32 %v3551, %v3554
    %vm3556 = vweird.f32 %v3550
    %vm3557 = vweird.f32 %v3551
    %vm3558 = vmor %vm3556, %vm3557
    %v3559 = vsel %vm3558, %v3551, %v3555
    %v3560 = vand.u32 2147483647, %v3550
    %vm3561 = vcmp.eq.f32.partialorder %v3560, 8.507059e+37
    %v3562 = vand.u32 %v3550, 2147483648
    %v3563 = vor.u32 1.1754944e-38, %v3562
    %v3564 = vsel %vm3561, %v3563, %v3559
    %v3565 = vmul.f32 %v3547, %v3564
    %v3567 = vsel %vm743, %v3565, 0
    %3569 = vmatpush.msra.mxu0 0.0
    %3570 = vmatpush.msra.mxu0 0.0
    %3571 = vmatpush.msra.mxu0 0.0
    %3572 = vmatpush.msra.mxu0 0.0
    %3573 = vmatpush.msra.mxu0 0.0
    %3574 = vmatpush.msra.mxu0 0.0
    %3575 = vmatpush.msra.mxu0 0.0
    %3576 = vmatpush.msra.mxu0 0.0
    %3577 = vmatpush.msra.mxu0 0.0
    %3578 = vmatpush.msra.mxu0 0.0
    %3579 = vmatpush.msra.mxu0 0.0
    %3580 = vmatpush.msra.mxu0 0.0
    %3581 = vmatpush.msra.mxu0 0.0
    %3582 = vmatpush.msra.mxu0 0.0
    %3583 = vmatpush.msra.mxu0 %v1856
    %3584 = vmatpush.msra.mxu0 %v1854
    %3585 = vmatmul.f32.gmra.mxu0 %v3567
    %v3586 = vpop.f32.mrf.mxu0
    %v3587 = vadd.f32 0.0, %v3586
    %3588 = vdwg.mxu0
    %3590 = vrot.lane.b32.xlu0 %v3445, 8
    %v3591 = vpop.permute.xlu0 %3590
    %3594 = vrot.lane.b32.xlu0 %v3516, 16
    %v3595 = vpop.permute.xlu0 %3594
    %3598 = vrot.lane.b32.xlu0 %v3587, 24
    %v3599 = vpop.permute.xlu0 %3598
    %v3601 = vsel %vm423, %v3374, %v3591
    %v3602 = vsel %vm743, %v3601, %v3595
    %v3603 = vsel %vm745, %v3602, %v3599
    %v3605 = vsel %vm243, %v3305, 0
    %v3608 = vsel %vm243, %v3603, 0
    %3610 = vmatpush.msra.mxu0 0.0
    %3611 = vmatpush.msra.mxu0 0.0
    %3612 = vmatpush.msra.mxu0 0.0
    %3613 = vmatpush.msra.mxu0 0.0
    %3614 = vmatpush.msra.mxu0 0.0
    %3615 = vmatpush.msra.mxu0 0.0
    %3616 = vmatpush.msra.mxu0 0.0
    %3617 = vmatpush.msra.mxu0 0.0
    %3618 = vmatpush.msra.mxu0 0.0
    %3619 = vmatpush.msra.mxu0 0.0
    %3620 = vmatpush.msra.mxu0 0.0
    %3621 = vmatpush.msra.mxu0 0.0
    %3622 = vmatpush.msra.mxu0 %v342
    %3623 = vmatpush.msra.mxu0 %v341
    %3624 = vmatpush.msra.mxu0 %v340
    %3625 = vmatpush.msra.mxu0 %v339
    %3626 = vmatmul.f32.gmra.mxu0 %v3605
    %v3627 = vpop.f32.mrf.mxu0
    %v3628 = vadd.f32 %v1898, %v3627
    %3629 = vmatmul.f32.gmra.mxu0 %v3608
    %v3630 = vpop.f32.mrf.mxu0
    %v3631 = vadd.f32 %v1898, %v3630
    %3632 = vdwg.mxu0
    %v3633 = vadd.f32 %v2967, %v3628
    %v3634 = vadd.f32 %v2968, %v3631
    %v3635 = vsel %vm243, %v3633, 0.0
    %3636 = vadd.xlane.f32.xlu0 %v3635
    %v3637 = vpop.xlane.xlu0 %3636
    %v3638 = vsel %vm243, %v3634, 0.0
    %3639 = vadd.xlane.f32.xlu0 %v3638
    %v3640 = vpop.xlane.xlu0 %3639
    %v3641 = vmul.f32 %v3637, %v1117
    %v3642 = vmul.f32 %v3640, %v1117
    %v3643 = vsub.f32 %v3633, %v3641
    %v3644 = vsub.f32 %v3634, %v3642
    %v3645 = vmul.f32 %v3643, %v3643
    %v3646 = vmul.f32 %v3644, %v3644
    %v3647 = vsel %vm243, %v3645, 0.0
    %3648 = vadd.xlane.f32.xlu0 %v3647
    %v3649 = vpop.xlane.xlu0 %3648
    %v3650 = vsel %vm243, %v3646, 0.0
    %3651 = vadd.xlane.f32.xlu0 %v3650
    %v3652 = vpop.xlane.xlu0 %3651
    %v3653 = vmul.f32 %v3649, %v1117
    %v3654 = vmul.f32 %v3652, %v1117
    %v3655 = vadd.f32 %v3653, 1e-05
    %v3656 = vadd.f32 %v3654, 1e-05
    %v3657 = vrsqrt.pop %v3655
    %v3658 = vmul.f32 %v3657, %v3655
    %v3659 = vmul.f32 %v3658, %v3657
    %v3660 = vmul.f32 0.5, %v3659
    %v3661 = vsub.f32 1.5, %v3660
    %v3662 = vmul.f32 %v3657, %v3661
    %vm3663 = vweird.f32 %v3655
    %vm3664 = vweird.f32 %v3657
    %vm3665 = vmor %vm3663, %vm3664
    %v3666 = vsel %vm3665, %v3657, %v3662
    %v3667 = vrsqrt.pop %v3656
    %v3668 = vmul.f32 %v3667, %v3656
    %v3669 = vmul.f32 %v3668, %v3667
    %v3670 = vmul.f32 0.5, %v3669
    %v3671 = vsub.f32 1.5, %v3670
    %v3672 = vmul.f32 %v3667, %v3671
    %vm3673 = vweird.f32 %v3656
    %vm3674 = vweird.f32 %v3667
    %vm3675 = vmor %vm3673, %vm3674
    %v3676 = vsel %vm3675, %v3667, %v3672
    %v3677 = vmul.f32 %v3643, %v3666
    %v3678 = vmul.f32 %v3644, %v3676
    %v3679 = vmul.f32 %v3677, %v1975
    %v3680 = vmul.f32 %v3678, %v1975
    %v3681 = vadd.f32 %v3679, %v1978
    %v3682 = vadd.f32 %v3680, %v1978
    %v3683 = vld [vmem:[#allocation10] sm:$0xff]
    %v3684 = vld [vmem:[#allocation10 + $0x8] sm:$0xff]
    %v3685 = vld [vmem:[#allocation10 + $0x10] sm:$0xff]
    %v3686 = vld [vmem:[#allocation10 + $0x18] sm:$0xff]
    %v3687 = vld [vmem:[#allocation12] sm:$0x1]
    %v3689 = vperm.slane %v3687, 0
    %v3692 = vsel %vm243, %v3681, 0
    %v3695 = vsel %vm243, %v3682, 0
    %3697 = vmatpush.msra.mxu0 0.0
    %3698 = vmatpush.msra.mxu0 0.0
    %3699 = vmatpush.msra.mxu0 0.0
    %3700 = vmatpush.msra.mxu0 0.0
    %3701 = vmatpush.msra.mxu0 0.0
    %3702 = vmatpush.msra.mxu0 0.0
    %3703 = vmatpush.msra.mxu0 0.0
    %3704 = vmatpush.msra.mxu0 0.0
    %3705 = vmatpush.msra.mxu0 0.0
    %3706 = vmatpush.msra.mxu0 0.0
    %3707 = vmatpush.msra.mxu0 0.0
    %3708 = vmatpush.msra.mxu0 0.0
    %3709 = vmatpush.msra.mxu0 %v3686
    %3710 = vmatpush.msra.mxu0 %v3685
    %3711 = vmatpush.msra.mxu0 %v3684
    %3712 = vmatpush.msra.mxu0 %v3683
    %3713 = vmatmul.f32.gmra.mxu0 %v3692
    %v3714 = vpop.f32.mrf.mxu0
    %v3715 = vadd.f32 %v3689, %v3714
    %3716 = vmatmul.f32.gmra.mxu0 %v3695
    %v3717 = vpop.f32.mrf.mxu0
    %v3718 = vadd.f32 %v3689, %v3717
    %3719 = vdwg.mxu0
    %v3720 = vmax.f32 %v3715, 0.0
    %v3721 = vmax.f32 %v3718, 0.0
    %v3722 = vld [vmem:[%s20] sm:$0xff]
    %v3723 = vld [vmem:[%s20 + $0x8] sm:$0xff]
    %v3724 = vld [vmem:[%s20 + $0x10] sm:$0xff]
    %v3725 = vld [vmem:[%s20 + $0x18] sm:$0xff]
    %v3726 = vld [vmem:[%s20 + $0x20] sm:$0xff]
    %v3727 = vld [vmem:[%s20 + $0x28] sm:$0xff]
    %v3728 = vld [vmem:[%s20 + $0x30] sm:$0xff]
    %v3729 = vld [vmem:[%s20 + $0x38] sm:$0xff]
    %v3730 = vld [vmem:[#allocation13] sm:$0x1]
    %v3732 = vperm.slane %v3730, 0
    %v3735 = vsel %vm2032, %v3720, 0
    %v3738 = vsel %vm2032, %v3721, 0
    %3740 = vmatpush.msra.mxu0 0.0
    %3741 = vmatpush.msra.mxu0 0.0
    %3742 = vmatpush.msra.mxu0 0.0
    %3743 = vmatpush.msra.mxu0 0.0
    %3744 = vmatpush.msra.mxu0 0.0
    %3745 = vmatpush.msra.mxu0 0.0
    %3746 = vmatpush.msra.mxu0 0.0
    %3747 = vmatpush.msra.mxu0 0.0
    %3748 = vmatpush.msra.mxu0 %v3729
    %3749 = vmatpush.msra.mxu0 %v3728
    %3750 = vmatpush.msra.mxu0 %v3727
    %3751 = vmatpush.msra.mxu0 %v3726
    %3752 = vmatpush.msra.mxu0 %v3725
    %3753 = vmatpush.msra.mxu0 %v3724
    %3754 = vmatpush.msra.mxu0 %v3723
    %3755 = vmatpush.msra.mxu0 %v3722
    %3756 = vmatmul.f32.gmra.mxu0 %v3735
    %v3757 = vpop.f32.mrf.mxu0
    %v3758 = vadd.f32 %v3732, %v3757
    %3759 = vmatmul.f32.gmra.mxu0 %v3738
    %v3760 = vpop.f32.mrf.mxu0
    %v3761 = vadd.f32 %v3732, %v3760
    %3762 = vdwg.mxu0
    %v3763 = vadd.f32 %v3681, %v3758
    %v3764 = vadd.f32 %v3682, %v3761
    %v3765 = vsel %vm243, %v3763, 0.0
    %3766 = vadd.xlane.f32.xlu0 %v3765
    %v3767 = vpop.xlane.xlu0 %3766
    %v3768 = vsel %vm243, %v3764, 0.0
    %3769 = vadd.xlane.f32.xlu0 %v3768
    %v3770 = vpop.xlane.xlu0 %3769
    %v3771 = vmul.f32 %v3767, %v1117
    %v3772 = vmul.f32 %v3770, %v1117
    %v3773 = vsub.f32 %v3763, %v3771
    %v3774 = vsub.f32 %v3764, %v3772
    %v3775 = vmul.f32 %v3773, %v3773
    %v3776 = vmul.f32 %v3774, %v3774
    %v3777 = vsel %vm243, %v3775, 0.0
    %3778 = vadd.xlane.f32.xlu0 %v3777
    %v3779 = vpop.xlane.xlu0 %3778
    %v3780 = vsel %vm243, %v3776, 0.0
    %3781 = vadd.xlane.f32.xlu0 %v3780
    %v3782 = vpop.xlane.xlu0 %3781
    %v3783 = vmul.f32 %v3779, %v1117
    %v3784 = vmul.f32 %v3782, %v1117
    %v3785 = vadd.f32 %v3783, 1e-05
    %v3786 = vadd.f32 %v3784, 1e-05
    %v3787 = vrsqrt.pop %v3785
    %v3788 = vmul.f32 %v3787, %v3785
    %v3789 = vmul.f32 %v3788, %v3787
    %v3790 = vmul.f32 0.5, %v3789
    %v3791 = vsub.f32 1.5, %v3790
    %v3792 = vmul.f32 %v3787, %v3791
    %vm3793 = vweird.f32 %v3785
    %vm3794 = vweird.f32 %v3787
    %vm3795 = vmor %vm3793, %vm3794
    %v3796 = vsel %vm3795, %v3787, %v3792
    %v3797 = vrsqrt.pop %v3786
    %v3798 = vmul.f32 %v3797, %v3786
    %v3799 = vmul.f32 %v3798, %v3797
    %v3800 = vmul.f32 0.5, %v3799
    %v3801 = vsub.f32 1.5, %v3800
    %v3802 = vmul.f32 %v3797, %v3801
    %vm3803 = vweird.f32 %v3786
    %vm3804 = vweird.f32 %v3797
    %vm3805 = vmor %vm3803, %vm3804
    %v3806 = vsel %vm3805, %v3797, %v3802
    %v3807 = vmul.f32 %v3773, %v3796
    %v3808 = vmul.f32 %v3774, %v3806
    %v3809 = vmul.f32 %v3807, %v2108
    %v3810 = vmul.f32 %v3808, %v2108
    %v3811 = vadd.f32 %v3809, %v2111
    %v3812 = vadd.f32 %v3810, %v2111
    %v3813 = vsel %vm243, %v3811, 0.0
    %3814 = vadd.xlane.f32.xlu0 %v3813
    %v3815 = vpop.xlane.xlu0 %3814
    %v3816 = vsel %vm243, %v3812, 0.0
    %3817 = vadd.xlane.f32.xlu0 %v3816
    %v3818 = vpop.xlane.xlu0 %3817
    %v3819 = vmul.f32 %v3815, %v1117
    %v3820 = vmul.f32 %v3818, %v1117
    %v3821 = vsub.f32 %v3811, %v3819
    %v3822 = vsub.f32 %v3812, %v3820
    %v3823 = vmul.f32 %v3821, %v3821
    %v3824 = vmul.f32 %v3822, %v3822
    %v3825 = vsel %vm243, %v3823, 0.0
    %3826 = vadd.xlane.f32.xlu0 %v3825
    %v3827 = vpop.xlane.xlu0 %3826
    %v3828 = vsel %vm243, %v3824, 0.0
    %3829 = vadd.xlane.f32.xlu0 %v3828
    %v3830 = vpop.xlane.xlu0 %3829
    %v3831 = vmul.f32 %v3827, %v1117
    %v3832 = vmul.f32 %v3830, %v1117
    %v3833 = vadd.f32 %v3831, 1e-05
    %v3834 = vadd.f32 %v3832, 1e-05
    %v3835 = vrsqrt.pop %v3833
    %v3836 = vmul.f32 %v3835, %v3833
    %v3837 = vmul.f32 %v3836, %v3835
    %v3838 = vmul.f32 0.5, %v3837
    %v3839 = vsub.f32 1.5, %v3838
    %v3840 = vmul.f32 %v3835, %v3839
    %vm3841 = vweird.f32 %v3833
    %vm3842 = vweird.f32 %v3835
    %vm3843 = vmor %vm3841, %vm3842
    %v3844 = vsel %vm3843, %v3835, %v3840
    %v3845 = vrsqrt.pop %v3834
    %v3846 = vmul.f32 %v3845, %v3834
    %v3847 = vmul.f32 %v3846, %v3845
    %v3848 = vmul.f32 0.5, %v3847
    %v3849 = vsub.f32 1.5, %v3848
    %v3850 = vmul.f32 %v3845, %v3849
    %vm3851 = vweird.f32 %v3834
    %vm3852 = vweird.f32 %v3845
    %vm3853 = vmor %vm3851, %vm3852
    %v3854 = vsel %vm3853, %v3845, %v3850
    %v3855 = vmul.f32 %v3821, %v3844
    %v3856 = vmul.f32 %v3822, %v3854
    %v3857 = vmul.f32 %v3855, %v2158
    %v3858 = vmul.f32 %v3856, %v2158
    %v3859 = vadd.f32 %v3857, %v2161
    %v3860 = vadd.f32 %v3858, %v2161
    %s3861 = scalar_lea.vmem %s24, 16
    %3862 = vst.msk [vmem:[%s3861] sm:$0xff] %vm243, %v3859
    %3863 = vst.msk [vmem:[%s3861 + $0x8] sm:$0xff] %vm243, %v3860
    // Predicated region
    $region138: #{_lambda_.1} parent=1 // pred_check
      _
    $region139: #{_lambda_.1} parent=1 // pred_check_branch
      %3865 = sbr.rel (0) target = $region141
    $region140: #{_lambda_.1} parent=1 // pred_region
      _
    $region141: #{_lambda_.1} parent=1 // pred_fallthru
      _
    // Predicated region
    $region142: #{_lambda_.1} parent=1 // pred_check
      _
    $region143: #{_lambda_.1} parent=1 // pred_check_branch
      %3867 = sbr.rel (0) target = $region145
    $region144: #{_lambda_.1} parent=1 // pred_region
      _
    $region145: #{_lambda_.1} parent=1 // pred_fallthru
      _
    %3868 = vsyncpa [#allocation3], 1
    %3869 = vsyncpa [#allocation5], 1
    %3870 = vsyncpa [#allocation8], 1
    %3871 = vsyncpa [#allocation11], 1
    %3872 = vsyncpa [#allocation14], 1
    %3873 = vsyncpa [#allocation17], 1

</llo_original>
